<compile_context>
chip_gen: v5e
topology: v5e:2x2
jax: 0.10.0
libtpu: 0.0.40
codegen_flags: <defaults>
</compile_context>

<pallas_src>
import functools

import numpy as np

import jax
import jax.numpy as jnp
from jax.experimental import pallas as pl
from jax.experimental.pallas import tpu as pltpu

BN_EPS = 1e-5
LRN_ALPHA = 1e-4
LRN_BETA = 0.75  # applied in-kernel as d**-0.75 = rsqrt(d) * sqrt(rsqrt(d))
LRN_K = 1.0


def _fused_rcl_kernel(x_ref, rowcol_ref, w1_ref, a1_ref, w2_ref, a2_ref,
                      out_ref, *, KS, PAD, T, W):
    """Fused conv1 -> (rcl -> +x_rec -> LRN) * T, all resident in VMEM.

    x_ref     : (Cinp, M)            f32  input, channels zero-padded, M = N*H*W
    rowcol_ref: (2, M)               i32  per-position [row-in-image; col] table
    w1_ref    : (KS*KS, Coutp, Cinp) f32  conv1 weights, tap-major
    a1_ref    : (Coutp, 1)           f32  conv1 PReLU slopes
    w2_ref    : (KS*KS, Coutp, Coutp)f32  recurrent conv weights, tap-major
    a2_ref    : (Coutp, 1)           f32  recurrent PReLU slopes
    out_ref   : (Coutp, M)           f32  lane-dense output slab
    """
    M = x_ref.shape[1]
    cin = x_ref.shape[0]
    cout = out_ref.shape[0]

    # ---- hoisted loop invariants: weights (single bf16 cast), slopes, static
    # lane shifts, boundary masks at full (C, M) shape (no per-step broadcasts).
    w1 = w1_ref[...].astype(jnp.bfloat16)    # (KS*KS, cout, cin)
    w2 = w2_ref[...].astype(jnp.bfloat16)    # (KS*KS, cout, cout)
    a1 = a1_ref[...]                         # (cout, 1)
    a2 = a2_ref[...]
    rc = rowcol_ref[...]                     # (2, M) int32

    # Tap (dy, dx) reads the activation shifted down/right by (PAD-dy, PAD-dx);
    # on the flat (C, N*H*W) layout this is a lane rotation by s = ay*W + ax.
    shifts = [(PAD - dy) * W + (PAD - dx)
              for dy in range(KS) for dx in range(KS)]

    def build_masks(c):
        # {0,1} f32 masks zeroing reads that fall into the asymmetric zero
        # padding / across row or image boundaries.  For idx < s (the lanes a
        # roll by +s wraps around) row < ay or col < ax, so the mask also zeroes
        # exactly the wrapped lanes -> roll + mask == zero-shift.
        row = jnp.broadcast_to(rc[0:1, :], (c, M))
        col = jnp.broadcast_to(rc[1:2, :], (c, M))
        masks = []
        for dy in range(KS):
            for dx in range(KS):
                ay, ax = PAD - dy, PAD - dx
                if ay == 0 and ax == 0:
                    masks.append(None)  # center-ish tap: all valid
                else:
                    masks.append(((row >= ay) & (col >= ax)).astype(jnp.float32))
        return masks

    masks_in = build_masks(cin)
    masks_rec = masks_in if cin == cout else build_masks(cout)

    # LRN sublane-shift mask: zero the wrapped-around channel-0 row (hoisted).
    ch = jax.lax.broadcasted_iota(jnp.int32, (cout, M), 0)
    lrn_mask = (ch >= 1).astype(jnp.float32)

    inv_m = 1.0 / M

    def conv_prelu_bn(z, w_taps, a, masks):
        """ConvLayer: asym-padded conv (per-tap MXU accumulation) -> PReLU -> BN."""
        acc = None
        for t in range(KS * KS):
            s = shifts[t]
            if s == 0:
                tap = z.astype(jnp.bfloat16)
            else:
                # XLU lane rotation; mask zeroes wrapped + padded positions.
                tap = (pltpu.roll(z, shift=s, axis=1)
                       * masks[t]).astype(jnp.bfloat16)
            y_t = jax.lax.dot_general(
                w_taps[t], tap,
                dimension_numbers=(((1,), (0,)), ((), ())),
                preferred_element_type=jnp.float32)          # (cout, M) f32
            acc = y_t if acc is None else acc + y_t
        # PReLU with per-channel slope.
        y = jnp.where(acc > 0, acc, a * acc)
        # BatchNorm2d, training mode: biased batch stats over (N, H, W),
        # gamma=1, beta=0.  One-pass stats: var = E[y^2] - mean^2 (f32).
        mean = jnp.sum(y, axis=1, keepdims=True) * inv_m
        ex2 = jnp.sum(y * y, axis=1, keepdims=True) * inv_m
        var = ex2 - mean * mean
        return (y - mean) * jax.lax.rsqrt(var + BN_EPS)

    # conv1 block; its output is also the recurrent residual x_rec, which stays
    # resident for the whole (unrolled) time loop.
    x_rec = conv_prelu_bn(x_ref[...], w1, a1, masks_in)       # (cout, M)

    def rcl_step(_, z):
        y = conv_prelu_bn(z, w2, a2, masks_rec) + x_rec
        # LocalResponseNorm(size=2): div_c = (y_{c-1}^2 + y_c^2) / 2, y_{-1}=0.
        sq = y * y
        prev = pltpu.roll(sq, shift=1, axis=0) * lrn_mask     # sublane shift
        d = LRN_K + (LRN_ALPHA * 0.5) * (sq + prev)
        r = jax.lax.rsqrt(d)                                   # d^-0.5 (EUP)
        return y * (r * jnp.sqrt(r))                           # y * d^-0.75

    # T is static and small: full unroll gives the scheduler cross-iteration
    # visibility.
    out_ref[...] = jax.lax.fori_loop(0, T, rcl_step, x_rec, unroll=True)


@functools.partial(jax.jit,
                   static_argnames=("ks", "pad", "time_steps", "width"))
def _rcl_forward(x_cm, rowcol, w1_taps, a1, w2_taps, a2, *,
                 ks, pad, time_steps, width):
    c_out = w1_taps.shape[1]
    m = x_cm.shape[1]
    kern = functools.partial(_fused_rcl_kernel, KS=ks, PAD=pad, T=time_steps,
                             W=width)

    def full(shape):
        nd = len(shape)
        return pl.BlockSpec(shape, lambda i, _nd=nd: (0,) * _nd)

    # Whole problem is tiny and lives in VMEM; single grid step.
    return pl.pallas_call(
        kern,
        grid=(1,),
        in_specs=[full(x_cm.shape), full(rowcol.shape), full(w1_taps.shape),
                  full(a1.shape), full(w2_taps.shape), full(a2.shape)],
        out_specs=full((c_out, m)),
        out_shape=jax.ShapeDtypeStruct((c_out, m), jnp.float32),
        compiler_params=pltpu.CompilerParams(
            dimension_semantics=("arbitrary",),
            vmem_limit_bytes=32 * 1024 * 1024),
    )(x_cm, rowcol, w1_taps, a1, w2_taps, a2)


class RecurrentConvolutionalLayerPallas:
    """JAX/Pallas port of RecurrentConvolutionalLayer (odd-ks asym-pad config)."""

    def __init__(self, chan_in, chan_out, ks, pad, time_steps, key):
        assert isinstance(ks, int) and ks % 2 == 1, "odd integer kernel size supported"
        if isinstance(pad, tuple):
            assert pad[0] == pad[1], "only equal (left, top) padding supported"
            pad = pad[0]
        # The recurrence (x += x_rec) is only shape-consistent when the padded
        # conv preserves the spatial size, i.e. pad == ks - 1.
        assert pad == ks - 1, "RecurrentConvolutionalLayer requires pad == ks - 1"
        assert time_steps >= 1
        self.ks = ks
        self.pad = pad
        self.time_steps = time_steps
        self.chan_in = chan_in
        self.chan_out = chan_out
        # Pad both channel counts to sublane multiples so every (C, M) tile,
        # the LRN sublane shift and the output slab are (8,128)-tile aligned.
        self.chan_in_p = ((chan_in + 7) // 8) * 8
        self.chan_out_p = ((chan_out + 7) // 8) * 8

        k1, k2 = jax.random.split(key)
        # kaiming_normal_(mode='fan_out', nonlinearity='leaky_relu') equivalent.
        gain = (2.0 / (1.0 + 0.01 ** 2)) ** 0.5
        std = gain / float(chan_out * ks * ks) ** 0.5
        # HWIO weights (KH, KW, Cin, Cout).
        self.w1 = std * jax.random.normal(k1, (ks, ks, chan_in, chan_out), jnp.float32)
        self.w2 = std * jax.random.normal(k2, (ks, ks, chan_out, chan_out), jnp.float32)
        # nn.PReLU(chan_out): one slope per channel, init 0.25.
        self.a1 = jnp.full((chan_out, 1), 0.25, jnp.float32)
        self.a2 = jnp.full((chan_out, 1), 0.25, jnp.float32)

        # Tap-major kernel weights: w_taps[dy*ks+dx, co, ci] = w[dy, dx, ci, co],
        # channel dims zero-padded (padded channels stay exactly zero through
        # conv/PReLU/BN/LRN, so they never pollute real channels).
        w1p = jnp.pad(self.w1, ((0, 0), (0, 0),
                                (0, self.chan_in_p - chan_in),
                                (0, self.chan_out_p - chan_out)))
        w2p = jnp.pad(self.w2, ((0, 0), (0, 0),
                                (0, self.chan_out_p - chan_out),
                                (0, self.chan_out_p - chan_out)))
        self.w1_taps = jnp.transpose(w1p, (0, 1, 3, 2)).reshape(
            ks * ks, self.chan_out_p, self.chan_in_p)
        self.w2_taps = jnp.transpose(w2p, (0, 1, 3, 2)).reshape(
            ks * ks, self.chan_out_p, self.chan_out_p)
        self.a1_p = jnp.pad(self.a1, ((0, self.chan_out_p - chan_out), (0, 0)))
        self.a2_p = jnp.pad(self.a2, ((0, self.chan_out_p - chan_out), (0, 0)))
        # TODO(synk): BatchNorm running-mean/var updates (training-time side
        # effect) are not modeled; they do not affect the forward output.

    def __call__(self, x_nchw):
        n, c_in, h, w = x_nchw.shape
        assert c_in == self.chan_in
        m = n * h * w
        # NCHW -> channels on sublanes, flat (N*H*W) on lanes (lane-dense slab).
        x_cm = jnp.transpose(x_nchw.astype(jnp.float32),
                             (1, 0, 2, 3)).reshape(c_in, m)
        x_cm = jnp.pad(x_cm, ((0, self.chan_in_p - c_in), (0, 0)))
        # Tiny per-position [row-in-image; col] table; the per-tap boundary
        # masks are derived from it in-kernel (hoisted), so no (ks*ks, M) f32
        # mask array is DMA'd from HBM.
        idx = np.arange(m)
        rowcol = jnp.asarray(
            np.stack([(idx // w) % h, idx % w]).astype(np.int32))
        out_cm = _rcl_forward(x_cm, rowcol, self.w1_taps, self.a1_p,
                              self.w2_taps, self.a2_p,
                              ks=self.ks, pad=self.pad,
                              time_steps=self.time_steps, width=w)
        # (Coutp, N*H*W) lane-dense kernel output -> unpad -> NCHW.
        out = out_cm[:self.chan_out]
        return jnp.transpose(out.reshape(self.chan_out, n, h, w), (1, 0, 2, 3))


def _reference_forward(x_nchw, layer):
    """Pure-JAX (XLA) f32 reference of the PyTorch forward pass."""
    p = layer.pad

    def conv_block(x, w, a):
        xp = jnp.pad(x, ((0, 0), (0, 0), (p, 0), (p, 0)))  # ZeroPad2d((p,0,p,0))
        y = jax.lax.conv_general_dilated(
            xp, w, window_strides=(1, 1), padding="VALID",
            dimension_numbers=("NCHW", "HWIO", "NCHW"),
            precision=jax.lax.Precision.HIGHEST)
        a4 = a.reshape(1, -1, 1, 1)
        y = jnp.where(y > 0, y, a4 * y)
        mean = jnp.mean(y, axis=(0, 2, 3), keepdims=True)
        var = jnp.mean(jnp.square(y - mean), axis=(0, 2, 3), keepdims=True)
        return (y - mean) * jax.lax.rsqrt(var + BN_EPS)

    def lrn(z):
        sq = z * z
        prev = jnp.concatenate([jnp.zeros_like(sq[:, :1]), sq[:, :-1]], axis=1)
        div = 0.5 * (sq + prev)
        return z / jnp.power(LRN_K + LRN_ALPHA * div, LRN_BETA)

    x = conv_block(x_nchw, layer.w1, layer.a1)
    x_rec = x
    for _ in range(layer.time_steps):
        x = lrn(conv_block(x, layer.w2, layer.a2) + x_rec)
    return x


if __name__ == "__main__":
    key = jax.random.PRNGKey(0)
    k_in, k_param = jax.random.split(key)
    N, Cin, H, W = 2, 4, 16, 16
    Cout, ks, pad, time_steps = 8, 3, 2, 3

    x = jax.random.normal(k_in, (N, Cin, H, W), jnp.float32)
    layer = RecurrentConvolutionalLayerPallas(Cin, Cout, ks, pad, time_steps, k_param)

    out = layer(x)
    jax.block_until_ready(out)
    assert out.shape == (N, Cout, H, W), out.shape
    assert bool(jnp.all(jnp.isfinite(out)))

    # Tolerance-checked pure-JAX reference (bf16 MXU operands => ~1e-2 level).
    ref = _reference_forward(x, layer)
    err = float(jnp.max(jnp.abs(out - ref)) / (jnp.max(jnp.abs(ref)) + 1e-6))
    assert err < 5e-2, f"mismatch vs reference: rel-max err {err}"

    print("KERNEL_OK")
</pallas_src>

<mosaic_0001>
module attributes {stable_mosaic.version = 11 : i64} {
  func.func @_fused_rcl_kernel(%arg0: i32, %arg1: memref<8x512xf32, #tpu.memory_space<vmem>>, %arg2: memref<2x512xi32, #tpu.memory_space<vmem>>, %arg3: memref<9x8x8xf32, #tpu.memory_space<vmem>>, %arg4: memref<8x1xf32, #tpu.memory_space<vmem>>, %arg5: memref<9x8x8xf32, #tpu.memory_space<vmem>>, %arg6: memref<8x1xf32, #tpu.memory_space<vmem>>, %arg7: memref<8x512xf32, #tpu.memory_space<vmem>>) attributes {dimension_semantics = [#tpu.dimension_semantics<arbitrary>], iteration_bounds = array<i64: 1>, scalar_prefetch = 0 : i64, scratch_operands = 0 : i64, tpu.core_type = #tpu.core_type<tc>, window_params = [{pipeline_mode = #tpu.pipeline_mode<synchronous>, transform_indices = @transform_0, window_bounds = array<i64: 8, 512>}, {pipeline_mode = #tpu.pipeline_mode<synchronous>, transform_indices = @transform_1, window_bounds = array<i64: 2, 512>}, {pipeline_mode = #tpu.pipeline_mode<synchronous>, transform_indices = @transform_2, window_bounds = array<i64: 9, 8, 8>}, {pipeline_mode = #tpu.pipeline_mode<synchronous>, transform_indices = @transform_3, window_bounds = array<i64: 8, 1>}, {pipeline_mode = #tpu.pipeline_mode<synchronous>, transform_indices = @transform_4, window_bounds = array<i64: 9, 8, 8>}, {pipeline_mode = #tpu.pipeline_mode<synchronous>, transform_indices = @transform_5, window_bounds = array<i64: 8, 1>}, {pipeline_mode = #tpu.pipeline_mode<synchronous>, transform_indices = @transform_6, window_bounds = array<i64: 8, 512>}]} {
    %c0 = arith.constant 0 : index
    %c0_0 = arith.constant 0 : index
    %c0_1 = arith.constant 0 : index
    %0 = vector.load %arg3[%c0, %c0_0, %c0_1] : memref<9x8x8xf32, #tpu.memory_space<vmem>>, vector<9x8x8xf32>
    %1 = arith.truncf %0 : vector<9x8x8xf32> to vector<9x8x8xbf16>
    %c0_2 = arith.constant 0 : index
    %c0_3 = arith.constant 0 : index
    %c0_4 = arith.constant 0 : index
    %2 = vector.load %arg5[%c0_2, %c0_3, %c0_4] : memref<9x8x8xf32, #tpu.memory_space<vmem>>, vector<9x8x8xf32>
    %3 = arith.truncf %2 : vector<9x8x8xf32> to vector<9x8x8xbf16>
    %c0_5 = arith.constant 0 : index
    %c0_6 = arith.constant 0 : index
    %4 = vector.load %arg4[%c0_5, %c0_6] : memref<8x1xf32, #tpu.memory_space<vmem>>, vector<8x1xf32>
    %c0_7 = arith.constant 0 : index
    %c0_8 = arith.constant 0 : index
    %5 = vector.load %arg6[%c0_7, %c0_8] : memref<8x1xf32, #tpu.memory_space<vmem>>, vector<8x1xf32>
    %c0_9 = arith.constant 0 : index
    %c0_10 = arith.constant 0 : index
    %6 = vector.load %arg2[%c0_9, %c0_10] : memref<2x512xi32, #tpu.memory_space<vmem>>, vector<2x512xi32>
    %7 = vector.extract_strided_slice %6 {offsets = [0, 0], sizes = [1, 512], strides = [1, 1]} : vector<2x512xi32> to vector<1x512xi32>
    %8 = vector.shape_cast %7 : vector<1x512xi32> to vector<1x512xi32>
    %9 = vector.broadcast %8 : vector<1x512xi32> to vector<8x512xi32>
    %10 = vector.extract_strided_slice %6 {offsets = [1, 0], sizes = [1, 512], strides = [1, 1]} : vector<2x512xi32> to vector<1x512xi32>
    %11 = vector.shape_cast %10 : vector<1x512xi32> to vector<1x512xi32>
    %12 = vector.broadcast %11 : vector<1x512xi32> to vector<8x512xi32>
    %c2_i32 = arith.constant 2 : i32
    %13 = vector.broadcast %c2_i32 : i32 to vector<8x512xi32>
    %14 = arith.cmpi sge, %9, %13 : vector<8x512xi32>
    %c2_i32_11 = arith.constant 2 : i32
    %15 = vector.broadcast %c2_i32_11 : i32 to vector<8x512xi32>
    %16 = arith.cmpi sge, %12, %15 : vector<8x512xi32>
    %17 = arith.andi %14, %16 : vector<8x512xi1>
    %18 = arith.extui %17 : vector<8x512xi1> to vector<8x512xi32>
    %19 = arith.sitofp %18 : vector<8x512xi32> to vector<8x512xf32>
    %c2_i32_12 = arith.constant 2 : i32
    %20 = vector.broadcast %c2_i32_12 : i32 to vector<8x512xi32>
    %21 = arith.cmpi sge, %9, %20 : vector<8x512xi32>
    %c1_i32 = arith.constant 1 : i32
    %22 = vector.broadcast %c1_i32 : i32 to vector<8x512xi32>
    %23 = arith.cmpi sge, %12, %22 : vector<8x512xi32>
    %24 = arith.andi %21, %23 : vector<8x512xi1>
    %25 = arith.extui %24 : vector<8x512xi1> to vector<8x512xi32>
    %26 = arith.sitofp %25 : vector<8x512xi32> to vector<8x512xf32>
    %c2_i32_13 = arith.constant 2 : i32
    %27 = vector.broadcast %c2_i32_13 : i32 to vector<8x512xi32>
    %28 = arith.cmpi sge, %9, %27 : vector<8x512xi32>
    %c0_i32 = arith.constant 0 : i32
    %29 = vector.broadcast %c0_i32 : i32 to vector<8x512xi32>
    %30 = arith.cmpi sge, %12, %29 : vector<8x512xi32>
    %31 = arith.andi %28, %30 : vector<8x512xi1>
    %32 = arith.extui %31 : vector<8x512xi1> to vector<8x512xi32>
    %33 = arith.sitofp %32 : vector<8x512xi32> to vector<8x512xf32>
    %c1_i32_14 = arith.constant 1 : i32
    %34 = vector.broadcast %c1_i32_14 : i32 to vector<8x512xi32>
    %35 = arith.cmpi sge, %9, %34 : vector<8x512xi32>
    %c2_i32_15 = arith.constant 2 : i32
    %36 = vector.broadcast %c2_i32_15 : i32 to vector<8x512xi32>
    %37 = arith.cmpi sge, %12, %36 : vector<8x512xi32>
    %38 = arith.andi %35, %37 : vector<8x512xi1>
    %39 = arith.extui %38 : vector<8x512xi1> to vector<8x512xi32>
    %40 = arith.sitofp %39 : vector<8x512xi32> to vector<8x512xf32>
    %c1_i32_16 = arith.constant 1 : i32
    %41 = vector.broadcast %c1_i32_16 : i32 to vector<8x512xi32>
    %42 = arith.cmpi sge, %9, %41 : vector<8x512xi32>
    %c1_i32_17 = arith.constant 1 : i32
    %43 = vector.broadcast %c1_i32_17 : i32 to vector<8x512xi32>
    %44 = arith.cmpi sge, %12, %43 : vector<8x512xi32>
    %45 = arith.andi %42, %44 : vector<8x512xi1>
    %46 = arith.extui %45 : vector<8x512xi1> to vector<8x512xi32>
    %47 = arith.sitofp %46 : vector<8x512xi32> to vector<8x512xf32>
    %c1_i32_18 = arith.constant 1 : i32
    %48 = vector.broadcast %c1_i32_18 : i32 to vector<8x512xi32>
    %49 = arith.cmpi sge, %9, %48 : vector<8x512xi32>
    %c0_i32_19 = arith.constant 0 : i32
    %50 = vector.broadcast %c0_i32_19 : i32 to vector<8x512xi32>
    %51 = arith.cmpi sge, %12, %50 : vector<8x512xi32>
    %52 = arith.andi %49, %51 : vector<8x512xi1>
    %53 = arith.extui %52 : vector<8x512xi1> to vector<8x512xi32>
    %54 = arith.sitofp %53 : vector<8x512xi32> to vector<8x512xf32>
    %c0_i32_20 = arith.constant 0 : i32
    %55 = vector.broadcast %c0_i32_20 : i32 to vector<8x512xi32>
    %56 = arith.cmpi sge, %9, %55 : vector<8x512xi32>
    %c2_i32_21 = arith.constant 2 : i32
    %57 = vector.broadcast %c2_i32_21 : i32 to vector<8x512xi32>
    %58 = arith.cmpi sge, %12, %57 : vector<8x512xi32>
    %59 = arith.andi %56, %58 : vector<8x512xi1>
    %60 = arith.extui %59 : vector<8x512xi1> to vector<8x512xi32>
    %61 = arith.sitofp %60 : vector<8x512xi32> to vector<8x512xf32>
    %c0_i32_22 = arith.constant 0 : i32
    %62 = vector.broadcast %c0_i32_22 : i32 to vector<8x512xi32>
    %63 = arith.cmpi sge, %9, %62 : vector<8x512xi32>
    %c1_i32_23 = arith.constant 1 : i32
    %64 = vector.broadcast %c1_i32_23 : i32 to vector<8x512xi32>
    %65 = arith.cmpi sge, %12, %64 : vector<8x512xi32>
    %66 = arith.andi %63, %65 : vector<8x512xi1>
    %67 = arith.extui %66 : vector<8x512xi1> to vector<8x512xi32>
    %68 = arith.sitofp %67 : vector<8x512xi32> to vector<8x512xf32>
    %69 = tpu.iota {dimensions = array<i32: 0>} : vector<8x512xi32>
    %c1_i32_24 = arith.constant 1 : i32
    %70 = vector.broadcast %c1_i32_24 : i32 to vector<8x512xi32>
    %71 = arith.cmpi sge, %69, %70 : vector<8x512xi32>
    %72 = arith.extui %71 : vector<8x512xi1> to vector<8x512xi32>
    %73 = arith.sitofp %72 : vector<8x512xi32> to vector<8x512xf32>
    %c0_25 = arith.constant 0 : index
    %c0_26 = arith.constant 0 : index
    %74 = vector.load %arg1[%c0_25, %c0_26] : memref<8x512xf32, #tpu.memory_space<vmem>>, vector<8x512xf32>
    %c34_i32 = arith.constant 34 : i32
    %75 = tpu.dynamic_rotate %74 by %c34_i32 dim 1 : vector<8x512xf32>, i32 -> vector<8x512xf32>
    %76 = arith.mulf %75, %19 : vector<8x512xf32>
    %77 = arith.truncf %76 : vector<8x512xf32> to vector<8x512xbf16>
    %78 = vector.extract_strided_slice %1 {offsets = [0, 0, 0], sizes = [1, 8, 8], strides = [1, 1, 1]} : vector<9x8x8xbf16> to vector<1x8x8xbf16>
    %79 = vector.shape_cast %78 : vector<1x8x8xbf16> to vector<8x8xbf16>
    %cst = arith.constant dense<0.000000e+00> : vector<8x512xf32>
    %80 = tpu.matmul %79, %77, %cst {dimension_numbers = #tpu.dot_dimension_numbers<[1], [0], [0], [1], [0, 0, 1, 1], [], []>} : vector<8x8xbf16>, vector<8x512xbf16>, vector<8x512xf32> -> vector<8x512xf32>
    %c33_i32 = arith.constant 33 : i32
    %81 = tpu.dynamic_rotate %74 by %c33_i32 dim 1 : vector<8x512xf32>, i32 -> vector<8x512xf32>
    %82 = arith.mulf %81, %26 : vector<8x512xf32>
    %83 = arith.truncf %82 : vector<8x512xf32> to vector<8x512xbf16>
    %84 = vector.extract_strided_slice %1 {offsets = [1, 0, 0], sizes = [1, 8, 8], strides = [1, 1, 1]} : vector<9x8x8xbf16> to vector<1x8x8xbf16>
    %85 = vector.shape_cast %84 : vector<1x8x8xbf16> to vector<8x8xbf16>
    %cst_27 = arith.constant dense<0.000000e+00> : vector<8x512xf32>
    %86 = tpu.matmul %85, %83, %cst_27 {dimension_numbers = #tpu.dot_dimension_numbers<[1], [0], [0], [1], [0, 0, 1, 1], [], []>} : vector<8x8xbf16>, vector<8x512xbf16>, vector<8x512xf32> -> vector<8x512xf32>
    %87 = arith.addf %80, %86 : vector<8x512xf32>
    %c32_i32 = arith.constant 32 : i32
    %88 = tpu.dynamic_rotate %74 by %c32_i32 dim 1 : vector<8x512xf32>, i32 -> vector<8x512xf32>
    %89 = arith.mulf %88, %33 : vector<8x512xf32>
    %90 = arith.truncf %89 : vector<8x512xf32> to vector<8x512xbf16>
    %91 = vector.extract_strided_slice %1 {offsets = [2, 0, 0], sizes = [1, 8, 8], strides = [1, 1, 1]} : vector<9x8x8xbf16> to vector<1x8x8xbf16>
    %92 = vector.shape_cast %91 : vector<1x8x8xbf16> to vector<8x8xbf16>
    %cst_28 = arith.constant dense<0.000000e+00> : vector<8x512xf32>
    %93 = tpu.matmul %92, %90, %cst_28 {dimension_numbers = #tpu.dot_dimension_numbers<[1], [0], [0], [1], [0, 0, 1, 1], [], []>} : vector<8x8xbf16>, vector<8x512xbf16>, vector<8x512xf32> -> vector<8x512xf32>
    %94 = arith.addf %87, %93 : vector<8x512xf32>
    %c18_i32 = arith.constant 18 : i32
    %95 = tpu.dynamic_rotate %74 by %c18_i32 dim 1 : vector<8x512xf32>, i32 -> vector<8x512xf32>
    %96 = arith.mulf %95, %40 : vector<8x512xf32>
    %97 = arith.truncf %96 : vector<8x512xf32> to vector<8x512xbf16>
    %98 = vector.extract_strided_slice %1 {offsets = [3, 0, 0], sizes = [1, 8, 8], strides = [1, 1, 1]} : vector<9x8x8xbf16> to vector<1x8x8xbf16>
    %99 = vector.shape_cast %98 : vector<1x8x8xbf16> to vector<8x8xbf16>
    %cst_29 = arith.constant dense<0.000000e+00> : vector<8x512xf32>
    %100 = tpu.matmul %99, %97, %cst_29 {dimension_numbers = #tpu.dot_dimension_numbers<[1], [0], [0], [1], [0, 0, 1, 1], [], []>} : vector<8x8xbf16>, vector<8x512xbf16>, vector<8x512xf32> -> vector<8x512xf32>
    %101 = arith.addf %94, %100 : vector<8x512xf32>
    %c17_i32 = arith.constant 17 : i32
    %102 = tpu.dynamic_rotate %74 by %c17_i32 dim 1 : vector<8x512xf32>, i32 -> vector<8x512xf32>
    %103 = arith.mulf %102, %47 : vector<8x512xf32>
    %104 = arith.truncf %103 : vector<8x512xf32> to vector<8x512xbf16>
    %105 = vector.extract_strided_slice %1 {offsets = [4, 0, 0], sizes = [1, 8, 8], strides = [1, 1, 1]} : vector<9x8x8xbf16> to vector<1x8x8xbf16>
    %106 = vector.shape_cast %105 : vector<1x8x8xbf16> to vector<8x8xbf16>
    %cst_30 = arith.constant dense<0.000000e+00> : vector<8x512xf32>
    %107 = tpu.matmul %106, %104, %cst_30 {dimension_numbers = #tpu.dot_dimension_numbers<[1], [0], [0], [1], [0, 0, 1, 1], [], []>} : vector<8x8xbf16>, vector<8x512xbf16>, vector<8x512xf32> -> vector<8x512xf32>
    %108 = arith.addf %101, %107 : vector<8x512xf32>
    %c16_i32 = arith.constant 16 : i32
    %109 = tpu.dynamic_rotate %74 by %c16_i32 dim 1 : vector<8x512xf32>, i32 -> vector<8x512xf32>
    %110 = arith.mulf %109, %54 : vector<8x512xf32>
    %111 = arith.truncf %110 : vector<8x512xf32> to vector<8x512xbf16>
    %112 = vector.extract_strided_slice %1 {offsets = [5, 0, 0], sizes = [1, 8, 8], strides = [1, 1, 1]} : vector<9x8x8xbf16> to vector<1x8x8xbf16>
    %113 = vector.shape_cast %112 : vector<1x8x8xbf16> to vector<8x8xbf16>
    %cst_31 = arith.constant dense<0.000000e+00> : vector<8x512xf32>
    %114 = tpu.matmul %113, %111, %cst_31 {dimension_numbers = #tpu.dot_dimension_numbers<[1], [0], [0], [1], [0, 0, 1, 1], [], []>} : vector<8x8xbf16>, vector<8x512xbf16>, vector<8x512xf32> -> vector<8x512xf32>
    %115 = arith.addf %108, %114 : vector<8x512xf32>
    %c2_i32_32 = arith.constant 2 : i32
    %116 = tpu.dynamic_rotate %74 by %c2_i32_32 dim 1 : vector<8x512xf32>, i32 -> vector<8x512xf32>
    %117 = arith.mulf %116, %61 : vector<8x512xf32>
    %118 = arith.truncf %117 : vector<8x512xf32> to vector<8x512xbf16>
    %119 = vector.extract_strided_slice %1 {offsets = [6, 0, 0], sizes = [1, 8, 8], strides = [1, 1, 1]} : vector<9x8x8xbf16> to vector<1x8x8xbf16>
    %120 = vector.shape_cast %119 : vector<1x8x8xbf16> to vector<8x8xbf16>
    %cst_33 = arith.constant dense<0.000000e+00> : vector<8x512xf32>
    %121 = tpu.matmul %120, %118, %cst_33 {dimension_numbers = #tpu.dot_dimension_numbers<[1], [0], [0], [1], [0, 0, 1, 1], [], []>} : vector<8x8xbf16>, vector<8x512xbf16>, vector<8x512xf32> -> vector<8x512xf32>
    %122 = arith.addf %115, %121 : vector<8x512xf32>
    %c1_i32_34 = arith.constant 1 : i32
    %123 = tpu.dynamic_rotate %74 by %c1_i32_34 dim 1 : vector<8x512xf32>, i32 -> vector<8x512xf32>
    %124 = arith.mulf %123, %68 : vector<8x512xf32>
    %125 = arith.truncf %124 : vector<8x512xf32> to vector<8x512xbf16>
    %126 = vector.extract_strided_slice %1 {offsets = [7, 0, 0], sizes = [1, 8, 8], strides = [1, 1, 1]} : vector<9x8x8xbf16> to vector<1x8x8xbf16>
    %127 = vector.shape_cast %126 : vector<1x8x8xbf16> to vector<8x8xbf16>
    %cst_35 = arith.constant dense<0.000000e+00> : vector<8x512xf32>
    %128 = tpu.matmul %127, %125, %cst_35 {dimension_numbers = #tpu.dot_dimension_numbers<[1], [0], [0], [1], [0, 0, 1, 1], [], []>} : vector<8x8xbf16>, vector<8x512xbf16>, vector<8x512xf32> -> vector<8x512xf32>
    %129 = arith.addf %122, %128 : vector<8x512xf32>
    %130 = arith.truncf %74 : vector<8x512xf32> to vector<8x512xbf16>
    %131 = vector.extract_strided_slice %1 {offsets = [8, 0, 0], sizes = [1, 8, 8], strides = [1, 1, 1]} : vector<9x8x8xbf16> to vector<1x8x8xbf16>
    %132 = vector.shape_cast %131 : vector<1x8x8xbf16> to vector<8x8xbf16>
    %cst_36 = arith.constant dense<0.000000e+00> : vector<8x512xf32>
    %133 = tpu.matmul %132, %130, %cst_36 {dimension_numbers = #tpu.dot_dimension_numbers<[1], [0], [0], [1], [0, 0, 1, 1], [], []>} : vector<8x8xbf16>, vector<8x512xbf16>, vector<8x512xf32> -> vector<8x512xf32>
    %134 = arith.addf %129, %133 : vector<8x512xf32>
    %cst_37 = arith.constant 0.000000e+00 : f32
    %135 = vector.broadcast %cst_37 : f32 to vector<8x512xf32>
    %136 = arith.cmpf ogt, %134, %135 : vector<8x512xf32>
    %137 = vector.broadcast %4 : vector<8x1xf32> to vector<8x512xf32>
    %138 = arith.mulf %137, %134 : vector<8x512xf32>
    %139 = arith.select %136, %134, %138 : vector<8x512xi1>, vector<8x512xf32>
    %cst_38 = arith.constant dense<0.000000e+00> : vector<8xf32>
    %140 = vector.multi_reduction <add>, %139, %cst_38 [1] : vector<8x512xf32> to vector<8xf32>
    %141 = vector.shape_cast %140 : vector<8xf32> to vector<8x1xf32>
    %cst_39 = arith.constant 0.001953125 : f32
    %142 = vector.broadcast %cst_39 : f32 to vector<8x1xf32>
    %143 = arith.mulf %141, %142 : vector<8x1xf32>
    %144 = arith.mulf %139, %139 : vector<8x512xf32>
    %cst_40 = arith.constant dense<0.000000e+00> : vector<8xf32>
    %145 = vector.multi_reduction <add>, %144, %cst_40 [1] : vector<8x512xf32> to vector<8xf32>
    %146 = vector.shape_cast %145 : vector<8xf32> to vector<8x1xf32>
    %cst_41 = arith.constant 0.001953125 : f32
    %147 = vector.broadcast %cst_41 : f32 to vector<8x1xf32>
    %148 = arith.mulf %146, %147 : vector<8x1xf32>
    %149 = arith.mulf %143, %143 : vector<8x1xf32>
    %150 = arith.subf %148, %149 : vector<8x1xf32>
    %151 = vector.broadcast %143 : vector<8x1xf32> to vector<8x512xf32>
    %152 = arith.subf %139, %151 : vector<8x512xf32>
    %cst_42 = arith.constant 9.99999974E-6 : f32
    %153 = vector.broadcast %cst_42 : f32 to vector<8x1xf32>
    %154 = arith.addf %150, %153 : vector<8x1xf32>
    %155 = math.rsqrt %154 : vector<8x1xf32>
    %156 = vector.broadcast %155 : vector<8x1xf32> to vector<8x512xf32>
    %157 = arith.mulf %152, %156 : vector<8x512xf32>
    %c0_i32_43 = arith.constant 0 : i32
    %c34_i32_44 = arith.constant 34 : i32
    %158 = tpu.dynamic_rotate %157 by %c34_i32_44 dim 1 : vector<8x512xf32>, i32 -> vector<8x512xf32>
    %159 = arith.mulf %158, %19 : vector<8x512xf32>
    %160 = arith.truncf %159 : vector<8x512xf32> to vector<8x512xbf16>
    %161 = vector.extract_strided_slice %3 {offsets = [0, 0, 0], sizes = [1, 8, 8], strides = [1, 1, 1]} : vector<9x8x8xbf16> to vector<1x8x8xbf16>
    %162 = vector.shape_cast %161 : vector<1x8x8xbf16> to vector<8x8xbf16>
    %cst_45 = arith.constant dense<0.000000e+00> : vector<8x512xf32>
    %163 = tpu.matmul %162, %160, %cst_45 {dimension_numbers = #tpu.dot_dimension_numbers<[1], [0], [0], [1], [0, 0, 1, 1], [], []>} : vector<8x8xbf16>, vector<8x512xbf16>, vector<8x512xf32> -> vector<8x512xf32>
    %c33_i32_46 = arith.constant 33 : i32
    %164 = tpu.dynamic_rotate %157 by %c33_i32_46 dim 1 : vector<8x512xf32>, i32 -> vector<8x512xf32>
    %165 = arith.mulf %164, %26 : vector<8x512xf32>
    %166 = arith.truncf %165 : vector<8x512xf32> to vector<8x512xbf16>
    %167 = vector.extract_strided_slice %3 {offsets = [1, 0, 0], sizes = [1, 8, 8], strides = [1, 1, 1]} : vector<9x8x8xbf16> to vector<1x8x8xbf16>
    %168 = vector.shape_cast %167 : vector<1x8x8xbf16> to vector<8x8xbf16>
    %cst_47 = arith.constant dense<0.000000e+00> : vector<8x512xf32>
    %169 = tpu.matmul %168, %166, %cst_47 {dimension_numbers = #tpu.dot_dimension_numbers<[1], [0], [0], [1], [0, 0, 1, 1], [], []>} : vector<8x8xbf16>, vector<8x512xbf16>, vector<8x512xf32> -> vector<8x512xf32>
    %170 = arith.addf %163, %169 : vector<8x512xf32>
    %c32_i32_48 = arith.constant 32 : i32
    %171 = tpu.dynamic_rotate %157 by %c32_i32_48 dim 1 : vector<8x512xf32>, i32 -> vector<8x512xf32>
    %172 = arith.mulf %171, %33 : vector<8x512xf32>
    %173 = arith.truncf %172 : vector<8x512xf32> to vector<8x512xbf16>
    %174 = vector.extract_strided_slice %3 {offsets = [2, 0, 0], sizes = [1, 8, 8], strides = [1, 1, 1]} : vector<9x8x8xbf16> to vector<1x8x8xbf16>
    %175 = vector.shape_cast %174 : vector<1x8x8xbf16> to vector<8x8xbf16>
    %cst_49 = arith.constant dense<0.000000e+00> : vector<8x512xf32>
    %176 = tpu.matmul %175, %173, %cst_49 {dimension_numbers = #tpu.dot_dimension_numbers<[1], [0], [0], [1], [0, 0, 1, 1], [], []>} : vector<8x8xbf16>, vector<8x512xbf16>, vector<8x512xf32> -> vector<8x512xf32>
    %177 = arith.addf %170, %176 : vector<8x512xf32>
    %c18_i32_50 = arith.constant 18 : i32
    %178 = tpu.dynamic_rotate %157 by %c18_i32_50 dim 1 : vector<8x512xf32>, i32 -> vector<8x512xf32>
    %179 = arith.mulf %178, %40 : vector<8x512xf32>
    %180 = arith.truncf %179 : vector<8x512xf32> to vector<8x512xbf16>
    %181 = vector.extract_strided_slice %3 {offsets = [3, 0, 0], sizes = [1, 8, 8], strides = [1, 1, 1]} : vector<9x8x8xbf16> to vector<1x8x8xbf16>
    %182 = vector.shape_cast %181 : vector<1x8x8xbf16> to vector<8x8xbf16>
    %cst_51 = arith.constant dense<0.000000e+00> : vector<8x512xf32>
    %183 = tpu.matmul %182, %180, %cst_51 {dimension_numbers = #tpu.dot_dimension_numbers<[1], [0], [0], [1], [0, 0, 1, 1], [], []>} : vector<8x8xbf16>, vector<8x512xbf16>, vector<8x512xf32> -> vector<8x512xf32>
    %184 = arith.addf %177, %183 : vector<8x512xf32>
    %c17_i32_52 = arith.constant 17 : i32
    %185 = tpu.dynamic_rotate %157 by %c17_i32_52 dim 1 : vector<8x512xf32>, i32 -> vector<8x512xf32>
    %186 = arith.mulf %185, %47 : vector<8x512xf32>
    %187 = arith.truncf %186 : vector<8x512xf32> to vector<8x512xbf16>
    %188 = vector.extract_strided_slice %3 {offsets = [4, 0, 0], sizes = [1, 8, 8], strides = [1, 1, 1]} : vector<9x8x8xbf16> to vector<1x8x8xbf16>
    %189 = vector.shape_cast %188 : vector<1x8x8xbf16> to vector<8x8xbf16>
    %cst_53 = arith.constant dense<0.000000e+00> : vector<8x512xf32>
    %190 = tpu.matmul %189, %187, %cst_53 {dimension_numbers = #tpu.dot_dimension_numbers<[1], [0], [0], [1], [0, 0, 1, 1], [], []>} : vector<8x8xbf16>, vector<8x512xbf16>, vector<8x512xf32> -> vector<8x512xf32>
    %191 = arith.addf %184, %190 : vector<8x512xf32>
    %c16_i32_54 = arith.constant 16 : i32
    %192 = tpu.dynamic_rotate %157 by %c16_i32_54 dim 1 : vector<8x512xf32>, i32 -> vector<8x512xf32>
    %193 = arith.mulf %192, %54 : vector<8x512xf32>
    %194 = arith.truncf %193 : vector<8x512xf32> to vector<8x512xbf16>
    %195 = vector.extract_strided_slice %3 {offsets = [5, 0, 0], sizes = [1, 8, 8], strides = [1, 1, 1]} : vector<9x8x8xbf16> to vector<1x8x8xbf16>
    %196 = vector.shape_cast %195 : vector<1x8x8xbf16> to vector<8x8xbf16>
    %cst_55 = arith.constant dense<0.000000e+00> : vector<8x512xf32>
    %197 = tpu.matmul %196, %194, %cst_55 {dimension_numbers = #tpu.dot_dimension_numbers<[1], [0], [0], [1], [0, 0, 1, 1], [], []>} : vector<8x8xbf16>, vector<8x512xbf16>, vector<8x512xf32> -> vector<8x512xf32>
    %198 = arith.addf %191, %197 : vector<8x512xf32>
    %c2_i32_56 = arith.constant 2 : i32
    %199 = tpu.dynamic_rotate %157 by %c2_i32_56 dim 1 : vector<8x512xf32>, i32 -> vector<8x512xf32>
    %200 = arith.mulf %199, %61 : vector<8x512xf32>
    %201 = arith.truncf %200 : vector<8x512xf32> to vector<8x512xbf16>
    %202 = vector.extract_strided_slice %3 {offsets = [6, 0, 0], sizes = [1, 8, 8], strides = [1, 1, 1]} : vector<9x8x8xbf16> to vector<1x8x8xbf16>
    %203 = vector.shape_cast %202 : vector<1x8x8xbf16> to vector<8x8xbf16>
    %cst_57 = arith.constant dense<0.000000e+00> : vector<8x512xf32>
    %204 = tpu.matmul %203, %201, %cst_57 {dimension_numbers = #tpu.dot_dimension_numbers<[1], [0], [0], [1], [0, 0, 1, 1], [], []>} : vector<8x8xbf16>, vector<8x512xbf16>, vector<8x512xf32> -> vector<8x512xf32>
    %205 = arith.addf %198, %204 : vector<8x512xf32>
    %c1_i32_58 = arith.constant 1 : i32
    %206 = tpu.dynamic_rotate %157 by %c1_i32_58 dim 1 : vector<8x512xf32>, i32 -> vector<8x512xf32>
    %207 = arith.mulf %206, %68 : vector<8x512xf32>
    %208 = arith.truncf %207 : vector<8x512xf32> to vector<8x512xbf16>
    %209 = vector.extract_strided_slice %3 {offsets = [7, 0, 0], sizes = [1, 8, 8], strides = [1, 1, 1]} : vector<9x8x8xbf16> to vector<1x8x8xbf16>
    %210 = vector.shape_cast %209 : vector<1x8x8xbf16> to vector<8x8xbf16>
    %cst_59 = arith.constant dense<0.000000e+00> : vector<8x512xf32>
    %211 = tpu.matmul %210, %208, %cst_59 {dimension_numbers = #tpu.dot_dimension_numbers<[1], [0], [0], [1], [0, 0, 1, 1], [], []>} : vector<8x8xbf16>, vector<8x512xbf16>, vector<8x512xf32> -> vector<8x512xf32>
    %212 = arith.addf %205, %211 : vector<8x512xf32>
    %213 = arith.truncf %157 : vector<8x512xf32> to vector<8x512xbf16>
    %214 = vector.extract_strided_slice %3 {offsets = [8, 0, 0], sizes = [1, 8, 8], strides = [1, 1, 1]} : vector<9x8x8xbf16> to vector<1x8x8xbf16>
    %215 = vector.shape_cast %214 : vector<1x8x8xbf16> to vector<8x8xbf16>
    %cst_60 = arith.constant dense<0.000000e+00> : vector<8x512xf32>
    %216 = tpu.matmul %215, %213, %cst_60 {dimension_numbers = #tpu.dot_dimension_numbers<[1], [0], [0], [1], [0, 0, 1, 1], [], []>} : vector<8x8xbf16>, vector<8x512xbf16>, vector<8x512xf32> -> vector<8x512xf32>
    %217 = arith.addf %212, %216 : vector<8x512xf32>
    %cst_61 = arith.constant 0.000000e+00 : f32
    %218 = vector.broadcast %cst_61 : f32 to vector<8x512xf32>
    %219 = arith.cmpf ogt, %217, %218 : vector<8x512xf32>
    %220 = vector.broadcast %5 : vector<8x1xf32> to vector<8x512xf32>
    %221 = arith.mulf %220, %217 : vector<8x512xf32>
    %222 = arith.select %219, %217, %221 : vector<8x512xi1>, vector<8x512xf32>
    %cst_62 = arith.constant dense<0.000000e+00> : vector<8xf32>
    %223 = vector.multi_reduction <add>, %222, %cst_62 [1] : vector<8x512xf32> to vector<8xf32>
    %224 = vector.shape_cast %223 : vector<8xf32> to vector<8x1xf32>
    %cst_63 = arith.constant 0.001953125 : f32
    %225 = vector.broadcast %cst_63 : f32 to vector<8x1xf32>
    %226 = arith.mulf %224, %225 : vector<8x1xf32>
    %227 = arith.mulf %222, %222 : vector<8x512xf32>
    %cst_64 = arith.constant dense<0.000000e+00> : vector<8xf32>
    %228 = vector.multi_reduction <add>, %227, %cst_64 [1] : vector<8x512xf32> to vector<8xf32>
    %229 = vector.shape_cast %228 : vector<8xf32> to vector<8x1xf32>
    %cst_65 = arith.constant 0.001953125 : f32
    %230 = vector.broadcast %cst_65 : f32 to vector<8x1xf32>
    %231 = arith.mulf %229, %230 : vector<8x1xf32>
    %232 = arith.mulf %226, %226 : vector<8x1xf32>
    %233 = arith.subf %231, %232 : vector<8x1xf32>
    %234 = vector.broadcast %226 : vector<8x1xf32> to vector<8x512xf32>
    %235 = arith.subf %222, %234 : vector<8x512xf32>
    %cst_66 = arith.constant 9.99999974E-6 : f32
    %236 = vector.broadcast %cst_66 : f32 to vector<8x1xf32>
    %237 = arith.addf %233, %236 : vector<8x1xf32>
    %238 = math.rsqrt %237 : vector<8x1xf32>
    %239 = vector.broadcast %238 : vector<8x1xf32> to vector<8x512xf32>
    %240 = arith.mulf %235, %239 : vector<8x512xf32>
    %241 = arith.addf %240, %157 : vector<8x512xf32>
    %242 = arith.mulf %241, %241 : vector<8x512xf32>
    %c1_i32_67 = arith.constant 1 : i32
    %243 = tpu.dynamic_rotate %242 by %c1_i32_67 dim 0 : vector<8x512xf32>, i32 -> vector<8x512xf32>
    %244 = arith.mulf %243, %73 : vector<8x512xf32>
    %245 = arith.addf %242, %244 : vector<8x512xf32>
    %cst_68 = arith.constant 5.000000e-05 : f32
    %246 = vector.broadcast %cst_68 : f32 to vector<8x512xf32>
    %247 = arith.mulf %246, %245 : vector<8x512xf32>
    %cst_69 = arith.constant 1.000000e+00 : f32
    %248 = vector.broadcast %cst_69 : f32 to vector<8x512xf32>
    %249 = arith.addf %248, %247 : vector<8x512xf32>
    %250 = math.rsqrt %249 : vector<8x512xf32>
    %251 = math.sqrt %250 : vector<8x512xf32>
    %252 = arith.mulf %250, %251 : vector<8x512xf32>
    %253 = arith.mulf %241, %252 : vector<8x512xf32>
    %c1_i32_70 = arith.constant 1 : i32
    %c34_i32_71 = arith.constant 34 : i32
    %254 = tpu.dynamic_rotate %253 by %c34_i32_71 dim 1 : vector<8x512xf32>, i32 -> vector<8x512xf32>
    %255 = arith.mulf %254, %19 : vector<8x512xf32>
    %256 = arith.truncf %255 : vector<8x512xf32> to vector<8x512xbf16>
    %257 = vector.extract_strided_slice %3 {offsets = [0, 0, 0], sizes = [1, 8, 8], strides = [1, 1, 1]} : vector<9x8x8xbf16> to vector<1x8x8xbf16>
    %258 = vector.shape_cast %257 : vector<1x8x8xbf16> to vector<8x8xbf16>
    %cst_72 = arith.constant dense<0.000000e+00> : vector<8x512xf32>
    %259 = tpu.matmul %258, %256, %cst_72 {dimension_numbers = #tpu.dot_dimension_numbers<[1], [0], [0], [1], [0, 0, 1, 1], [], []>} : vector<8x8xbf16>, vector<8x512xbf16>, vector<8x512xf32> -> vector<8x512xf32>
    %c33_i32_73 = arith.constant 33 : i32
    %260 = tpu.dynamic_rotate %253 by %c33_i32_73 dim 1 : vector<8x512xf32>, i32 -> vector<8x512xf32>
    %261 = arith.mulf %260, %26 : vector<8x512xf32>
    %262 = arith.truncf %261 : vector<8x512xf32> to vector<8x512xbf16>
    %263 = vector.extract_strided_slice %3 {offsets = [1, 0, 0], sizes = [1, 8, 8], strides = [1, 1, 1]} : vector<9x8x8xbf16> to vector<1x8x8xbf16>
    %264 = vector.shape_cast %263 : vector<1x8x8xbf16> to vector<8x8xbf16>
    %cst_74 = arith.constant dense<0.000000e+00> : vector<8x512xf32>
    %265 = tpu.matmul %264, %262, %cst_74 {dimension_numbers = #tpu.dot_dimension_numbers<[1], [0], [0], [1], [0, 0, 1, 1], [], []>} : vector<8x8xbf16>, vector<8x512xbf16>, vector<8x512xf32> -> vector<8x512xf32>
    %266 = arith.addf %259, %265 : vector<8x512xf32>
    %c32_i32_75 = arith.constant 32 : i32
    %267 = tpu.dynamic_rotate %253 by %c32_i32_75 dim 1 : vector<8x512xf32>, i32 -> vector<8x512xf32>
    %268 = arith.mulf %267, %33 : vector<8x512xf32>
    %269 = arith.truncf %268 : vector<8x512xf32> to vector<8x512xbf16>
    %270 = vector.extract_strided_slice %3 {offsets = [2, 0, 0], sizes = [1, 8, 8], strides = [1, 1, 1]} : vector<9x8x8xbf16> to vector<1x8x8xbf16>
    %271 = vector.shape_cast %270 : vector<1x8x8xbf16> to vector<8x8xbf16>
    %cst_76 = arith.constant dense<0.000000e+00> : vector<8x512xf32>
    %272 = tpu.matmul %271, %269, %cst_76 {dimension_numbers = #tpu.dot_dimension_numbers<[1], [0], [0], [1], [0, 0, 1, 1], [], []>} : vector<8x8xbf16>, vector<8x512xbf16>, vector<8x512xf32> -> vector<8x512xf32>
    %273 = arith.addf %266, %272 : vector<8x512xf32>
    %c18_i32_77 = arith.constant 18 : i32
    %274 = tpu.dynamic_rotate %253 by %c18_i32_77 dim 1 : vector<8x512xf32>, i32 -> vector<8x512xf32>
    %275 = arith.mulf %274, %40 : vector<8x512xf32>
    %276 = arith.truncf %275 : vector<8x512xf32> to vector<8x512xbf16>
    %277 = vector.extract_strided_slice %3 {offsets = [3, 0, 0], sizes = [1, 8, 8], strides = [1, 1, 1]} : vector<9x8x8xbf16> to vector<1x8x8xbf16>
    %278 = vector.shape_cast %277 : vector<1x8x8xbf16> to vector<8x8xbf16>
    %cst_78 = arith.constant dense<0.000000e+00> : vector<8x512xf32>
    %279 = tpu.matmul %278, %276, %cst_78 {dimension_numbers = #tpu.dot_dimension_numbers<[1], [0], [0], [1], [0, 0, 1, 1], [], []>} : vector<8x8xbf16>, vector<8x512xbf16>, vector<8x512xf32> -> vector<8x512xf32>
    %280 = arith.addf %273, %279 : vector<8x512xf32>
    %c17_i32_79 = arith.constant 17 : i32
    %281 = tpu.dynamic_rotate %253 by %c17_i32_79 dim 1 : vector<8x512xf32>, i32 -> vector<8x512xf32>
    %282 = arith.mulf %281, %47 : vector<8x512xf32>
    %283 = arith.truncf %282 : vector<8x512xf32> to vector<8x512xbf16>
    %284 = vector.extract_strided_slice %3 {offsets = [4, 0, 0], sizes = [1, 8, 8], strides = [1, 1, 1]} : vector<9x8x8xbf16> to vector<1x8x8xbf16>
    %285 = vector.shape_cast %284 : vector<1x8x8xbf16> to vector<8x8xbf16>
    %cst_80 = arith.constant dense<0.000000e+00> : vector<8x512xf32>
    %286 = tpu.matmul %285, %283, %cst_80 {dimension_numbers = #tpu.dot_dimension_numbers<[1], [0], [0], [1], [0, 0, 1, 1], [], []>} : vector<8x8xbf16>, vector<8x512xbf16>, vector<8x512xf32> -> vector<8x512xf32>
    %287 = arith.addf %280, %286 : vector<8x512xf32>
    %c16_i32_81 = arith.constant 16 : i32
    %288 = tpu.dynamic_rotate %253 by %c16_i32_81 dim 1 : vector<8x512xf32>, i32 -> vector<8x512xf32>
    %289 = arith.mulf %288, %54 : vector<8x512xf32>
    %290 = arith.truncf %289 : vector<8x512xf32> to vector<8x512xbf16>
    %291 = vector.extract_strided_slice %3 {offsets = [5, 0, 0], sizes = [1, 8, 8], strides = [1, 1, 1]} : vector<9x8x8xbf16> to vector<1x8x8xbf16>
    %292 = vector.shape_cast %291 : vector<1x8x8xbf16> to vector<8x8xbf16>
    %cst_82 = arith.constant dense<0.000000e+00> : vector<8x512xf32>
    %293 = tpu.matmul %292, %290, %cst_82 {dimension_numbers = #tpu.dot_dimension_numbers<[1], [0], [0], [1], [0, 0, 1, 1], [], []>} : vector<8x8xbf16>, vector<8x512xbf16>, vector<8x512xf32> -> vector<8x512xf32>
    %294 = arith.addf %287, %293 : vector<8x512xf32>
    %c2_i32_83 = arith.constant 2 : i32
    %295 = tpu.dynamic_rotate %253 by %c2_i32_83 dim 1 : vector<8x512xf32>, i32 -> vector<8x512xf32>
    %296 = arith.mulf %295, %61 : vector<8x512xf32>
    %297 = arith.truncf %296 : vector<8x512xf32> to vector<8x512xbf16>
    %298 = vector.extract_strided_slice %3 {offsets = [6, 0, 0], sizes = [1, 8, 8], strides = [1, 1, 1]} : vector<9x8x8xbf16> to vector<1x8x8xbf16>
    %299 = vector.shape_cast %298 : vector<1x8x8xbf16> to vector<8x8xbf16>
    %cst_84 = arith.constant dense<0.000000e+00> : vector<8x512xf32>
    %300 = tpu.matmul %299, %297, %cst_84 {dimension_numbers = #tpu.dot_dimension_numbers<[1], [0], [0], [1], [0, 0, 1, 1], [], []>} : vector<8x8xbf16>, vector<8x512xbf16>, vector<8x512xf32> -> vector<8x512xf32>
    %301 = arith.addf %294, %300 : vector<8x512xf32>
    %c1_i32_85 = arith.constant 1 : i32
    %302 = tpu.dynamic_rotate %253 by %c1_i32_85 dim 1 : vector<8x512xf32>, i32 -> vector<8x512xf32>
    %303 = arith.mulf %302, %68 : vector<8x512xf32>
    %304 = arith.truncf %303 : vector<8x512xf32> to vector<8x512xbf16>
    %305 = vector.extract_strided_slice %3 {offsets = [7, 0, 0], sizes = [1, 8, 8], strides = [1, 1, 1]} : vector<9x8x8xbf16> to vector<1x8x8xbf16>
    %306 = vector.shape_cast %305 : vector<1x8x8xbf16> to vector<8x8xbf16>
    %cst_86 = arith.constant dense<0.000000e+00> : vector<8x512xf32>
    %307 = tpu.matmul %306, %304, %cst_86 {dimension_numbers = #tpu.dot_dimension_numbers<[1], [0], [0], [1], [0, 0, 1, 1], [], []>} : vector<8x8xbf16>, vector<8x512xbf16>, vector<8x512xf32> -> vector<8x512xf32>
    %308 = arith.addf %301, %307 : vector<8x512xf32>
    %309 = arith.truncf %253 : vector<8x512xf32> to vector<8x512xbf16>
    %310 = vector.extract_strided_slice %3 {offsets = [8, 0, 0], sizes = [1, 8, 8], strides = [1, 1, 1]} : vector<9x8x8xbf16> to vector<1x8x8xbf16>
    %311 = vector.shape_cast %310 : vector<1x8x8xbf16> to vector<8x8xbf16>
    %cst_87 = arith.constant dense<0.000000e+00> : vector<8x512xf32>
    %312 = tpu.matmul %311, %309, %cst_87 {dimension_numbers = #tpu.dot_dimension_numbers<[1], [0], [0], [1], [0, 0, 1, 1], [], []>} : vector<8x8xbf16>, vector<8x512xbf16>, vector<8x512xf32> -> vector<8x512xf32>
    %313 = arith.addf %308, %312 : vector<8x512xf32>
    %cst_88 = arith.constant 0.000000e+00 : f32
    %314 = vector.broadcast %cst_88 : f32 to vector<8x512xf32>
    %315 = arith.cmpf ogt, %313, %314 : vector<8x512xf32>
    %316 = vector.broadcast %5 : vector<8x1xf32> to vector<8x512xf32>
    %317 = arith.mulf %316, %313 : vector<8x512xf32>
    %318 = arith.select %315, %313, %317 : vector<8x512xi1>, vector<8x512xf32>
    %cst_89 = arith.constant dense<0.000000e+00> : vector<8xf32>
    %319 = vector.multi_reduction <add>, %318, %cst_89 [1] : vector<8x512xf32> to vector<8xf32>
    %320 = vector.shape_cast %319 : vector<8xf32> to vector<8x1xf32>
    %cst_90 = arith.constant 0.001953125 : f32
    %321 = vector.broadcast %cst_90 : f32 to vector<8x1xf32>
    %322 = arith.mulf %320, %321 : vector<8x1xf32>
    %323 = arith.mulf %318, %318 : vector<8x512xf32>
    %cst_91 = arith.constant dense<0.000000e+00> : vector<8xf32>
    %324 = vector.multi_reduction <add>, %323, %cst_91 [1] : vector<8x512xf32> to vector<8xf32>
    %325 = vector.shape_cast %324 : vector<8xf32> to vector<8x1xf32>
    %cst_92 = arith.constant 0.001953125 : f32
    %326 = vector.broadcast %cst_92 : f32 to vector<8x1xf32>
    %327 = arith.mulf %325, %326 : vector<8x1xf32>
    %328 = arith.mulf %322, %322 : vector<8x1xf32>
    %329 = arith.subf %327, %328 : vector<8x1xf32>
    %330 = vector.broadcast %322 : vector<8x1xf32> to vector<8x512xf32>
    %331 = arith.subf %318, %330 : vector<8x512xf32>
    %cst_93 = arith.constant 9.99999974E-6 : f32
    %332 = vector.broadcast %cst_93 : f32 to vector<8x1xf32>
    %333 = arith.addf %329, %332 : vector<8x1xf32>
    %334 = math.rsqrt %333 : vector<8x1xf32>
    %335 = vector.broadcast %334 : vector<8x1xf32> to vector<8x512xf32>
    %336 = arith.mulf %331, %335 : vector<8x512xf32>
    %337 = arith.addf %336, %157 : vector<8x512xf32>
    %338 = arith.mulf %337, %337 : vector<8x512xf32>
    %c1_i32_94 = arith.constant 1 : i32
    %339 = tpu.dynamic_rotate %338 by %c1_i32_94 dim 0 : vector<8x512xf32>, i32 -> vector<8x512xf32>
    %340 = arith.mulf %339, %73 : vector<8x512xf32>
    %341 = arith.addf %338, %340 : vector<8x512xf32>
    %cst_95 = arith.constant 5.000000e-05 : f32
    %342 = vector.broadcast %cst_95 : f32 to vector<8x512xf32>
    %343 = arith.mulf %342, %341 : vector<8x512xf32>
    %cst_96 = arith.constant 1.000000e+00 : f32
    %344 = vector.broadcast %cst_96 : f32 to vector<8x512xf32>
    %345 = arith.addf %344, %343 : vector<8x512xf32>
    %346 = math.rsqrt %345 : vector<8x512xf32>
    %347 = math.sqrt %346 : vector<8x512xf32>
    %348 = arith.mulf %346, %347 : vector<8x512xf32>
    %349 = arith.mulf %337, %348 : vector<8x512xf32>
    %c2_i32_97 = arith.constant 2 : i32
    %c34_i32_98 = arith.constant 34 : i32
    %350 = tpu.dynamic_rotate %349 by %c34_i32_98 dim 1 : vector<8x512xf32>, i32 -> vector<8x512xf32>
    %351 = arith.mulf %350, %19 : vector<8x512xf32>
    %352 = arith.truncf %351 : vector<8x512xf32> to vector<8x512xbf16>
    %353 = vector.extract_strided_slice %3 {offsets = [0, 0, 0], sizes = [1, 8, 8], strides = [1, 1, 1]} : vector<9x8x8xbf16> to vector<1x8x8xbf16>
    %354 = vector.shape_cast %353 : vector<1x8x8xbf16> to vector<8x8xbf16>
    %cst_99 = arith.constant dense<0.000000e+00> : vector<8x512xf32>
    %355 = tpu.matmul %354, %352, %cst_99 {dimension_numbers = #tpu.dot_dimension_numbers<[1], [0], [0], [1], [0, 0, 1, 1], [], []>} : vector<8x8xbf16>, vector<8x512xbf16>, vector<8x512xf32> -> vector<8x512xf32>
    %c33_i32_100 = arith.constant 33 : i32
    %356 = tpu.dynamic_rotate %349 by %c33_i32_100 dim 1 : vector<8x512xf32>, i32 -> vector<8x512xf32>
    %357 = arith.mulf %356, %26 : vector<8x512xf32>
    %358 = arith.truncf %357 : vector<8x512xf32> to vector<8x512xbf16>
    %359 = vector.extract_strided_slice %3 {offsets = [1, 0, 0], sizes = [1, 8, 8], strides = [1, 1, 1]} : vector<9x8x8xbf16> to vector<1x8x8xbf16>
    %360 = vector.shape_cast %359 : vector<1x8x8xbf16> to vector<8x8xbf16>
    %cst_101 = arith.constant dense<0.000000e+00> : vector<8x512xf32>
    %361 = tpu.matmul %360, %358, %cst_101 {dimension_numbers = #tpu.dot_dimension_numbers<[1], [0], [0], [1], [0, 0, 1, 1], [], []>} : vector<8x8xbf16>, vector<8x512xbf16>, vector<8x512xf32> -> vector<8x512xf32>
    %362 = arith.addf %355, %361 : vector<8x512xf32>
    %c32_i32_102 = arith.constant 32 : i32
    %363 = tpu.dynamic_rotate %349 by %c32_i32_102 dim 1 : vector<8x512xf32>, i32 -> vector<8x512xf32>
    %364 = arith.mulf %363, %33 : vector<8x512xf32>
    %365 = arith.truncf %364 : vector<8x512xf32> to vector<8x512xbf16>
    %366 = vector.extract_strided_slice %3 {offsets = [2, 0, 0], sizes = [1, 8, 8], strides = [1, 1, 1]} : vector<9x8x8xbf16> to vector<1x8x8xbf16>
    %367 = vector.shape_cast %366 : vector<1x8x8xbf16> to vector<8x8xbf16>
    %cst_103 = arith.constant dense<0.000000e+00> : vector<8x512xf32>
    %368 = tpu.matmul %367, %365, %cst_103 {dimension_numbers = #tpu.dot_dimension_numbers<[1], [0], [0], [1], [0, 0, 1, 1], [], []>} : vector<8x8xbf16>, vector<8x512xbf16>, vector<8x512xf32> -> vector<8x512xf32>
    %369 = arith.addf %362, %368 : vector<8x512xf32>
    %c18_i32_104 = arith.constant 18 : i32
    %370 = tpu.dynamic_rotate %349 by %c18_i32_104 dim 1 : vector<8x512xf32>, i32 -> vector<8x512xf32>
    %371 = arith.mulf %370, %40 : vector<8x512xf32>
    %372 = arith.truncf %371 : vector<8x512xf32> to vector<8x512xbf16>
    %373 = vector.extract_strided_slice %3 {offsets = [3, 0, 0], sizes = [1, 8, 8], strides = [1, 1, 1]} : vector<9x8x8xbf16> to vector<1x8x8xbf16>
    %374 = vector.shape_cast %373 : vector<1x8x8xbf16> to vector<8x8xbf16>
    %cst_105 = arith.constant dense<0.000000e+00> : vector<8x512xf32>
    %375 = tpu.matmul %374, %372, %cst_105 {dimension_numbers = #tpu.dot_dimension_numbers<[1], [0], [0], [1], [0, 0, 1, 1], [], []>} : vector<8x8xbf16>, vector<8x512xbf16>, vector<8x512xf32> -> vector<8x512xf32>
    %376 = arith.addf %369, %375 : vector<8x512xf32>
    %c17_i32_106 = arith.constant 17 : i32
    %377 = tpu.dynamic_rotate %349 by %c17_i32_106 dim 1 : vector<8x512xf32>, i32 -> vector<8x512xf32>
    %378 = arith.mulf %377, %47 : vector<8x512xf32>
    %379 = arith.truncf %378 : vector<8x512xf32> to vector<8x512xbf16>
    %380 = vector.extract_strided_slice %3 {offsets = [4, 0, 0], sizes = [1, 8, 8], strides = [1, 1, 1]} : vector<9x8x8xbf16> to vector<1x8x8xbf16>
    %381 = vector.shape_cast %380 : vector<1x8x8xbf16> to vector<8x8xbf16>
    %cst_107 = arith.constant dense<0.000000e+00> : vector<8x512xf32>
    %382 = tpu.matmul %381, %379, %cst_107 {dimension_numbers = #tpu.dot_dimension_numbers<[1], [0], [0], [1], [0, 0, 1, 1], [], []>} : vector<8x8xbf16>, vector<8x512xbf16>, vector<8x512xf32> -> vector<8x512xf32>
    %383 = arith.addf %376, %382 : vector<8x512xf32>
    %c16_i32_108 = arith.constant 16 : i32
    %384 = tpu.dynamic_rotate %349 by %c16_i32_108 dim 1 : vector<8x512xf32>, i32 -> vector<8x512xf32>
    %385 = arith.mulf %384, %54 : vector<8x512xf32>
    %386 = arith.truncf %385 : vector<8x512xf32> to vector<8x512xbf16>
    %387 = vector.extract_strided_slice %3 {offsets = [5, 0, 0], sizes = [1, 8, 8], strides = [1, 1, 1]} : vector<9x8x8xbf16> to vector<1x8x8xbf16>
    %388 = vector.shape_cast %387 : vector<1x8x8xbf16> to vector<8x8xbf16>
    %cst_109 = arith.constant dense<0.000000e+00> : vector<8x512xf32>
    %389 = tpu.matmul %388, %386, %cst_109 {dimension_numbers = #tpu.dot_dimension_numbers<[1], [0], [0], [1], [0, 0, 1, 1], [], []>} : vector<8x8xbf16>, vector<8x512xbf16>, vector<8x512xf32> -> vector<8x512xf32>
    %390 = arith.addf %383, %389 : vector<8x512xf32>
    %c2_i32_110 = arith.constant 2 : i32
    %391 = tpu.dynamic_rotate %349 by %c2_i32_110 dim 1 : vector<8x512xf32>, i32 -> vector<8x512xf32>
    %392 = arith.mulf %391, %61 : vector<8x512xf32>
    %393 = arith.truncf %392 : vector<8x512xf32> to vector<8x512xbf16>
    %394 = vector.extract_strided_slice %3 {offsets = [6, 0, 0], sizes = [1, 8, 8], strides = [1, 1, 1]} : vector<9x8x8xbf16> to vector<1x8x8xbf16>
    %395 = vector.shape_cast %394 : vector<1x8x8xbf16> to vector<8x8xbf16>
    %cst_111 = arith.constant dense<0.000000e+00> : vector<8x512xf32>
    %396 = tpu.matmul %395, %393, %cst_111 {dimension_numbers = #tpu.dot_dimension_numbers<[1], [0], [0], [1], [0, 0, 1, 1], [], []>} : vector<8x8xbf16>, vector<8x512xbf16>, vector<8x512xf32> -> vector<8x512xf32>
    %397 = arith.addf %390, %396 : vector<8x512xf32>
    %c1_i32_112 = arith.constant 1 : i32
    %398 = tpu.dynamic_rotate %349 by %c1_i32_112 dim 1 : vector<8x512xf32>, i32 -> vector<8x512xf32>
    %399 = arith.mulf %398, %68 : vector<8x512xf32>
    %400 = arith.truncf %399 : vector<8x512xf32> to vector<8x512xbf16>
    %401 = vector.extract_strided_slice %3 {offsets = [7, 0, 0], sizes = [1, 8, 8], strides = [1, 1, 1]} : vector<9x8x8xbf16> to vector<1x8x8xbf16>
    %402 = vector.shape_cast %401 : vector<1x8x8xbf16> to vector<8x8xbf16>
    %cst_113 = arith.constant dense<0.000000e+00> : vector<8x512xf32>
    %403 = tpu.matmul %402, %400, %cst_113 {dimension_numbers = #tpu.dot_dimension_numbers<[1], [0], [0], [1], [0, 0, 1, 1], [], []>} : vector<8x8xbf16>, vector<8x512xbf16>, vector<8x512xf32> -> vector<8x512xf32>
    %404 = arith.addf %397, %403 : vector<8x512xf32>
    %405 = arith.truncf %349 : vector<8x512xf32> to vector<8x512xbf16>
    %406 = vector.extract_strided_slice %3 {offsets = [8, 0, 0], sizes = [1, 8, 8], strides = [1, 1, 1]} : vector<9x8x8xbf16> to vector<1x8x8xbf16>
    %407 = vector.shape_cast %406 : vector<1x8x8xbf16> to vector<8x8xbf16>
    %cst_114 = arith.constant dense<0.000000e+00> : vector<8x512xf32>
    %408 = tpu.matmul %407, %405, %cst_114 {dimension_numbers = #tpu.dot_dimension_numbers<[1], [0], [0], [1], [0, 0, 1, 1], [], []>} : vector<8x8xbf16>, vector<8x512xbf16>, vector<8x512xf32> -> vector<8x512xf32>
    %409 = arith.addf %404, %408 : vector<8x512xf32>
    %cst_115 = arith.constant 0.000000e+00 : f32
    %410 = vector.broadcast %cst_115 : f32 to vector<8x512xf32>
    %411 = arith.cmpf ogt, %409, %410 : vector<8x512xf32>
    %412 = vector.broadcast %5 : vector<8x1xf32> to vector<8x512xf32>
    %413 = arith.mulf %412, %409 : vector<8x512xf32>
    %414 = arith.select %411, %409, %413 : vector<8x512xi1>, vector<8x512xf32>
    %cst_116 = arith.constant dense<0.000000e+00> : vector<8xf32>
    %415 = vector.multi_reduction <add>, %414, %cst_116 [1] : vector<8x512xf32> to vector<8xf32>
    %416 = vector.shape_cast %415 : vector<8xf32> to vector<8x1xf32>
    %cst_117 = arith.constant 0.001953125 : f32
    %417 = vector.broadcast %cst_117 : f32 to vector<8x1xf32>
    %418 = arith.mulf %416, %417 : vector<8x1xf32>
    %419 = arith.mulf %414, %414 : vector<8x512xf32>
    %cst_118 = arith.constant dense<0.000000e+00> : vector<8xf32>
    %420 = vector.multi_reduction <add>, %419, %cst_118 [1] : vector<8x512xf32> to vector<8xf32>
    %421 = vector.shape_cast %420 : vector<8xf32> to vector<8x1xf32>
    %cst_119 = arith.constant 0.001953125 : f32
    %422 = vector.broadcast %cst_119 : f32 to vector<8x1xf32>
    %423 = arith.mulf %421, %422 : vector<8x1xf32>
    %424 = arith.mulf %418, %418 : vector<8x1xf32>
    %425 = arith.subf %423, %424 : vector<8x1xf32>
    %426 = vector.broadcast %418 : vector<8x1xf32> to vector<8x512xf32>
    %427 = arith.subf %414, %426 : vector<8x512xf32>
    %cst_120 = arith.constant 9.99999974E-6 : f32
    %428 = vector.broadcast %cst_120 : f32 to vector<8x1xf32>
    %429 = arith.addf %425, %428 : vector<8x1xf32>
    %430 = math.rsqrt %429 : vector<8x1xf32>
    %431 = vector.broadcast %430 : vector<8x1xf32> to vector<8x512xf32>
    %432 = arith.mulf %427, %431 : vector<8x512xf32>
    %433 = arith.addf %432, %157 : vector<8x512xf32>
    %434 = arith.mulf %433, %433 : vector<8x512xf32>
    %c1_i32_121 = arith.constant 1 : i32
    %435 = tpu.dynamic_rotate %434 by %c1_i32_121 dim 0 : vector<8x512xf32>, i32 -> vector<8x512xf32>
    %436 = arith.mulf %435, %73 : vector<8x512xf32>
    %437 = arith.addf %434, %436 : vector<8x512xf32>
    %cst_122 = arith.constant 5.000000e-05 : f32
    %438 = vector.broadcast %cst_122 : f32 to vector<8x512xf32>
    %439 = arith.mulf %438, %437 : vector<8x512xf32>
    %cst_123 = arith.constant 1.000000e+00 : f32
    %440 = vector.broadcast %cst_123 : f32 to vector<8x512xf32>
    %441 = arith.addf %440, %439 : vector<8x512xf32>
    %442 = math.rsqrt %441 : vector<8x512xf32>
    %443 = math.sqrt %442 : vector<8x512xf32>
    %444 = arith.mulf %442, %443 : vector<8x512xf32>
    %445 = arith.mulf %433, %444 : vector<8x512xf32>
    %c0_124 = arith.constant 0 : index
    %c0_125 = arith.constant 0 : index
    %446 = vector.load %arg7[%c0_124, %c0_125] : memref<8x512xf32, #tpu.memory_space<vmem>>, vector<8x512xf32>
    tpu.vector_store %arg7[%c0_124, %c0_125], %445 {strides = array<i32>} : memref<8x512xf32, #tpu.memory_space<vmem>>, vector<8x512xf32>,
    return
  }
  func.func @transform_0(%arg0: i32) -> (i32, i32) {
    %c0_i32 = arith.constant 0 : i32
    %c0_i32_0 = arith.constant 0 : i32
    %c0_i32_1 = arith.constant 0 : i32
    return %c0_i32, %c0_i32_0 : i32, i32
  }
  func.func @transform_1(%arg0: i32) -> (i32, i32) {
    %c0_i32 = arith.constant 0 : i32
    %c0_i32_0 = arith.constant 0 : i32
    %c0_i32_1 = arith.constant 0 : i32
    return %c0_i32, %c0_i32_0 : i32, i32
  }
  func.func @transform_2(%arg0: i32) -> (i32, i32, i32) {
    %c0_i32 = arith.constant 0 : i32
    %c0_i32_0 = arith.constant 0 : i32
    %c0_i32_1 = arith.constant 0 : i32
    %c0_i32_2 = arith.constant 0 : i32
    return %c0_i32, %c0_i32_0, %c0_i32_1 : i32, i32, i32
  }
  func.func @transform_3(%arg0: i32) -> (i32, i32) {
    %c0_i32 = arith.constant 0 : i32
    %c0_i32_0 = arith.constant 0 : i32
    %c0_i32_1 = arith.constant 0 : i32
    return %c0_i32, %c0_i32_0 : i32, i32
  }
  func.func @transform_4(%arg0: i32) -> (i32, i32, i32) {
    %c0_i32 = arith.constant 0 : i32
    %c0_i32_0 = arith.constant 0 : i32
    %c0_i32_1 = arith.constant 0 : i32
    %c0_i32_2 = arith.constant 0 : i32
    return %c0_i32, %c0_i32_0, %c0_i32_1 : i32, i32, i32
  }
  func.func @transform_5(%arg0: i32) -> (i32, i32) {
    %c0_i32 = arith.constant 0 : i32
    %c0_i32_0 = arith.constant 0 : i32
    %c0_i32_1 = arith.constant 0 : i32
    return %c0_i32, %c0_i32_0 : i32, i32
  }
  func.func @transform_6(%arg0: i32) -> (i32, i32) {
    %c0_i32 = arith.constant 0 : i32
    %c0_i32_0 = arith.constant 0 : i32
    %c0_i32_1 = arith.constant 0 : i32
    return %c0_i32, %c0_i32_0 : i32, i32
  }
}

</mosaic_0001>

<llo_original>
// kernel: _rcl_forward.1
$region0: #{_rcl_forward.1}
  #allocation0 [shape = 'u32[]', space=smem, size = 0x4, offset = 0x4, fixed_abs, tag = 'smem constant byte address 0x4 - core index']
  #allocation1 [shape = 'u32[72,128]{1,0:T(1,128)}', space=vmem, size = 0x9000, scoped, tag = 'internal scratch']
  %s0 = inlined_call_operand.vmem [shape: f32[8,512], index: 0, kind: input, shape index: {}]
  %s1 = inlined_call_operand.vmem [shape: s32[2,512], index: 1, kind: input, shape index: {}]
  %s2 = inlined_call_operand.vmem [shape: f32[9,8,8], index: 2, kind: input, shape index: {}]
  %s3 = inlined_call_operand.vmem [shape: f32[8,1], index: 3, kind: input, shape index: {}]
  %s4 = inlined_call_operand.vmem [shape: f32[9,8,8], index: 4, kind: input, shape index: {}]
  %s5 = inlined_call_operand.vmem [shape: f32[8,1], index: 5, kind: input, shape index: {}]
  %s6 = inlined_call_operand.hbm [shape: f32[8,512], index: 6, kind: output, shape index: {}]
  %s7 = sld [smem:[#allocation0]]
  $region34: #{_rcl_forward.1} parent=0
    _
  %s9 = ssub.s32 1, %s7
  %s10 = scalar_select 0, %s9, %s7
  $region1: #{_rcl_forward.1} parent=0
    #allocation2 [shape = 'u8[16384]{0}', space=vmem, size = 0x4000, scoped, tag = 'output window, operand 0, single buffered']
    #allocation3 [shape = 's32[1]{0}', space=sflag, size = 0x4, scoped, tag = 'scoped memory for _rcl_forward.1']
    %11 = vsyncpa [#allocation3], 0
    // Predicated region
    $region2: #{_rcl_forward.1} parent=1 // pred_check
      _
    $region3: #{_rcl_forward.1} parent=1 // pred_check_branch
      %13 = sbr.rel (0) target = $region5
    $region4: #{_rcl_forward.1} parent=1 // pred_region
      _
    $region5: #{_rcl_forward.1} parent=1 // pred_fallthru
      _
    // Predicated region
    $region6: #{_rcl_forward.1} parent=1 // pred_check
      _
    $region7: #{_rcl_forward.1} parent=1 // pred_check_branch
      %15 = sbr.rel (0) target = $region9
    $region8: #{_rcl_forward.1} parent=1 // pred_region
      _
    $region9: #{_rcl_forward.1} parent=1 // pred_fallthru
      _
    // Predicated region
    $region10: #{_rcl_forward.1} parent=1 // pred_check
      _
    $region11: #{_rcl_forward.1} parent=1 // pred_check_branch
      %17 = sbr.rel (0) target = $region13
    $region12: #{_rcl_forward.1} parent=1 // pred_region
      _
    $region13: #{_rcl_forward.1} parent=1 // pred_fallthru
      _
    // Predicated region
    $region14: #{_rcl_forward.1} parent=1 // pred_check
      _
    $region15: #{_rcl_forward.1} parent=1 // pred_check_branch
      %19 = sbr.rel (0) target = $region17
    $region16: #{_rcl_forward.1} parent=1 // pred_region
      _
    $region17: #{_rcl_forward.1} parent=1 // pred_fallthru
      _
    // Predicated region
    $region18: #{_rcl_forward.1} parent=1 // pred_check
      _
    $region19: #{_rcl_forward.1} parent=1 // pred_check_branch
      %21 = sbr.rel (0) target = $region21
    $region20: #{_rcl_forward.1} parent=1 // pred_region
      _
    $region21: #{_rcl_forward.1} parent=1 // pred_fallthru
      _
    // Predicated region
    $region22: #{_rcl_forward.1} parent=1 // pred_check
      _
    $region23: #{_rcl_forward.1} parent=1 // pred_check_branch
      %23 = sbr.rel (0) target = $region25
    $region24: #{_rcl_forward.1} parent=1 // pred_region
      _
    $region25: #{_rcl_forward.1} parent=1 // pred_fallthru
      _
    %v25 = vld [vmem:[%s2] sm:$0xff]
    %v26 = vld [vmem:[%s2 + $0x8] sm:$0xff]
    %v27 = vld [vmem:[%s2 + $0x10] sm:$0xff]
    %v28 = vld [vmem:[%s2 + $0x18] sm:$0xff]
    %v29 = vld [vmem:[%s2 + $0x20] sm:$0xff]
    %v30 = vld [vmem:[%s2 + $0x28] sm:$0xff]
    %v31 = vld [vmem:[%s2 + $0x30] sm:$0xff]
    %v32 = vld [vmem:[%s2 + $0x38] sm:$0xff]
    %v33 = vld [vmem:[%s2 + $0x40] sm:$0xff]
    %v34 = vpack.c.bf16 %v25, %v25
    %v35 = vpack.c.bf16 %v26, %v26
    %v36 = vpack.c.bf16 %v27, %v27
    %v37 = vpack.c.bf16 %v28, %v28
    %v38 = vpack.c.bf16 %v29, %v29
    %v39 = vpack.c.bf16 %v30, %v30
    %v40 = vpack.c.bf16 %v31, %v31
    %v41 = vpack.c.bf16 %v32, %v32
    %v42 = vpack.c.bf16 %v33, %v33
    %v43 = vld [vmem:[%s4] sm:$0xff]
    %v44 = vld [vmem:[%s4 + $0x8] sm:$0xff]
    %v45 = vld [vmem:[%s4 + $0x10] sm:$0xff]
    %v46 = vld [vmem:[%s4 + $0x18] sm:$0xff]
    %v47 = vld [vmem:[%s4 + $0x20] sm:$0xff]
    %v48 = vld [vmem:[%s4 + $0x28] sm:$0xff]
    %v49 = vld [vmem:[%s4 + $0x30] sm:$0xff]
    %v50 = vld [vmem:[%s4 + $0x38] sm:$0xff]
    %v51 = vld [vmem:[%s4 + $0x40] sm:$0xff]
    %v52 = vpack.c.bf16 %v43, %v43
    %v53 = vpack.c.bf16 %v44, %v44
    %v54 = vpack.c.bf16 %v45, %v45
    %v55 = vpack.c.bf16 %v46, %v46
    %v56 = vpack.c.bf16 %v47, %v47
    %v57 = vpack.c.bf16 %v48, %v48
    %v58 = vpack.c.bf16 %v49, %v49
    %v59 = vpack.c.bf16 %v50, %v50
    %v60 = vpack.c.bf16 %v51, %v51
    %v61 = vld [vmem:[%s3] sm:$0xff]
    %v62 = vld [vmem:[%s5] sm:$0xff]
    %v63 = vld [vmem:[%s1] sm:$0xff]
    %v64 = vperm.slane %v63, 0
    %v65 = vperm.slane %v63, 2
    %v66 = vperm.slane %v63, 4
    %v67 = vperm.slane %v63, 6
    %v68 = vperm.slane %v64, 0
    %v69 = vperm.slane %v65, 0
    %v70 = vperm.slane %v66, 0
    %v71 = vperm.slane %v67, 0
    %v72 = vperm.slane %v63, 1
    %v73 = vperm.slane %v63, 3
    %v74 = vperm.slane %v63, 5
    %v75 = vperm.slane %v63, 7
    %v76 = vperm.slane %v72, 1
    %v77 = vperm.slane %v73, 1
    %v78 = vperm.slane %v74, 1
    %v79 = vperm.slane %v75, 1
    %vm80 = vcmp.ge.s32.totalorder %v68, 2
    %vm81 = vcmp.ge.s32.totalorder %v69, 2
    %vm82 = vcmp.ge.s32.totalorder %v70, 2
    %vm83 = vcmp.ge.s32.totalorder %v71, 2
    %vm84 = vcmp.ge.s32.totalorder %v76, 2
    %vm85 = vcmp.ge.s32.totalorder %v77, 2
    %vm86 = vcmp.ge.s32.totalorder %v78, 2
    %vm87 = vcmp.ge.s32.totalorder %v79, 2
    %vm88 = vmand %vm80, %vm84
    %vm89 = vmand %vm81, %vm85
    %vm90 = vmand %vm82, %vm86
    %vm91 = vmand %vm83, %vm87
    %v92 = vsel %vm88, 1, 0
    %v93 = vsel %vm89, 1, 0
    %v94 = vsel %vm90, 1, 0
    %v95 = vsel %vm91, 1, 0
    %v96 = vcvt.s32.f32 %v92
    %v97 = vcvt.s32.f32 %v93
    %v98 = vcvt.s32.f32 %v94
    %v99 = vcvt.s32.f32 %v95
    %vm100 = vcmp.ge.s32.totalorder %v76, 1
    %vm101 = vcmp.ge.s32.totalorder %v77, 1
    %vm102 = vcmp.ge.s32.totalorder %v78, 1
    %vm103 = vcmp.ge.s32.totalorder %v79, 1
    %vm104 = vmand %vm80, %vm100
    %vm105 = vmand %vm81, %vm101
    %vm106 = vmand %vm82, %vm102
    %vm107 = vmand %vm83, %vm103
    %v108 = vsel %vm104, 1, 0
    %v109 = vsel %vm105, 1, 0
    %v110 = vsel %vm106, 1, 0
    %v111 = vsel %vm107, 1, 0
    %v112 = vcvt.s32.f32 %v108
    %v113 = vcvt.s32.f32 %v109
    %v114 = vcvt.s32.f32 %v110
    %v115 = vcvt.s32.f32 %v111
    %vm116 = vcmp.ge.s32.totalorder %v76, 0
    %vm117 = vcmp.ge.s32.totalorder %v77, 0
    %vm118 = vcmp.ge.s32.totalorder %v78, 0
    %vm119 = vcmp.ge.s32.totalorder %v79, 0
    %vm120 = vmand %vm80, %vm116
    %vm121 = vmand %vm81, %vm117
    %vm122 = vmand %vm82, %vm118
    %vm123 = vmand %vm83, %vm119
    %v124 = vsel %vm120, 1, 0
    %v125 = vsel %vm121, 1, 0
    %v126 = vsel %vm122, 1, 0
    %v127 = vsel %vm123, 1, 0
    %v128 = vcvt.s32.f32 %v124
    %v129 = vcvt.s32.f32 %v125
    %v130 = vcvt.s32.f32 %v126
    %v131 = vcvt.s32.f32 %v127
    %vm132 = vcmp.ge.s32.totalorder %v68, 1
    %vm133 = vcmp.ge.s32.totalorder %v69, 1
    %vm134 = vcmp.ge.s32.totalorder %v70, 1
    %vm135 = vcmp.ge.s32.totalorder %v71, 1
    %vm136 = vmand %vm132, %vm84
    %vm137 = vmand %vm133, %vm85
    %vm138 = vmand %vm134, %vm86
    %vm139 = vmand %vm135, %vm87
    %v140 = vsel %vm136, 1, 0
    %v141 = vsel %vm137, 1, 0
    %v142 = vsel %vm138, 1, 0
    %v143 = vsel %vm139, 1, 0
    %v144 = vcvt.s32.f32 %v140
    %v145 = vcvt.s32.f32 %v141
    %v146 = vcvt.s32.f32 %v142
    %v147 = vcvt.s32.f32 %v143
    %vm148 = vmand %vm132, %vm100
    %vm149 = vmand %vm133, %vm101
    %vm150 = vmand %vm134, %vm102
    %vm151 = vmand %vm135, %vm103
    %v152 = vsel %vm148, 1, 0
    %v153 = vsel %vm149, 1, 0
    %v154 = vsel %vm150, 1, 0
    %v155 = vsel %vm151, 1, 0
    %v156 = vcvt.s32.f32 %v152
    %v157 = vcvt.s32.f32 %v153
    %v158 = vcvt.s32.f32 %v154
    %v159 = vcvt.s32.f32 %v155
    %vm160 = vmand %vm132, %vm116
    %vm161 = vmand %vm133, %vm117
    %vm162 = vmand %vm134, %vm118
    %vm163 = vmand %vm135, %vm119
    %v164 = vsel %vm160, 1, 0
    %v165 = vsel %vm161, 1, 0
    %v166 = vsel %vm162, 1, 0
    %v167 = vsel %vm163, 1, 0
    %v168 = vcvt.s32.f32 %v164
    %v169 = vcvt.s32.f32 %v165
    %v170 = vcvt.s32.f32 %v166
    %v171 = vcvt.s32.f32 %v167
    %vm172 = vcmp.ge.s32.totalorder %v68, 0
    %vm173 = vcmp.ge.s32.totalorder %v69, 0
    %vm174 = vcmp.ge.s32.totalorder %v70, 0
    %vm175 = vcmp.ge.s32.totalorder %v71, 0
    %vm176 = vmand %vm172, %vm84
    %vm177 = vmand %vm173, %vm85
    %vm178 = vmand %vm174, %vm86
    %vm179 = vmand %vm175, %vm87
    %v180 = vsel %vm176, 1, 0
    %v181 = vsel %vm177, 1, 0
    %v182 = vsel %vm178, 1, 0
    %v183 = vsel %vm179, 1, 0
    %v184 = vcvt.s32.f32 %v180
    %v185 = vcvt.s32.f32 %v181
    %v186 = vcvt.s32.f32 %v182
    %v187 = vcvt.s32.f32 %v183
    %vm188 = vmand %vm172, %vm100
    %vm189 = vmand %vm173, %vm101
    %vm190 = vmand %vm174, %vm102
    %vm191 = vmand %vm175, %vm103
    %v192 = vsel %vm188, 1, 0
    %v193 = vsel %vm189, 1, 0
    %v194 = vsel %vm190, 1, 0
    %v195 = vsel %vm191, 1, 0
    %v196 = vcvt.s32.f32 %v192
    %v197 = vcvt.s32.f32 %v193
    %v198 = vcvt.s32.f32 %v194
    %v199 = vcvt.s32.f32 %v195
    %v200 = vlaneseq
    %v201 = vshrl.u32 %v200, 7
    %vm202 = vcmp.ge.s32.totalorder %v201, 1
    %v203 = vsel %vm202, 1, 0
    %v204 = vcvt.s32.f32 %v203
    %v205 = vld [vmem:[%s0] sm:$0xff]
    %v206 = vld [vmem:[%s0 + $0x8] sm:$0xff]
    %v207 = vld [vmem:[%s0 + $0x10] sm:$0xff]
    %v208 = vld [vmem:[%s0 + $0x18] sm:$0xff]
    %209 = vrot.lane.b32.xlu0 %v205, 34
    %v210 = vpop.permute.xlu0 %209
    %211 = vrot.lane.b32.xlu0 %v206, 34
    %v212 = vpop.permute.xlu0 %211
    %213 = vrot.lane.b32.xlu0 %v207, 34
    %v214 = vpop.permute.xlu0 %213
    %215 = vrot.lane.b32.xlu0 %v208, 34
    %v216 = vpop.permute.xlu0 %215
    %v217 = vlaneseq
    %v218 = vand.u32 %v217, 127
    %vm219 = vcmp.lt.s32.totalorder %v218, 34
    %v220 = vsel %vm219, %v214, %v216
    %v221 = vsel %vm219, %v212, %v214
    %v222 = vsel %vm219, %v210, %v212
    %v223 = vsel %vm219, %v216, %v210
    %v224 = vmul.f32 %v223, %v96
    %v225 = vmul.f32 %v222, %v97
    %v226 = vmul.f32 %v221, %v98
    %v227 = vmul.f32 %v220, %v99
    %v228 = vpack.c.bf16 %v224, %v224
    %v229 = vpack.c.bf16 %v225, %v225
    %v230 = vpack.c.bf16 %v226, %v226
    %v231 = vpack.c.bf16 %v227, %v227
    %232 = vrot.lane.b32.xlu0 %v205, 33
    %v233 = vpop.permute.xlu0 %232
    %234 = vrot.lane.b32.xlu0 %v206, 33
    %v235 = vpop.permute.xlu0 %234
    %236 = vrot.lane.b32.xlu0 %v207, 33
    %v237 = vpop.permute.xlu0 %236
    %238 = vrot.lane.b32.xlu0 %v208, 33
    %v239 = vpop.permute.xlu0 %238
    %vm240 = vcmp.lt.s32.totalorder %v218, 33
    %v241 = vsel %vm240, %v237, %v239
    %v242 = vsel %vm240, %v235, %v237
    %v243 = vsel %vm240, %v233, %v235
    %v244 = vsel %vm240, %v239, %v233
    %v245 = vmul.f32 %v244, %v112
    %v246 = vmul.f32 %v243, %v113
    %v247 = vmul.f32 %v242, %v114
    %v248 = vmul.f32 %v241, %v115
    %v249 = vpack.c.bf16 %v245, %v245
    %v250 = vpack.c.bf16 %v246, %v246
    %v251 = vpack.c.bf16 %v247, %v247
    %v252 = vpack.c.bf16 %v248, %v248
    %vm253 = vcmask 64512
    %v255 = vsel %vm253, %v35, 0
    %vm257 = vcmask 1043456
    %v259 = vsel %vm257, %v249, 0
    %v262 = vsel %vm257, %v250, 0
    %v265 = vsel %vm257, %v251, 0
    %v268 = vsel %vm257, %v252, 0
    %270 = vmatpush.bf16.msra.mxu0 0
    %271 = vmatpush.bf16.msra.mxu0 0
    %272 = vmatpush.bf16.msra.mxu0 0
    %273 = vmatpush.bf16.msra.mxu0 0
    %274 = vmatpush.bf16.msra.mxu0 0
    %275 = vmatpush.bf16.msra.mxu0 0
    %276 = vmatpush.bf16.msra.mxu0 0
    %277 = vmatpush.bf16.msra.mxu0 %v259
    %278 = vmatmul.bf16.gmra.mxu0 %v255
    %v279 = vpop.f32.mrf.mxu0
    %v280 = vadd.f32 0.0, %v279
    %v281 = vpop.f32.mrf.mxu0
    %282 = vdwg.mxu0
    %283 = vmatpush.bf16.msra.mxu0 0
    %284 = vmatpush.bf16.msra.mxu0 0
    %285 = vmatpush.bf16.msra.mxu0 0
    %286 = vmatpush.bf16.msra.mxu0 0
    %287 = vmatpush.bf16.msra.mxu0 0
    %288 = vmatpush.bf16.msra.mxu0 0
    %289 = vmatpush.bf16.msra.mxu0 0
    %290 = vmatpush.bf16.msra.mxu0 %v262
    %291 = vmatmul.bf16.gmra.mxu0 %v255
    %v292 = vpop.f32.mrf.mxu0
    %v293 = vadd.f32 0.0, %v292
    %v294 = vpop.f32.mrf.mxu0
    %295 = vdwg.mxu0
    %296 = vmatpush.bf16.msra.mxu0 0
    %297 = vmatpush.bf16.msra.mxu0 0
    %298 = vmatpush.bf16.msra.mxu0 0
    %299 = vmatpush.bf16.msra.mxu0 0
    %300 = vmatpush.bf16.msra.mxu0 0
    %301 = vmatpush.bf16.msra.mxu0 0
    %302 = vmatpush.bf16.msra.mxu0 0
    %303 = vmatpush.bf16.msra.mxu0 %v265
    %304 = vmatmul.bf16.gmra.mxu0 %v255
    %v305 = vpop.f32.mrf.mxu0
    %v306 = vadd.f32 0.0, %v305
    %v307 = vpop.f32.mrf.mxu0
    %308 = vdwg.mxu0
    %309 = vmatpush.bf16.msra.mxu0 0
    %310 = vmatpush.bf16.msra.mxu0 0
    %311 = vmatpush.bf16.msra.mxu0 0
    %312 = vmatpush.bf16.msra.mxu0 0
    %313 = vmatpush.bf16.msra.mxu0 0
    %314 = vmatpush.bf16.msra.mxu0 0
    %315 = vmatpush.bf16.msra.mxu0 0
    %316 = vmatpush.bf16.msra.mxu0 %v268
    %317 = vmatmul.bf16.gmra.mxu0 %v255
    %v318 = vpop.f32.mrf.mxu0
    %v319 = vadd.f32 0.0, %v318
    %v320 = vpop.f32.mrf.mxu0
    %321 = vdwg.mxu0
    %v323 = vsel %vm253, %v34, 0
    %v326 = vsel %vm257, %v228, 0
    %v329 = vsel %vm257, %v229, 0
    %v332 = vsel %vm257, %v230, 0
    %v335 = vsel %vm257, %v231, 0
    %337 = vmatpush.bf16.msra.mxu0 0
    %338 = vmatpush.bf16.msra.mxu0 0
    %339 = vmatpush.bf16.msra.mxu0 0
    %340 = vmatpush.bf16.msra.mxu0 0
    %341 = vmatpush.bf16.msra.mxu0 0
    %342 = vmatpush.bf16.msra.mxu0 0
    %343 = vmatpush.bf16.msra.mxu0 0
    %344 = vmatpush.bf16.msra.mxu0 %v326
    %345 = vmatmul.bf16.gmra.mxu0 %v323
    %v346 = vpop.f32.mrf.mxu0
    %v347 = vadd.f32 %v280, %v346
    %v348 = vpop.f32.mrf.mxu0
    %349 = vdwg.mxu0
    %350 = vmatpush.bf16.msra.mxu0 0
    %351 = vmatpush.bf16.msra.mxu0 0
    %352 = vmatpush.bf16.msra.mxu0 0
    %353 = vmatpush.bf16.msra.mxu0 0
    %354 = vmatpush.bf16.msra.mxu0 0
    %355 = vmatpush.bf16.msra.mxu0 0
    %356 = vmatpush.bf16.msra.mxu0 0
    %357 = vmatpush.bf16.msra.mxu0 %v329
    %358 = vmatmul.bf16.gmra.mxu0 %v323
    %v359 = vpop.f32.mrf.mxu0
    %v360 = vadd.f32 %v293, %v359
    %v361 = vpop.f32.mrf.mxu0
    %362 = vdwg.mxu0
    %363 = vmatpush.bf16.msra.mxu0 0
    %364 = vmatpush.bf16.msra.mxu0 0
    %365 = vmatpush.bf16.msra.mxu0 0
    %366 = vmatpush.bf16.msra.mxu0 0
    %367 = vmatpush.bf16.msra.mxu0 0
    %368 = vmatpush.bf16.msra.mxu0 0
    %369 = vmatpush.bf16.msra.mxu0 0
    %370 = vmatpush.bf16.msra.mxu0 %v332
    %371 = vmatmul.bf16.gmra.mxu0 %v323
    %v372 = vpop.f32.mrf.mxu0
    %v373 = vadd.f32 %v306, %v372
    %v374 = vpop.f32.mrf.mxu0
    %375 = vdwg.mxu0
    %376 = vmatpush.bf16.msra.mxu0 0
    %377 = vmatpush.bf16.msra.mxu0 0
    %378 = vmatpush.bf16.msra.mxu0 0
    %379 = vmatpush.bf16.msra.mxu0 0
    %380 = vmatpush.bf16.msra.mxu0 0
    %381 = vmatpush.bf16.msra.mxu0 0
    %382 = vmatpush.bf16.msra.mxu0 0
    %383 = vmatpush.bf16.msra.mxu0 %v335
    %384 = vmatmul.bf16.gmra.mxu0 %v323
    %v385 = vpop.f32.mrf.mxu0
    %v386 = vadd.f32 %v319, %v385
    %v387 = vpop.f32.mrf.mxu0
    %388 = vdwg.mxu0
    %389 = vrot.lane.b32.xlu0 %v205, 32
    %v390 = vpop.permute.xlu0 %389
    %391 = vrot.lane.b32.xlu0 %v206, 32
    %v392 = vpop.permute.xlu0 %391
    %393 = vrot.lane.b32.xlu0 %v207, 32
    %v394 = vpop.permute.xlu0 %393
    %395 = vrot.lane.b32.xlu0 %v208, 32
    %v396 = vpop.permute.xlu0 %395
    %vm397 = vcmp.lt.s32.totalorder %v218, 32
    %v398 = vsel %vm397, %v394, %v396
    %v399 = vsel %vm397, %v392, %v394
    %v400 = vsel %vm397, %v390, %v392
    %v401 = vsel %vm397, %v396, %v390
    %v402 = vmul.f32 %v401, %v128
    %v403 = vmul.f32 %v400, %v129
    %v404 = vmul.f32 %v399, %v130
    %v405 = vmul.f32 %v398, %v131
    %v406 = vpack.c.bf16 %v402, %v402
    %v407 = vpack.c.bf16 %v403, %v403
    %v408 = vpack.c.bf16 %v404, %v404
    %v409 = vpack.c.bf16 %v405, %v405
    %v411 = vsel %vm253, %v36, 0
    %v414 = vsel %vm257, %v406, 0
    %v417 = vsel %vm257, %v407, 0
    %v420 = vsel %vm257, %v408, 0
    %v423 = vsel %vm257, %v409, 0
    %425 = vmatpush.bf16.msra.mxu0 0
    %426 = vmatpush.bf16.msra.mxu0 0
    %427 = vmatpush.bf16.msra.mxu0 0
    %428 = vmatpush.bf16.msra.mxu0 0
    %429 = vmatpush.bf16.msra.mxu0 0
    %430 = vmatpush.bf16.msra.mxu0 0
    %431 = vmatpush.bf16.msra.mxu0 0
    %432 = vmatpush.bf16.msra.mxu0 %v414
    %433 = vmatmul.bf16.gmra.mxu0 %v411
    %v434 = vpop.f32.mrf.mxu0
    %v435 = vadd.f32 0.0, %v434
    %v436 = vpop.f32.mrf.mxu0
    %437 = vdwg.mxu0
    %438 = vmatpush.bf16.msra.mxu0 0
    %439 = vmatpush.bf16.msra.mxu0 0
    %440 = vmatpush.bf16.msra.mxu0 0
    %441 = vmatpush.bf16.msra.mxu0 0
    %442 = vmatpush.bf16.msra.mxu0 0
    %443 = vmatpush.bf16.msra.mxu0 0
    %444 = vmatpush.bf16.msra.mxu0 0
    %445 = vmatpush.bf16.msra.mxu0 %v417
    %446 = vmatmul.bf16.gmra.mxu0 %v411
    %v447 = vpop.f32.mrf.mxu0
    %v448 = vadd.f32 0.0, %v447
    %v449 = vpop.f32.mrf.mxu0
    %450 = vdwg.mxu0
    %451 = vmatpush.bf16.msra.mxu0 0
    %452 = vmatpush.bf16.msra.mxu0 0
    %453 = vmatpush.bf16.msra.mxu0 0
    %454 = vmatpush.bf16.msra.mxu0 0
    %455 = vmatpush.bf16.msra.mxu0 0
    %456 = vmatpush.bf16.msra.mxu0 0
    %457 = vmatpush.bf16.msra.mxu0 0
    %458 = vmatpush.bf16.msra.mxu0 %v420
    %459 = vmatmul.bf16.gmra.mxu0 %v411
    %v460 = vpop.f32.mrf.mxu0
    %v461 = vadd.f32 0.0, %v460
    %v462 = vpop.f32.mrf.mxu0
    %463 = vdwg.mxu0
    %464 = vmatpush.bf16.msra.mxu0 0
    %465 = vmatpush.bf16.msra.mxu0 0
    %466 = vmatpush.bf16.msra.mxu0 0
    %467 = vmatpush.bf16.msra.mxu0 0
    %468 = vmatpush.bf16.msra.mxu0 0
    %469 = vmatpush.bf16.msra.mxu0 0
    %470 = vmatpush.bf16.msra.mxu0 0
    %471 = vmatpush.bf16.msra.mxu0 %v423
    %472 = vmatmul.bf16.gmra.mxu0 %v411
    %v473 = vpop.f32.mrf.mxu0
    %v474 = vadd.f32 0.0, %v473
    %v475 = vpop.f32.mrf.mxu0
    %476 = vdwg.mxu0
    %v477 = vadd.f32 %v347, %v435
    %v478 = vadd.f32 %v360, %v448
    %v479 = vadd.f32 %v373, %v461
    %v480 = vadd.f32 %v386, %v474
    %481 = vrot.lane.b32.xlu0 %v205, 18
    %v482 = vpop.permute.xlu0 %481
    %483 = vrot.lane.b32.xlu0 %v206, 18
    %v484 = vpop.permute.xlu0 %483
    %485 = vrot.lane.b32.xlu0 %v207, 18
    %v486 = vpop.permute.xlu0 %485
    %487 = vrot.lane.b32.xlu0 %v208, 18
    %v488 = vpop.permute.xlu0 %487
    %vm489 = vcmp.lt.s32.totalorder %v218, 18
    %v490 = vsel %vm489, %v486, %v488
    %v491 = vsel %vm489, %v484, %v486
    %v492 = vsel %vm489, %v482, %v484
    %v493 = vsel %vm489, %v488, %v482
    %v494 = vmul.f32 %v493, %v144
    %v495 = vmul.f32 %v492, %v145
    %v496 = vmul.f32 %v491, %v146
    %v497 = vmul.f32 %v490, %v147
    %v498 = vpack.c.bf16 %v494, %v494
    %v499 = vpack.c.bf16 %v495, %v495
    %v500 = vpack.c.bf16 %v496, %v496
    %v501 = vpack.c.bf16 %v497, %v497
    %v503 = vsel %vm253, %v37, 0
    %v506 = vsel %vm257, %v498, 0
    %v509 = vsel %vm257, %v499, 0
    %v512 = vsel %vm257, %v500, 0
    %v515 = vsel %vm257, %v501, 0
    %517 = vmatpush.bf16.msra.mxu0 0
    %518 = vmatpush.bf16.msra.mxu0 0
    %519 = vmatpush.bf16.msra.mxu0 0
    %520 = vmatpush.bf16.msra.mxu0 0
    %521 = vmatpush.bf16.msra.mxu0 0
    %522 = vmatpush.bf16.msra.mxu0 0
    %523 = vmatpush.bf16.msra.mxu0 0
    %524 = vmatpush.bf16.msra.mxu0 %v506
    %525 = vmatmul.bf16.gmra.mxu0 %v503
    %v526 = vpop.f32.mrf.mxu0
    %v527 = vadd.f32 0.0, %v526
    %v528 = vpop.f32.mrf.mxu0
    %529 = vdwg.mxu0
    %530 = vmatpush.bf16.msra.mxu0 0
    %531 = vmatpush.bf16.msra.mxu0 0
    %532 = vmatpush.bf16.msra.mxu0 0
    %533 = vmatpush.bf16.msra.mxu0 0
    %534 = vmatpush.bf16.msra.mxu0 0
    %535 = vmatpush.bf16.msra.mxu0 0
    %536 = vmatpush.bf16.msra.mxu0 0
    %537 = vmatpush.bf16.msra.mxu0 %v509
    %538 = vmatmul.bf16.gmra.mxu0 %v503
    %v539 = vpop.f32.mrf.mxu0
    %v540 = vadd.f32 0.0, %v539
    %v541 = vpop.f32.mrf.mxu0
    %542 = vdwg.mxu0
    %543 = vmatpush.bf16.msra.mxu0 0
    %544 = vmatpush.bf16.msra.mxu0 0
    %545 = vmatpush.bf16.msra.mxu0 0
    %546 = vmatpush.bf16.msra.mxu0 0
    %547 = vmatpush.bf16.msra.mxu0 0
    %548 = vmatpush.bf16.msra.mxu0 0
    %549 = vmatpush.bf16.msra.mxu0 0
    %550 = vmatpush.bf16.msra.mxu0 %v512
    %551 = vmatmul.bf16.gmra.mxu0 %v503
    %v552 = vpop.f32.mrf.mxu0
    %v553 = vadd.f32 0.0, %v552
    %v554 = vpop.f32.mrf.mxu0
    %555 = vdwg.mxu0
    %556 = vmatpush.bf16.msra.mxu0 0
    %557 = vmatpush.bf16.msra.mxu0 0
    %558 = vmatpush.bf16.msra.mxu0 0
    %559 = vmatpush.bf16.msra.mxu0 0
    %560 = vmatpush.bf16.msra.mxu0 0
    %561 = vmatpush.bf16.msra.mxu0 0
    %562 = vmatpush.bf16.msra.mxu0 0
    %563 = vmatpush.bf16.msra.mxu0 %v515
    %564 = vmatmul.bf16.gmra.mxu0 %v503
    %v565 = vpop.f32.mrf.mxu0
    %v566 = vadd.f32 0.0, %v565
    %v567 = vpop.f32.mrf.mxu0
    %568 = vdwg.mxu0
    %v569 = vadd.f32 %v477, %v527
    %v570 = vadd.f32 %v478, %v540
    %v571 = vadd.f32 %v479, %v553
    %v572 = vadd.f32 %v480, %v566
    %573 = vrot.lane.b32.xlu0 %v205, 17
    %v574 = vpop.permute.xlu0 %573
    %575 = vrot.lane.b32.xlu0 %v206, 17
    %v576 = vpop.permute.xlu0 %575
    %577 = vrot.lane.b32.xlu0 %v207, 17
    %v578 = vpop.permute.xlu0 %577
    %579 = vrot.lane.b32.xlu0 %v208, 17
    %v580 = vpop.permute.xlu0 %579
    %vm581 = vcmp.lt.s32.totalorder %v218, 17
    %v582 = vsel %vm581, %v578, %v580
    %v583 = vsel %vm581, %v576, %v578
    %v584 = vsel %vm581, %v574, %v576
    %v585 = vsel %vm581, %v580, %v574
    %v586 = vmul.f32 %v585, %v156
    %v587 = vmul.f32 %v584, %v157
    %v588 = vmul.f32 %v583, %v158
    %v589 = vmul.f32 %v582, %v159
    %v590 = vpack.c.bf16 %v586, %v586
    %v591 = vpack.c.bf16 %v587, %v587
    %v592 = vpack.c.bf16 %v588, %v588
    %v593 = vpack.c.bf16 %v589, %v589
    %v595 = vsel %vm253, %v38, 0
    %v598 = vsel %vm257, %v590, 0
    %v601 = vsel %vm257, %v591, 0
    %v604 = vsel %vm257, %v592, 0
    %v607 = vsel %vm257, %v593, 0
    %609 = vmatpush.bf16.msra.mxu0 0
    %610 = vmatpush.bf16.msra.mxu0 0
    %611 = vmatpush.bf16.msra.mxu0 0
    %612 = vmatpush.bf16.msra.mxu0 0
    %613 = vmatpush.bf16.msra.mxu0 0
    %614 = vmatpush.bf16.msra.mxu0 0
    %615 = vmatpush.bf16.msra.mxu0 0
    %616 = vmatpush.bf16.msra.mxu0 %v598
    %617 = vmatmul.bf16.gmra.mxu0 %v595
    %v618 = vpop.f32.mrf.mxu0
    %v619 = vadd.f32 0.0, %v618
    %v620 = vpop.f32.mrf.mxu0
    %621 = vdwg.mxu0
    %622 = vmatpush.bf16.msra.mxu0 0
    %623 = vmatpush.bf16.msra.mxu0 0
    %624 = vmatpush.bf16.msra.mxu0 0
    %625 = vmatpush.bf16.msra.mxu0 0
    %626 = vmatpush.bf16.msra.mxu0 0
    %627 = vmatpush.bf16.msra.mxu0 0
    %628 = vmatpush.bf16.msra.mxu0 0
    %629 = vmatpush.bf16.msra.mxu0 %v601
    %630 = vmatmul.bf16.gmra.mxu0 %v595
    %v631 = vpop.f32.mrf.mxu0
    %v632 = vadd.f32 0.0, %v631
    %v633 = vpop.f32.mrf.mxu0
    %634 = vdwg.mxu0
    %635 = vmatpush.bf16.msra.mxu0 0
    %636 = vmatpush.bf16.msra.mxu0 0
    %637 = vmatpush.bf16.msra.mxu0 0
    %638 = vmatpush.bf16.msra.mxu0 0
    %639 = vmatpush.bf16.msra.mxu0 0
    %640 = vmatpush.bf16.msra.mxu0 0
    %641 = vmatpush.bf16.msra.mxu0 0
    %642 = vmatpush.bf16.msra.mxu0 %v604
    %643 = vmatmul.bf16.gmra.mxu0 %v595
    %v644 = vpop.f32.mrf.mxu0
    %v645 = vadd.f32 0.0, %v644
    %v646 = vpop.f32.mrf.mxu0
    %647 = vdwg.mxu0
    %648 = vmatpush.bf16.msra.mxu0 0
    %649 = vmatpush.bf16.msra.mxu0 0
    %650 = vmatpush.bf16.msra.mxu0 0
    %651 = vmatpush.bf16.msra.mxu0 0
    %652 = vmatpush.bf16.msra.mxu0 0
    %653 = vmatpush.bf16.msra.mxu0 0
    %654 = vmatpush.bf16.msra.mxu0 0
    %655 = vmatpush.bf16.msra.mxu0 %v607
    %656 = vmatmul.bf16.gmra.mxu0 %v595
    %v657 = vpop.f32.mrf.mxu0
    %v658 = vadd.f32 0.0, %v657
    %v659 = vpop.f32.mrf.mxu0
    %660 = vdwg.mxu0
    %v661 = vadd.f32 %v569, %v619
    %v662 = vadd.f32 %v570, %v632
    %v663 = vadd.f32 %v571, %v645
    %v664 = vadd.f32 %v572, %v658
    %665 = vrot.lane.b32.xlu0 %v205, 16
    %v666 = vpop.permute.xlu0 %665
    %667 = vrot.lane.b32.xlu0 %v206, 16
    %v668 = vpop.permute.xlu0 %667
    %669 = vrot.lane.b32.xlu0 %v207, 16
    %v670 = vpop.permute.xlu0 %669
    %671 = vrot.lane.b32.xlu0 %v208, 16
    %v672 = vpop.permute.xlu0 %671
    %vm673 = vcmp.lt.s32.totalorder %v218, 16
    %v674 = vsel %vm673, %v670, %v672
    %v675 = vsel %vm673, %v668, %v670
    %v676 = vsel %vm673, %v666, %v668
    %v677 = vsel %vm673, %v672, %v666
    %v678 = vmul.f32 %v677, %v168
    %v679 = vmul.f32 %v676, %v169
    %v680 = vmul.f32 %v675, %v170
    %v681 = vmul.f32 %v674, %v171
    %v682 = vpack.c.bf16 %v678, %v678
    %v683 = vpack.c.bf16 %v679, %v679
    %v684 = vpack.c.bf16 %v680, %v680
    %v685 = vpack.c.bf16 %v681, %v681
    %v687 = vsel %vm253, %v39, 0
    %v690 = vsel %vm257, %v682, 0
    %v693 = vsel %vm257, %v683, 0
    %v696 = vsel %vm257, %v684, 0
    %v699 = vsel %vm257, %v685, 0
    %701 = vmatpush.bf16.msra.mxu0 0
    %702 = vmatpush.bf16.msra.mxu0 0
    %703 = vmatpush.bf16.msra.mxu0 0
    %704 = vmatpush.bf16.msra.mxu0 0
    %705 = vmatpush.bf16.msra.mxu0 0
    %706 = vmatpush.bf16.msra.mxu0 0
    %707 = vmatpush.bf16.msra.mxu0 0
    %708 = vmatpush.bf16.msra.mxu0 %v690
    %709 = vmatmul.bf16.gmra.mxu0 %v687
    %v710 = vpop.f32.mrf.mxu0
    %v711 = vadd.f32 0.0, %v710
    %v712 = vpop.f32.mrf.mxu0
    %713 = vdwg.mxu0
    %714 = vmatpush.bf16.msra.mxu0 0
    %715 = vmatpush.bf16.msra.mxu0 0
    %716 = vmatpush.bf16.msra.mxu0 0
    %717 = vmatpush.bf16.msra.mxu0 0
    %718 = vmatpush.bf16.msra.mxu0 0
    %719 = vmatpush.bf16.msra.mxu0 0
    %720 = vmatpush.bf16.msra.mxu0 0
    %721 = vmatpush.bf16.msra.mxu0 %v693
    %722 = vmatmul.bf16.gmra.mxu0 %v687
    %v723 = vpop.f32.mrf.mxu0
    %v724 = vadd.f32 0.0, %v723
    %v725 = vpop.f32.mrf.mxu0
    %726 = vdwg.mxu0
    %727 = vmatpush.bf16.msra.mxu0 0
    %728 = vmatpush.bf16.msra.mxu0 0
    %729 = vmatpush.bf16.msra.mxu0 0
    %730 = vmatpush.bf16.msra.mxu0 0
    %731 = vmatpush.bf16.msra.mxu0 0
    %732 = vmatpush.bf16.msra.mxu0 0
    %733 = vmatpush.bf16.msra.mxu0 0
    %734 = vmatpush.bf16.msra.mxu0 %v696
    %735 = vmatmul.bf16.gmra.mxu0 %v687
    %v736 = vpop.f32.mrf.mxu0
    %v737 = vadd.f32 0.0, %v736
    %v738 = vpop.f32.mrf.mxu0
    %739 = vdwg.mxu0
    %740 = vmatpush.bf16.msra.mxu0 0
    %741 = vmatpush.bf16.msra.mxu0 0
    %742 = vmatpush.bf16.msra.mxu0 0
    %743 = vmatpush.bf16.msra.mxu0 0
    %744 = vmatpush.bf16.msra.mxu0 0
    %745 = vmatpush.bf16.msra.mxu0 0
    %746 = vmatpush.bf16.msra.mxu0 0
    %747 = vmatpush.bf16.msra.mxu0 %v699
    %748 = vmatmul.bf16.gmra.mxu0 %v687
    %v749 = vpop.f32.mrf.mxu0
    %v750 = vadd.f32 0.0, %v749
    %v751 = vpop.f32.mrf.mxu0
    %752 = vdwg.mxu0
    %v753 = vadd.f32 %v661, %v711
    %v754 = vadd.f32 %v662, %v724
    %v755 = vadd.f32 %v663, %v737
    %v756 = vadd.f32 %v664, %v750
    %757 = vrot.lane.b32.xlu0 %v205, 2
    %v758 = vpop.permute.xlu0 %757
    %759 = vrot.lane.b32.xlu0 %v206, 2
    %v760 = vpop.permute.xlu0 %759
    %761 = vrot.lane.b32.xlu0 %v207, 2
    %v762 = vpop.permute.xlu0 %761
    %763 = vrot.lane.b32.xlu0 %v208, 2
    %v764 = vpop.permute.xlu0 %763
    %vm765 = vcmp.lt.s32.totalorder %v218, 2
    %v766 = vsel %vm765, %v762, %v764
    %v767 = vsel %vm765, %v760, %v762
    %v768 = vsel %vm765, %v758, %v760
    %v769 = vsel %vm765, %v764, %v758
    %v770 = vmul.f32 %v769, %v184
    %v771 = vmul.f32 %v768, %v185
    %v772 = vmul.f32 %v767, %v186
    %v773 = vmul.f32 %v766, %v187
    %v774 = vpack.c.bf16 %v770, %v770
    %v775 = vpack.c.bf16 %v771, %v771
    %v776 = vpack.c.bf16 %v772, %v772
    %v777 = vpack.c.bf16 %v773, %v773
    %v779 = vsel %vm253, %v40, 0
    %v782 = vsel %vm257, %v774, 0
    %v785 = vsel %vm257, %v775, 0
    %v788 = vsel %vm257, %v776, 0
    %v791 = vsel %vm257, %v777, 0
    %793 = vmatpush.bf16.msra.mxu0 0
    %794 = vmatpush.bf16.msra.mxu0 0
    %795 = vmatpush.bf16.msra.mxu0 0
    %796 = vmatpush.bf16.msra.mxu0 0
    %797 = vmatpush.bf16.msra.mxu0 0
    %798 = vmatpush.bf16.msra.mxu0 0
    %799 = vmatpush.bf16.msra.mxu0 0
    %800 = vmatpush.bf16.msra.mxu0 %v782
    %801 = vmatmul.bf16.gmra.mxu0 %v779
    %v802 = vpop.f32.mrf.mxu0
    %v803 = vadd.f32 0.0, %v802
    %v804 = vpop.f32.mrf.mxu0
    %805 = vdwg.mxu0
    %806 = vmatpush.bf16.msra.mxu0 0
    %807 = vmatpush.bf16.msra.mxu0 0
    %808 = vmatpush.bf16.msra.mxu0 0
    %809 = vmatpush.bf16.msra.mxu0 0
    %810 = vmatpush.bf16.msra.mxu0 0
    %811 = vmatpush.bf16.msra.mxu0 0
    %812 = vmatpush.bf16.msra.mxu0 0
    %813 = vmatpush.bf16.msra.mxu0 %v785
    %814 = vmatmul.bf16.gmra.mxu0 %v779
    %v815 = vpop.f32.mrf.mxu0
    %v816 = vadd.f32 0.0, %v815
    %v817 = vpop.f32.mrf.mxu0
    %818 = vdwg.mxu0
    %819 = vmatpush.bf16.msra.mxu0 0
    %820 = vmatpush.bf16.msra.mxu0 0
    %821 = vmatpush.bf16.msra.mxu0 0
    %822 = vmatpush.bf16.msra.mxu0 0
    %823 = vmatpush.bf16.msra.mxu0 0
    %824 = vmatpush.bf16.msra.mxu0 0
    %825 = vmatpush.bf16.msra.mxu0 0
    %826 = vmatpush.bf16.msra.mxu0 %v788
    %827 = vmatmul.bf16.gmra.mxu0 %v779
    %v828 = vpop.f32.mrf.mxu0
    %v829 = vadd.f32 0.0, %v828
    %v830 = vpop.f32.mrf.mxu0
    %831 = vdwg.mxu0
    %832 = vmatpush.bf16.msra.mxu0 0
    %833 = vmatpush.bf16.msra.mxu0 0
    %834 = vmatpush.bf16.msra.mxu0 0
    %835 = vmatpush.bf16.msra.mxu0 0
    %836 = vmatpush.bf16.msra.mxu0 0
    %837 = vmatpush.bf16.msra.mxu0 0
    %838 = vmatpush.bf16.msra.mxu0 0
    %839 = vmatpush.bf16.msra.mxu0 %v791
    %840 = vmatmul.bf16.gmra.mxu0 %v779
    %v841 = vpop.f32.mrf.mxu0
    %v842 = vadd.f32 0.0, %v841
    %v843 = vpop.f32.mrf.mxu0
    %844 = vdwg.mxu0
    %v845 = vadd.f32 %v753, %v803
    %v846 = vadd.f32 %v754, %v816
    %v847 = vadd.f32 %v755, %v829
    %v848 = vadd.f32 %v756, %v842
    %849 = vrot.lane.b32.xlu0 %v205, 1
    %v850 = vpop.permute.xlu0 %849
    %851 = vrot.lane.b32.xlu0 %v206, 1
    %v852 = vpop.permute.xlu0 %851
    %853 = vrot.lane.b32.xlu0 %v207, 1
    %v854 = vpop.permute.xlu0 %853
    %855 = vrot.lane.b32.xlu0 %v208, 1
    %v856 = vpop.permute.xlu0 %855
    %vm857 = vcmp.lt.s32.totalorder %v218, 1
    %v858 = vsel %vm857, %v854, %v856
    %v859 = vsel %vm857, %v852, %v854
    %v860 = vsel %vm857, %v850, %v852
    %v861 = vsel %vm857, %v856, %v850
    %v862 = vmul.f32 %v861, %v196
    %v863 = vmul.f32 %v860, %v197
    %v864 = vmul.f32 %v859, %v198
    %v865 = vmul.f32 %v858, %v199
    %v866 = vpack.c.bf16 %v862, %v862
    %v867 = vpack.c.bf16 %v863, %v863
    %v868 = vpack.c.bf16 %v864, %v864
    %v869 = vpack.c.bf16 %v865, %v865
    %v871 = vsel %vm253, %v41, 0
    %v874 = vsel %vm257, %v866, 0
    %v877 = vsel %vm257, %v867, 0
    %v880 = vsel %vm257, %v868, 0
    %v883 = vsel %vm257, %v869, 0
    %885 = vmatpush.bf16.msra.mxu0 0
    %886 = vmatpush.bf16.msra.mxu0 0
    %887 = vmatpush.bf16.msra.mxu0 0
    %888 = vmatpush.bf16.msra.mxu0 0
    %889 = vmatpush.bf16.msra.mxu0 0
    %890 = vmatpush.bf16.msra.mxu0 0
    %891 = vmatpush.bf16.msra.mxu0 0
    %892 = vmatpush.bf16.msra.mxu0 %v874
    %893 = vmatmul.bf16.gmra.mxu0 %v871
    %v894 = vpop.f32.mrf.mxu0
    %v895 = vadd.f32 0.0, %v894
    %v896 = vpop.f32.mrf.mxu0
    %897 = vdwg.mxu0
    %898 = vmatpush.bf16.msra.mxu0 0
    %899 = vmatpush.bf16.msra.mxu0 0
    %900 = vmatpush.bf16.msra.mxu0 0
    %901 = vmatpush.bf16.msra.mxu0 0
    %902 = vmatpush.bf16.msra.mxu0 0
    %903 = vmatpush.bf16.msra.mxu0 0
    %904 = vmatpush.bf16.msra.mxu0 0
    %905 = vmatpush.bf16.msra.mxu0 %v877
    %906 = vmatmul.bf16.gmra.mxu0 %v871
    %v907 = vpop.f32.mrf.mxu0
    %v908 = vadd.f32 0.0, %v907
    %v909 = vpop.f32.mrf.mxu0
    %910 = vdwg.mxu0
    %911 = vmatpush.bf16.msra.mxu0 0
    %912 = vmatpush.bf16.msra.mxu0 0
    %913 = vmatpush.bf16.msra.mxu0 0
    %914 = vmatpush.bf16.msra.mxu0 0
    %915 = vmatpush.bf16.msra.mxu0 0
    %916 = vmatpush.bf16.msra.mxu0 0
    %917 = vmatpush.bf16.msra.mxu0 0
    %918 = vmatpush.bf16.msra.mxu0 %v880
    %919 = vmatmul.bf16.gmra.mxu0 %v871
    %v920 = vpop.f32.mrf.mxu0
    %v921 = vadd.f32 0.0, %v920
    %v922 = vpop.f32.mrf.mxu0
    %923 = vdwg.mxu0
    %924 = vmatpush.bf16.msra.mxu0 0
    %925 = vmatpush.bf16.msra.mxu0 0
    %926 = vmatpush.bf16.msra.mxu0 0
    %927 = vmatpush.bf16.msra.mxu0 0
    %928 = vmatpush.bf16.msra.mxu0 0
    %929 = vmatpush.bf16.msra.mxu0 0
    %930 = vmatpush.bf16.msra.mxu0 0
    %931 = vmatpush.bf16.msra.mxu0 %v883
    %932 = vmatmul.bf16.gmra.mxu0 %v871
    %v933 = vpop.f32.mrf.mxu0
    %v934 = vadd.f32 0.0, %v933
    %v935 = vpop.f32.mrf.mxu0
    %936 = vdwg.mxu0
    %v937 = vadd.f32 %v845, %v895
    %v938 = vadd.f32 %v846, %v908
    %v939 = vadd.f32 %v847, %v921
    %v940 = vadd.f32 %v848, %v934
    %v941 = vpack.c.bf16 %v205, %v205
    %v942 = vpack.c.bf16 %v206, %v206
    %v943 = vpack.c.bf16 %v207, %v207
    %v944 = vpack.c.bf16 %v208, %v208
    %v946 = vsel %vm253, %v42, 0
    %v949 = vsel %vm257, %v941, 0
    %v952 = vsel %vm257, %v942, 0
    %v955 = vsel %vm257, %v943, 0
    %v958 = vsel %vm257, %v944, 0
    %960 = vmatpush.bf16.msra.mxu0 0
    %961 = vmatpush.bf16.msra.mxu0 0
    %962 = vmatpush.bf16.msra.mxu0 0
    %963 = vmatpush.bf16.msra.mxu0 0
    %964 = vmatpush.bf16.msra.mxu0 0
    %965 = vmatpush.bf16.msra.mxu0 0
    %966 = vmatpush.bf16.msra.mxu0 0
    %967 = vmatpush.bf16.msra.mxu0 %v949
    %968 = vmatmul.bf16.gmra.mxu0 %v946
    %v969 = vpop.f32.mrf.mxu0
    %v970 = vadd.f32 0.0, %v969
    %v971 = vpop.f32.mrf.mxu0
    %972 = vdwg.mxu0
    %973 = vmatpush.bf16.msra.mxu0 0
    %974 = vmatpush.bf16.msra.mxu0 0
    %975 = vmatpush.bf16.msra.mxu0 0
    %976 = vmatpush.bf16.msra.mxu0 0
    %977 = vmatpush.bf16.msra.mxu0 0
    %978 = vmatpush.bf16.msra.mxu0 0
    %979 = vmatpush.bf16.msra.mxu0 0
    %980 = vmatpush.bf16.msra.mxu0 %v952
    %981 = vmatmul.bf16.gmra.mxu0 %v946
    %v982 = vpop.f32.mrf.mxu0
    %v983 = vadd.f32 0.0, %v982
    %v984 = vpop.f32.mrf.mxu0
    %985 = vdwg.mxu0
    %986 = vmatpush.bf16.msra.mxu0 0
    %987 = vmatpush.bf16.msra.mxu0 0
    %988 = vmatpush.bf16.msra.mxu0 0
    %989 = vmatpush.bf16.msra.mxu0 0
    %990 = vmatpush.bf16.msra.mxu0 0
    %991 = vmatpush.bf16.msra.mxu0 0
    %992 = vmatpush.bf16.msra.mxu0 0
    %993 = vmatpush.bf16.msra.mxu0 %v955
    %994 = vmatmul.bf16.gmra.mxu0 %v946
    %v995 = vpop.f32.mrf.mxu0
    %v996 = vadd.f32 0.0, %v995
    %v997 = vpop.f32.mrf.mxu0
    %998 = vdwg.mxu0
    %999 = vmatpush.bf16.msra.mxu0 0
    %1000 = vmatpush.bf16.msra.mxu0 0
    %1001 = vmatpush.bf16.msra.mxu0 0
    %1002 = vmatpush.bf16.msra.mxu0 0
    %1003 = vmatpush.bf16.msra.mxu0 0
    %1004 = vmatpush.bf16.msra.mxu0 0
    %1005 = vmatpush.bf16.msra.mxu0 0
    %1006 = vmatpush.bf16.msra.mxu0 %v958
    %1007 = vmatmul.bf16.gmra.mxu0 %v946
    %v1008 = vpop.f32.mrf.mxu0
    %v1009 = vadd.f32 0.0, %v1008
    %v1010 = vpop.f32.mrf.mxu0
    %1011 = vdwg.mxu0
    %v1012 = vadd.f32 %v937, %v970
    %v1013 = vadd.f32 %v938, %v983
    %v1014 = vadd.f32 %v939, %v996
    %v1015 = vadd.f32 %v940, %v1009
    %vm1016 = vcmp.gt.f32.partialorder %v1012, 0.0
    %vm1017 = vcmp.gt.f32.partialorder %v1013, 0.0
    %vm1018 = vcmp.gt.f32.partialorder %v1014, 0.0
    %vm1019 = vcmp.gt.f32.partialorder %v1015, 0.0
    %1021 = vset.pattern.permute.xlu0 0
    %1022 = vperm.xlu0 %1021, %v61
    %v1023 = vpop.permute.xlu0 %1022
    %v1025 = vmul.f32 %v1023, %v1012
    %v1026 = vmul.f32 %v1023, %v1013
    %v1027 = vmul.f32 %v1023, %v1014
    %v1028 = vmul.f32 %v1023, %v1015
    %v1029 = vsel %vm1016, %v1012, %v1025
    %v1030 = vsel %vm1017, %v1013, %v1026
    %v1031 = vsel %vm1018, %v1014, %v1027
    %v1032 = vsel %vm1019, %v1015, %v1028
    %v1033 = vadd.f32 %v1029, %v1030
    %v1034 = vadd.f32 %v1033, %v1031
    %v1035 = vadd.f32 %v1034, %v1032
    %1036 = vadd.xlane.f32.xlu0 %v1035
    %v1037 = vpop.xlane.xlu0 %1036
    %v1038 = vmul.f32 %v1037, 0.001953125
    %v1039 = vmul.f32 %v1029, %v1029
    %v1040 = vmul.f32 %v1030, %v1030
    %v1041 = vmul.f32 %v1031, %v1031
    %v1042 = vmul.f32 %v1032, %v1032
    %v1043 = vadd.f32 %v1039, %v1040
    %v1044 = vadd.f32 %v1043, %v1041
    %v1045 = vadd.f32 %v1044, %v1042
    %1046 = vadd.xlane.f32.xlu0 %v1045
    %v1047 = vpop.xlane.xlu0 %1046
    %v1048 = vmul.f32 %v1047, 0.001953125
    %v1049 = vmul.f32 %v1038, %v1038
    %v1050 = vsub.f32 %v1048, %v1049
    %v1051 = vsub.f32 %v1029, %v1038
    %v1052 = vsub.f32 %v1030, %v1038
    %v1053 = vsub.f32 %v1031, %v1038
    %v1054 = vsub.f32 %v1032, %v1038
    %v1055 = vadd.f32 %v1050, 1e-05
    %v1056 = vrsqrt.pop %v1055
    %v1057 = vmul.f32 %v1056, %v1055
    %v1058 = vmul.f32 %v1057, %v1056
    %v1059 = vmul.f32 0.5, %v1058
    %v1060 = vsub.f32 1.5, %v1059
    %v1061 = vmul.f32 %v1056, %v1060
    %vm1062 = vweird.f32 %v1055
    %vm1063 = vweird.f32 %v1056
    %vm1064 = vmor %vm1062, %vm1063
    %v1065 = vsel %vm1064, %v1056, %v1061
    %v1066 = vmul.f32 %v1051, %v1065
    %v1067 = vmul.f32 %v1052, %v1065
    %v1068 = vmul.f32 %v1053, %v1065
    %v1069 = vmul.f32 %v1054, %v1065
    %1070 = vrot.lane.b32.xlu0 %v1066, 34
    %v1071 = vpop.permute.xlu0 %1070
    %1072 = vrot.lane.b32.xlu0 %v1067, 34
    %v1073 = vpop.permute.xlu0 %1072
    %1074 = vrot.lane.b32.xlu0 %v1068, 34
    %v1075 = vpop.permute.xlu0 %1074
    %1076 = vrot.lane.b32.xlu0 %v1069, 34
    %v1077 = vpop.permute.xlu0 %1076
    %v1078 = vsel %vm219, %v1075, %v1077
    %v1079 = vsel %vm219, %v1073, %v1075
    %v1080 = vsel %vm219, %v1071, %v1073
    %v1081 = vsel %vm219, %v1077, %v1071
    %v1082 = vmul.f32 %v1081, %v96
    %v1083 = vmul.f32 %v1080, %v97
    %v1084 = vmul.f32 %v1079, %v98
    %v1085 = vmul.f32 %v1078, %v99
    %v1086 = vpack.c.bf16 %v1082, %v1082
    %v1087 = vpack.c.bf16 %v1083, %v1083
    %v1088 = vpack.c.bf16 %v1084, %v1084
    %v1089 = vpack.c.bf16 %v1085, %v1085
    %1090 = vrot.lane.b32.xlu0 %v1066, 33
    %v1091 = vpop.permute.xlu0 %1090
    %1092 = vrot.lane.b32.xlu0 %v1067, 33
    %v1093 = vpop.permute.xlu0 %1092
    %1094 = vrot.lane.b32.xlu0 %v1068, 33
    %v1095 = vpop.permute.xlu0 %1094
    %1096 = vrot.lane.b32.xlu0 %v1069, 33
    %v1097 = vpop.permute.xlu0 %1096
    %v1098 = vsel %vm240, %v1095, %v1097
    %v1099 = vsel %vm240, %v1093, %v1095
    %v1100 = vsel %vm240, %v1091, %v1093
    %v1101 = vsel %vm240, %v1097, %v1091
    %v1102 = vmul.f32 %v1101, %v112
    %v1103 = vmul.f32 %v1100, %v113
    %v1104 = vmul.f32 %v1099, %v114
    %v1105 = vmul.f32 %v1098, %v115
    %v1106 = vpack.c.bf16 %v1102, %v1102
    %v1107 = vpack.c.bf16 %v1103, %v1103
    %v1108 = vpack.c.bf16 %v1104, %v1104
    %v1109 = vpack.c.bf16 %v1105, %v1105
    %v1111 = vsel %vm253, %v53, 0
    %v1114 = vsel %vm257, %v1106, 0
    %v1117 = vsel %vm257, %v1107, 0
    %v1120 = vsel %vm257, %v1108, 0
    %v1123 = vsel %vm257, %v1109, 0
    %1125 = vmatpush.bf16.msra.mxu0 0
    %1126 = vmatpush.bf16.msra.mxu0 0
    %1127 = vmatpush.bf16.msra.mxu0 0
    %1128 = vmatpush.bf16.msra.mxu0 0
    %1129 = vmatpush.bf16.msra.mxu0 0
    %1130 = vmatpush.bf16.msra.mxu0 0
    %1131 = vmatpush.bf16.msra.mxu0 0
    %1132 = vmatpush.bf16.msra.mxu0 %v1114
    %1133 = vmatmul.bf16.gmra.mxu0 %v1111
    %v1134 = vpop.f32.mrf.mxu0
    %v1135 = vadd.f32 0.0, %v1134
    %v1136 = vpop.f32.mrf.mxu0
    %1137 = vdwg.mxu0
    %1138 = vmatpush.bf16.msra.mxu0 0
    %1139 = vmatpush.bf16.msra.mxu0 0
    %1140 = vmatpush.bf16.msra.mxu0 0
    %1141 = vmatpush.bf16.msra.mxu0 0
    %1142 = vmatpush.bf16.msra.mxu0 0
    %1143 = vmatpush.bf16.msra.mxu0 0
    %1144 = vmatpush.bf16.msra.mxu0 0
    %1145 = vmatpush.bf16.msra.mxu0 %v1117
    %1146 = vmatmul.bf16.gmra.mxu0 %v1111
    %v1147 = vpop.f32.mrf.mxu0
    %v1148 = vadd.f32 0.0, %v1147
    %v1149 = vpop.f32.mrf.mxu0
    %1150 = vdwg.mxu0
    %1151 = vmatpush.bf16.msra.mxu0 0
    %1152 = vmatpush.bf16.msra.mxu0 0
    %1153 = vmatpush.bf16.msra.mxu0 0
    %1154 = vmatpush.bf16.msra.mxu0 0
    %1155 = vmatpush.bf16.msra.mxu0 0
    %1156 = vmatpush.bf16.msra.mxu0 0
    %1157 = vmatpush.bf16.msra.mxu0 0
    %1158 = vmatpush.bf16.msra.mxu0 %v1120
    %1159 = vmatmul.bf16.gmra.mxu0 %v1111
    %v1160 = vpop.f32.mrf.mxu0
    %v1161 = vadd.f32 0.0, %v1160
    %v1162 = vpop.f32.mrf.mxu0
    %1163 = vdwg.mxu0
    %1164 = vmatpush.bf16.msra.mxu0 0
    %1165 = vmatpush.bf16.msra.mxu0 0
    %1166 = vmatpush.bf16.msra.mxu0 0
    %1167 = vmatpush.bf16.msra.mxu0 0
    %1168 = vmatpush.bf16.msra.mxu0 0
    %1169 = vmatpush.bf16.msra.mxu0 0
    %1170 = vmatpush.bf16.msra.mxu0 0
    %1171 = vmatpush.bf16.msra.mxu0 %v1123
    %1172 = vmatmul.bf16.gmra.mxu0 %v1111
    %v1173 = vpop.f32.mrf.mxu0
    %v1174 = vadd.f32 0.0, %v1173
    %v1175 = vpop.f32.mrf.mxu0
    %1176 = vdwg.mxu0
    %v1178 = vsel %vm253, %v52, 0
    %v1181 = vsel %vm257, %v1086, 0
    %v1184 = vsel %vm257, %v1087, 0
    %v1187 = vsel %vm257, %v1088, 0
    %v1190 = vsel %vm257, %v1089, 0
    %1192 = vmatpush.bf16.msra.mxu0 0
    %1193 = vmatpush.bf16.msra.mxu0 0
    %1194 = vmatpush.bf16.msra.mxu0 0
    %1195 = vmatpush.bf16.msra.mxu0 0
    %1196 = vmatpush.bf16.msra.mxu0 0
    %1197 = vmatpush.bf16.msra.mxu0 0
    %1198 = vmatpush.bf16.msra.mxu0 0
    %1199 = vmatpush.bf16.msra.mxu0 %v1181
    %1200 = vmatmul.bf16.gmra.mxu0 %v1178
    %v1201 = vpop.f32.mrf.mxu0
    %v1202 = vadd.f32 %v1135, %v1201
    %v1203 = vpop.f32.mrf.mxu0
    %1204 = vdwg.mxu0
    %1205 = vmatpush.bf16.msra.mxu0 0
    %1206 = vmatpush.bf16.msra.mxu0 0
    %1207 = vmatpush.bf16.msra.mxu0 0
    %1208 = vmatpush.bf16.msra.mxu0 0
    %1209 = vmatpush.bf16.msra.mxu0 0
    %1210 = vmatpush.bf16.msra.mxu0 0
    %1211 = vmatpush.bf16.msra.mxu0 0
    %1212 = vmatpush.bf16.msra.mxu0 %v1184
    %1213 = vmatmul.bf16.gmra.mxu0 %v1178
    %v1214 = vpop.f32.mrf.mxu0
    %v1215 = vadd.f32 %v1148, %v1214
    %v1216 = vpop.f32.mrf.mxu0
    %1217 = vdwg.mxu0
    %1218 = vmatpush.bf16.msra.mxu0 0
    %1219 = vmatpush.bf16.msra.mxu0 0
    %1220 = vmatpush.bf16.msra.mxu0 0
    %1221 = vmatpush.bf16.msra.mxu0 0
    %1222 = vmatpush.bf16.msra.mxu0 0
    %1223 = vmatpush.bf16.msra.mxu0 0
    %1224 = vmatpush.bf16.msra.mxu0 0
    %1225 = vmatpush.bf16.msra.mxu0 %v1187
    %1226 = vmatmul.bf16.gmra.mxu0 %v1178
    %v1227 = vpop.f32.mrf.mxu0
    %v1228 = vadd.f32 %v1161, %v1227
    %v1229 = vpop.f32.mrf.mxu0
    %1230 = vdwg.mxu0
    %1231 = vmatpush.bf16.msra.mxu0 0
    %1232 = vmatpush.bf16.msra.mxu0 0
    %1233 = vmatpush.bf16.msra.mxu0 0
    %1234 = vmatpush.bf16.msra.mxu0 0
    %1235 = vmatpush.bf16.msra.mxu0 0
    %1236 = vmatpush.bf16.msra.mxu0 0
    %1237 = vmatpush.bf16.msra.mxu0 0
    %1238 = vmatpush.bf16.msra.mxu0 %v1190
    %1239 = vmatmul.bf16.gmra.mxu0 %v1178
    %v1240 = vpop.f32.mrf.mxu0
    %v1241 = vadd.f32 %v1174, %v1240
    %v1242 = vpop.f32.mrf.mxu0
    %1243 = vdwg.mxu0
    %1244 = vrot.lane.b32.xlu0 %v1066, 32
    %v1245 = vpop.permute.xlu0 %1244
    %1246 = vrot.lane.b32.xlu0 %v1067, 32
    %v1247 = vpop.permute.xlu0 %1246
    %1248 = vrot.lane.b32.xlu0 %v1068, 32
    %v1249 = vpop.permute.xlu0 %1248
    %1250 = vrot.lane.b32.xlu0 %v1069, 32
    %v1251 = vpop.permute.xlu0 %1250
    %v1252 = vsel %vm397, %v1249, %v1251
    %v1253 = vsel %vm397, %v1247, %v1249
    %v1254 = vsel %vm397, %v1245, %v1247
    %v1255 = vsel %vm397, %v1251, %v1245
    %v1256 = vmul.f32 %v1255, %v128
    %v1257 = vmul.f32 %v1254, %v129
    %v1258 = vmul.f32 %v1253, %v130
    %v1259 = vmul.f32 %v1252, %v131
    %v1260 = vpack.c.bf16 %v1256, %v1256
    %v1261 = vpack.c.bf16 %v1257, %v1257
    %v1262 = vpack.c.bf16 %v1258, %v1258
    %v1263 = vpack.c.bf16 %v1259, %v1259
    %v1265 = vsel %vm253, %v54, 0
    %v1268 = vsel %vm257, %v1260, 0
    %v1271 = vsel %vm257, %v1261, 0
    %v1274 = vsel %vm257, %v1262, 0
    %v1277 = vsel %vm257, %v1263, 0
    %1279 = vmatpush.bf16.msra.mxu0 0
    %1280 = vmatpush.bf16.msra.mxu0 0
    %1281 = vmatpush.bf16.msra.mxu0 0
    %1282 = vmatpush.bf16.msra.mxu0 0
    %1283 = vmatpush.bf16.msra.mxu0 0
    %1284 = vmatpush.bf16.msra.mxu0 0
    %1285 = vmatpush.bf16.msra.mxu0 0
    %1286 = vmatpush.bf16.msra.mxu0 %v1268
    %1287 = vmatmul.bf16.gmra.mxu0 %v1265
    %v1288 = vpop.f32.mrf.mxu0
    %v1289 = vadd.f32 0.0, %v1288
    %v1290 = vpop.f32.mrf.mxu0
    %1291 = vdwg.mxu0
    %1292 = vmatpush.bf16.msra.mxu0 0
    %1293 = vmatpush.bf16.msra.mxu0 0
    %1294 = vmatpush.bf16.msra.mxu0 0
    %1295 = vmatpush.bf16.msra.mxu0 0
    %1296 = vmatpush.bf16.msra.mxu0 0
    %1297 = vmatpush.bf16.msra.mxu0 0
    %1298 = vmatpush.bf16.msra.mxu0 0
    %1299 = vmatpush.bf16.msra.mxu0 %v1271
    %1300 = vmatmul.bf16.gmra.mxu0 %v1265
    %v1301 = vpop.f32.mrf.mxu0
    %v1302 = vadd.f32 0.0, %v1301
    %v1303 = vpop.f32.mrf.mxu0
    %1304 = vdwg.mxu0
    %1305 = vmatpush.bf16.msra.mxu0 0
    %1306 = vmatpush.bf16.msra.mxu0 0
    %1307 = vmatpush.bf16.msra.mxu0 0
    %1308 = vmatpush.bf16.msra.mxu0 0
    %1309 = vmatpush.bf16.msra.mxu0 0
    %1310 = vmatpush.bf16.msra.mxu0 0
    %1311 = vmatpush.bf16.msra.mxu0 0
    %1312 = vmatpush.bf16.msra.mxu0 %v1274
    %1313 = vmatmul.bf16.gmra.mxu0 %v1265
    %v1314 = vpop.f32.mrf.mxu0
    %v1315 = vadd.f32 0.0, %v1314
    %v1316 = vpop.f32.mrf.mxu0
    %1317 = vdwg.mxu0
    %1318 = vmatpush.bf16.msra.mxu0 0
    %1319 = vmatpush.bf16.msra.mxu0 0
    %1320 = vmatpush.bf16.msra.mxu0 0
    %1321 = vmatpush.bf16.msra.mxu0 0
    %1322 = vmatpush.bf16.msra.mxu0 0
    %1323 = vmatpush.bf16.msra.mxu0 0
    %1324 = vmatpush.bf16.msra.mxu0 0
    %1325 = vmatpush.bf16.msra.mxu0 %v1277
    %1326 = vmatmul.bf16.gmra.mxu0 %v1265
    %v1327 = vpop.f32.mrf.mxu0
    %v1328 = vadd.f32 0.0, %v1327
    %v1329 = vpop.f32.mrf.mxu0
    %1330 = vdwg.mxu0
    %v1331 = vadd.f32 %v1202, %v1289
    %v1332 = vadd.f32 %v1215, %v1302
    %v1333 = vadd.f32 %v1228, %v1315
    %v1334 = vadd.f32 %v1241, %v1328
    %1335 = vrot.lane.b32.xlu0 %v1066, 18
    %v1336 = vpop.permute.xlu0 %1335
    %1337 = vrot.lane.b32.xlu0 %v1067, 18
    %v1338 = vpop.permute.xlu0 %1337
    %1339 = vrot.lane.b32.xlu0 %v1068, 18
    %v1340 = vpop.permute.xlu0 %1339
    %1341 = vrot.lane.b32.xlu0 %v1069, 18
    %v1342 = vpop.permute.xlu0 %1341
    %v1343 = vsel %vm489, %v1340, %v1342
    %v1344 = vsel %vm489, %v1338, %v1340
    %v1345 = vsel %vm489, %v1336, %v1338
    %v1346 = vsel %vm489, %v1342, %v1336
    %v1347 = vmul.f32 %v1346, %v144
    %v1348 = vmul.f32 %v1345, %v145
    %v1349 = vmul.f32 %v1344, %v146
    %v1350 = vmul.f32 %v1343, %v147
    %v1351 = vpack.c.bf16 %v1347, %v1347
    %v1352 = vpack.c.bf16 %v1348, %v1348
    %v1353 = vpack.c.bf16 %v1349, %v1349
    %v1354 = vpack.c.bf16 %v1350, %v1350
    %v1356 = vsel %vm253, %v55, 0
    %v1359 = vsel %vm257, %v1351, 0
    %v1362 = vsel %vm257, %v1352, 0
    %v1365 = vsel %vm257, %v1353, 0
    %v1368 = vsel %vm257, %v1354, 0
    %1370 = vmatpush.bf16.msra.mxu0 0
    %1371 = vmatpush.bf16.msra.mxu0 0
    %1372 = vmatpush.bf16.msra.mxu0 0
    %1373 = vmatpush.bf16.msra.mxu0 0
    %1374 = vmatpush.bf16.msra.mxu0 0
    %1375 = vmatpush.bf16.msra.mxu0 0
    %1376 = vmatpush.bf16.msra.mxu0 0
    %1377 = vmatpush.bf16.msra.mxu0 %v1359
    %1378 = vmatmul.bf16.gmra.mxu0 %v1356
    %v1379 = vpop.f32.mrf.mxu0
    %v1380 = vadd.f32 0.0, %v1379
    %v1381 = vpop.f32.mrf.mxu0
    %1382 = vdwg.mxu0
    %1383 = vmatpush.bf16.msra.mxu0 0
    %1384 = vmatpush.bf16.msra.mxu0 0
    %1385 = vmatpush.bf16.msra.mxu0 0
    %1386 = vmatpush.bf16.msra.mxu0 0
    %1387 = vmatpush.bf16.msra.mxu0 0
    %1388 = vmatpush.bf16.msra.mxu0 0
    %1389 = vmatpush.bf16.msra.mxu0 0
    %1390 = vmatpush.bf16.msra.mxu0 %v1362
    %1391 = vmatmul.bf16.gmra.mxu0 %v1356
    %v1392 = vpop.f32.mrf.mxu0
    %v1393 = vadd.f32 0.0, %v1392
    %v1394 = vpop.f32.mrf.mxu0
    %1395 = vdwg.mxu0
    %1396 = vmatpush.bf16.msra.mxu0 0
    %1397 = vmatpush.bf16.msra.mxu0 0
    %1398 = vmatpush.bf16.msra.mxu0 0
    %1399 = vmatpush.bf16.msra.mxu0 0
    %1400 = vmatpush.bf16.msra.mxu0 0
    %1401 = vmatpush.bf16.msra.mxu0 0
    %1402 = vmatpush.bf16.msra.mxu0 0
    %1403 = vmatpush.bf16.msra.mxu0 %v1365
    %1404 = vmatmul.bf16.gmra.mxu0 %v1356
    %v1405 = vpop.f32.mrf.mxu0
    %v1406 = vadd.f32 0.0, %v1405
    %v1407 = vpop.f32.mrf.mxu0
    %1408 = vdwg.mxu0
    %1409 = vmatpush.bf16.msra.mxu0 0
    %1410 = vmatpush.bf16.msra.mxu0 0
    %1411 = vmatpush.bf16.msra.mxu0 0
    %1412 = vmatpush.bf16.msra.mxu0 0
    %1413 = vmatpush.bf16.msra.mxu0 0
    %1414 = vmatpush.bf16.msra.mxu0 0
    %1415 = vmatpush.bf16.msra.mxu0 0
    %1416 = vmatpush.bf16.msra.mxu0 %v1368
    %1417 = vmatmul.bf16.gmra.mxu0 %v1356
    %v1418 = vpop.f32.mrf.mxu0
    %v1419 = vadd.f32 0.0, %v1418
    %v1420 = vpop.f32.mrf.mxu0
    %1421 = vdwg.mxu0
    %v1422 = vadd.f32 %v1331, %v1380
    %v1423 = vadd.f32 %v1332, %v1393
    %v1424 = vadd.f32 %v1333, %v1406
    %v1425 = vadd.f32 %v1334, %v1419
    %1426 = vrot.lane.b32.xlu0 %v1066, 17
    %v1427 = vpop.permute.xlu0 %1426
    %1428 = vrot.lane.b32.xlu0 %v1067, 17
    %v1429 = vpop.permute.xlu0 %1428
    %1430 = vrot.lane.b32.xlu0 %v1068, 17
    %v1431 = vpop.permute.xlu0 %1430
    %1432 = vrot.lane.b32.xlu0 %v1069, 17
    %v1433 = vpop.permute.xlu0 %1432
    %v1434 = vsel %vm581, %v1431, %v1433
    %v1435 = vsel %vm581, %v1429, %v1431
    %v1436 = vsel %vm581, %v1427, %v1429
    %v1437 = vsel %vm581, %v1433, %v1427
    %v1438 = vmul.f32 %v1437, %v156
    %v1439 = vmul.f32 %v1436, %v157
    %v1440 = vmul.f32 %v1435, %v158
    %v1441 = vmul.f32 %v1434, %v159
    %v1442 = vpack.c.bf16 %v1438, %v1438
    %v1443 = vpack.c.bf16 %v1439, %v1439
    %v1444 = vpack.c.bf16 %v1440, %v1440
    %v1445 = vpack.c.bf16 %v1441, %v1441
    %v1447 = vsel %vm253, %v56, 0
    %v1450 = vsel %vm257, %v1442, 0
    %v1453 = vsel %vm257, %v1443, 0
    %v1456 = vsel %vm257, %v1444, 0
    %v1459 = vsel %vm257, %v1445, 0
    %1461 = vmatpush.bf16.msra.mxu0 0
    %1462 = vmatpush.bf16.msra.mxu0 0
    %1463 = vmatpush.bf16.msra.mxu0 0
    %1464 = vmatpush.bf16.msra.mxu0 0
    %1465 = vmatpush.bf16.msra.mxu0 0
    %1466 = vmatpush.bf16.msra.mxu0 0
    %1467 = vmatpush.bf16.msra.mxu0 0
    %1468 = vmatpush.bf16.msra.mxu0 %v1450
    %1469 = vmatmul.bf16.gmra.mxu0 %v1447
    %v1470 = vpop.f32.mrf.mxu0
    %v1471 = vadd.f32 0.0, %v1470
    %v1472 = vpop.f32.mrf.mxu0
    %1473 = vdwg.mxu0
    %1474 = vmatpush.bf16.msra.mxu0 0
    %1475 = vmatpush.bf16.msra.mxu0 0
    %1476 = vmatpush.bf16.msra.mxu0 0
    %1477 = vmatpush.bf16.msra.mxu0 0
    %1478 = vmatpush.bf16.msra.mxu0 0
    %1479 = vmatpush.bf16.msra.mxu0 0
    %1480 = vmatpush.bf16.msra.mxu0 0
    %1481 = vmatpush.bf16.msra.mxu0 %v1453
    %1482 = vmatmul.bf16.gmra.mxu0 %v1447
    %v1483 = vpop.f32.mrf.mxu0
    %v1484 = vadd.f32 0.0, %v1483
    %v1485 = vpop.f32.mrf.mxu0
    %1486 = vdwg.mxu0
    %1487 = vmatpush.bf16.msra.mxu0 0
    %1488 = vmatpush.bf16.msra.mxu0 0
    %1489 = vmatpush.bf16.msra.mxu0 0
    %1490 = vmatpush.bf16.msra.mxu0 0
    %1491 = vmatpush.bf16.msra.mxu0 0
    %1492 = vmatpush.bf16.msra.mxu0 0
    %1493 = vmatpush.bf16.msra.mxu0 0
    %1494 = vmatpush.bf16.msra.mxu0 %v1456
    %1495 = vmatmul.bf16.gmra.mxu0 %v1447
    %v1496 = vpop.f32.mrf.mxu0
    %v1497 = vadd.f32 0.0, %v1496
    %v1498 = vpop.f32.mrf.mxu0
    %1499 = vdwg.mxu0
    %1500 = vmatpush.bf16.msra.mxu0 0
    %1501 = vmatpush.bf16.msra.mxu0 0
    %1502 = vmatpush.bf16.msra.mxu0 0
    %1503 = vmatpush.bf16.msra.mxu0 0
    %1504 = vmatpush.bf16.msra.mxu0 0
    %1505 = vmatpush.bf16.msra.mxu0 0
    %1506 = vmatpush.bf16.msra.mxu0 0
    %1507 = vmatpush.bf16.msra.mxu0 %v1459
    %1508 = vmatmul.bf16.gmra.mxu0 %v1447
    %v1509 = vpop.f32.mrf.mxu0
    %v1510 = vadd.f32 0.0, %v1509
    %v1511 = vpop.f32.mrf.mxu0
    %1512 = vdwg.mxu0
    %v1513 = vadd.f32 %v1422, %v1471
    %v1514 = vadd.f32 %v1423, %v1484
    %v1515 = vadd.f32 %v1424, %v1497
    %v1516 = vadd.f32 %v1425, %v1510
    %1517 = vrot.lane.b32.xlu0 %v1066, 16
    %v1518 = vpop.permute.xlu0 %1517
    %1519 = vrot.lane.b32.xlu0 %v1067, 16
    %v1520 = vpop.permute.xlu0 %1519
    %1521 = vrot.lane.b32.xlu0 %v1068, 16
    %v1522 = vpop.permute.xlu0 %1521
    %1523 = vrot.lane.b32.xlu0 %v1069, 16
    %v1524 = vpop.permute.xlu0 %1523
    %v1525 = vsel %vm673, %v1522, %v1524
    %v1526 = vsel %vm673, %v1520, %v1522
    %v1527 = vsel %vm673, %v1518, %v1520
    %v1528 = vsel %vm673, %v1524, %v1518
    %v1529 = vmul.f32 %v1528, %v168
    %v1530 = vmul.f32 %v1527, %v169
    %v1531 = vmul.f32 %v1526, %v170
    %v1532 = vmul.f32 %v1525, %v171
    %v1533 = vpack.c.bf16 %v1529, %v1529
    %v1534 = vpack.c.bf16 %v1530, %v1530
    %v1535 = vpack.c.bf16 %v1531, %v1531
    %v1536 = vpack.c.bf16 %v1532, %v1532
    %v1538 = vsel %vm253, %v57, 0
    %v1541 = vsel %vm257, %v1533, 0
    %v1544 = vsel %vm257, %v1534, 0
    %v1547 = vsel %vm257, %v1535, 0
    %v1550 = vsel %vm257, %v1536, 0
    %1552 = vmatpush.bf16.msra.mxu0 0
    %1553 = vmatpush.bf16.msra.mxu0 0
    %1554 = vmatpush.bf16.msra.mxu0 0
    %1555 = vmatpush.bf16.msra.mxu0 0
    %1556 = vmatpush.bf16.msra.mxu0 0
    %1557 = vmatpush.bf16.msra.mxu0 0
    %1558 = vmatpush.bf16.msra.mxu0 0
    %1559 = vmatpush.bf16.msra.mxu0 %v1541
    %1560 = vmatmul.bf16.gmra.mxu0 %v1538
    %v1561 = vpop.f32.mrf.mxu0
    %v1562 = vadd.f32 0.0, %v1561
    %v1563 = vpop.f32.mrf.mxu0
    %1564 = vdwg.mxu0
    %1565 = vmatpush.bf16.msra.mxu0 0
    %1566 = vmatpush.bf16.msra.mxu0 0
    %1567 = vmatpush.bf16.msra.mxu0 0
    %1568 = vmatpush.bf16.msra.mxu0 0
    %1569 = vmatpush.bf16.msra.mxu0 0
    %1570 = vmatpush.bf16.msra.mxu0 0
    %1571 = vmatpush.bf16.msra.mxu0 0
    %1572 = vmatpush.bf16.msra.mxu0 %v1544
    %1573 = vmatmul.bf16.gmra.mxu0 %v1538
    %v1574 = vpop.f32.mrf.mxu0
    %v1575 = vadd.f32 0.0, %v1574
    %v1576 = vpop.f32.mrf.mxu0
    %1577 = vdwg.mxu0
    %1578 = vmatpush.bf16.msra.mxu0 0
    %1579 = vmatpush.bf16.msra.mxu0 0
    %1580 = vmatpush.bf16.msra.mxu0 0
    %1581 = vmatpush.bf16.msra.mxu0 0
    %1582 = vmatpush.bf16.msra.mxu0 0
    %1583 = vmatpush.bf16.msra.mxu0 0
    %1584 = vmatpush.bf16.msra.mxu0 0
    %1585 = vmatpush.bf16.msra.mxu0 %v1547
    %1586 = vmatmul.bf16.gmra.mxu0 %v1538
    %v1587 = vpop.f32.mrf.mxu0
    %v1588 = vadd.f32 0.0, %v1587
    %v1589 = vpop.f32.mrf.mxu0
    %1590 = vdwg.mxu0
    %1591 = vmatpush.bf16.msra.mxu0 0
    %1592 = vmatpush.bf16.msra.mxu0 0
    %1593 = vmatpush.bf16.msra.mxu0 0
    %1594 = vmatpush.bf16.msra.mxu0 0
    %1595 = vmatpush.bf16.msra.mxu0 0
    %1596 = vmatpush.bf16.msra.mxu0 0
    %1597 = vmatpush.bf16.msra.mxu0 0
    %1598 = vmatpush.bf16.msra.mxu0 %v1550
    %1599 = vmatmul.bf16.gmra.mxu0 %v1538
    %v1600 = vpop.f32.mrf.mxu0
    %v1601 = vadd.f32 0.0, %v1600
    %v1602 = vpop.f32.mrf.mxu0
    %1603 = vdwg.mxu0
    %v1604 = vadd.f32 %v1513, %v1562
    %v1605 = vadd.f32 %v1514, %v1575
    %v1606 = vadd.f32 %v1515, %v1588
    %v1607 = vadd.f32 %v1516, %v1601
    %1608 = vrot.lane.b32.xlu0 %v1066, 2
    %v1609 = vpop.permute.xlu0 %1608
    %1610 = vrot.lane.b32.xlu0 %v1067, 2
    %v1611 = vpop.permute.xlu0 %1610
    %1612 = vrot.lane.b32.xlu0 %v1068, 2
    %v1613 = vpop.permute.xlu0 %1612
    %1614 = vrot.lane.b32.xlu0 %v1069, 2
    %v1615 = vpop.permute.xlu0 %1614
    %v1616 = vsel %vm765, %v1613, %v1615
    %v1617 = vsel %vm765, %v1611, %v1613
    %v1618 = vsel %vm765, %v1609, %v1611
    %v1619 = vsel %vm765, %v1615, %v1609
    %v1620 = vmul.f32 %v1619, %v184
    %v1621 = vmul.f32 %v1618, %v185
    %v1622 = vmul.f32 %v1617, %v186
    %v1623 = vmul.f32 %v1616, %v187
    %v1624 = vpack.c.bf16 %v1620, %v1620
    %v1625 = vpack.c.bf16 %v1621, %v1621
    %v1626 = vpack.c.bf16 %v1622, %v1622
    %v1627 = vpack.c.bf16 %v1623, %v1623
    %v1629 = vsel %vm253, %v58, 0
    %v1632 = vsel %vm257, %v1624, 0
    %v1635 = vsel %vm257, %v1625, 0
    %v1638 = vsel %vm257, %v1626, 0
    %v1641 = vsel %vm257, %v1627, 0
    %1643 = vmatpush.bf16.msra.mxu0 0
    %1644 = vmatpush.bf16.msra.mxu0 0
    %1645 = vmatpush.bf16.msra.mxu0 0
    %1646 = vmatpush.bf16.msra.mxu0 0
    %1647 = vmatpush.bf16.msra.mxu0 0
    %1648 = vmatpush.bf16.msra.mxu0 0
    %1649 = vmatpush.bf16.msra.mxu0 0
    %1650 = vmatpush.bf16.msra.mxu0 %v1632
    %1651 = vmatmul.bf16.gmra.mxu0 %v1629
    %v1652 = vpop.f32.mrf.mxu0
    %v1653 = vadd.f32 0.0, %v1652
    %v1654 = vpop.f32.mrf.mxu0
    %1655 = vdwg.mxu0
    %1656 = vmatpush.bf16.msra.mxu0 0
    %1657 = vmatpush.bf16.msra.mxu0 0
    %1658 = vmatpush.bf16.msra.mxu0 0
    %1659 = vmatpush.bf16.msra.mxu0 0
    %1660 = vmatpush.bf16.msra.mxu0 0
    %1661 = vmatpush.bf16.msra.mxu0 0
    %1662 = vmatpush.bf16.msra.mxu0 0
    %1663 = vmatpush.bf16.msra.mxu0 %v1635
    %1664 = vmatmul.bf16.gmra.mxu0 %v1629
    %v1665 = vpop.f32.mrf.mxu0
    %v1666 = vadd.f32 0.0, %v1665
    %v1667 = vpop.f32.mrf.mxu0
    %1668 = vdwg.mxu0
    %1669 = vmatpush.bf16.msra.mxu0 0
    %1670 = vmatpush.bf16.msra.mxu0 0
    %1671 = vmatpush.bf16.msra.mxu0 0
    %1672 = vmatpush.bf16.msra.mxu0 0
    %1673 = vmatpush.bf16.msra.mxu0 0
    %1674 = vmatpush.bf16.msra.mxu0 0
    %1675 = vmatpush.bf16.msra.mxu0 0
    %1676 = vmatpush.bf16.msra.mxu0 %v1638
    %1677 = vmatmul.bf16.gmra.mxu0 %v1629
    %v1678 = vpop.f32.mrf.mxu0
    %v1679 = vadd.f32 0.0, %v1678
    %v1680 = vpop.f32.mrf.mxu0
    %1681 = vdwg.mxu0
    %1682 = vmatpush.bf16.msra.mxu0 0
    %1683 = vmatpush.bf16.msra.mxu0 0
    %1684 = vmatpush.bf16.msra.mxu0 0
    %1685 = vmatpush.bf16.msra.mxu0 0
    %1686 = vmatpush.bf16.msra.mxu0 0
    %1687 = vmatpush.bf16.msra.mxu0 0
    %1688 = vmatpush.bf16.msra.mxu0 0
    %1689 = vmatpush.bf16.msra.mxu0 %v1641
    %1690 = vmatmul.bf16.gmra.mxu0 %v1629
    %v1691 = vpop.f32.mrf.mxu0
    %v1692 = vadd.f32 0.0, %v1691
    %v1693 = vpop.f32.mrf.mxu0
    %1694 = vdwg.mxu0
    %v1695 = vadd.f32 %v1604, %v1653
    %v1696 = vadd.f32 %v1605, %v1666
    %v1697 = vadd.f32 %v1606, %v1679
    %v1698 = vadd.f32 %v1607, %v1692
    %1699 = vrot.lane.b32.xlu0 %v1066, 1
    %v1700 = vpop.permute.xlu0 %1699
    %1701 = vrot.lane.b32.xlu0 %v1067, 1
    %v1702 = vpop.permute.xlu0 %1701
    %1703 = vrot.lane.b32.xlu0 %v1068, 1
    %v1704 = vpop.permute.xlu0 %1703
    %1705 = vrot.lane.b32.xlu0 %v1069, 1
    %v1706 = vpop.permute.xlu0 %1705
    %v1707 = vsel %vm857, %v1704, %v1706
    %v1708 = vsel %vm857, %v1702, %v1704
    %v1709 = vsel %vm857, %v1700, %v1702
    %v1710 = vsel %vm857, %v1706, %v1700
    %v1711 = vmul.f32 %v1710, %v196
    %v1712 = vmul.f32 %v1709, %v197
    %v1713 = vmul.f32 %v1708, %v198
    %v1714 = vmul.f32 %v1707, %v199
    %v1715 = vpack.c.bf16 %v1711, %v1711
    %v1716 = vpack.c.bf16 %v1712, %v1712
    %v1717 = vpack.c.bf16 %v1713, %v1713
    %v1718 = vpack.c.bf16 %v1714, %v1714
    %v1720 = vsel %vm253, %v59, 0
    %v1723 = vsel %vm257, %v1715, 0
    %v1726 = vsel %vm257, %v1716, 0
    %v1729 = vsel %vm257, %v1717, 0
    %v1732 = vsel %vm257, %v1718, 0
    %1734 = vmatpush.bf16.msra.mxu0 0
    %1735 = vmatpush.bf16.msra.mxu0 0
    %1736 = vmatpush.bf16.msra.mxu0 0
    %1737 = vmatpush.bf16.msra.mxu0 0
    %1738 = vmatpush.bf16.msra.mxu0 0
    %1739 = vmatpush.bf16.msra.mxu0 0
    %1740 = vmatpush.bf16.msra.mxu0 0
    %1741 = vmatpush.bf16.msra.mxu0 %v1723
    %1742 = vmatmul.bf16.gmra.mxu0 %v1720
    %v1743 = vpop.f32.mrf.mxu0
    %v1744 = vadd.f32 0.0, %v1743
    %v1745 = vpop.f32.mrf.mxu0
    %1746 = vdwg.mxu0
    %1747 = vmatpush.bf16.msra.mxu0 0
    %1748 = vmatpush.bf16.msra.mxu0 0
    %1749 = vmatpush.bf16.msra.mxu0 0
    %1750 = vmatpush.bf16.msra.mxu0 0
    %1751 = vmatpush.bf16.msra.mxu0 0
    %1752 = vmatpush.bf16.msra.mxu0 0
    %1753 = vmatpush.bf16.msra.mxu0 0
    %1754 = vmatpush.bf16.msra.mxu0 %v1726
    %1755 = vmatmul.bf16.gmra.mxu0 %v1720
    %v1756 = vpop.f32.mrf.mxu0
    %v1757 = vadd.f32 0.0, %v1756
    %v1758 = vpop.f32.mrf.mxu0
    %1759 = vdwg.mxu0
    %1760 = vmatpush.bf16.msra.mxu0 0
    %1761 = vmatpush.bf16.msra.mxu0 0
    %1762 = vmatpush.bf16.msra.mxu0 0
    %1763 = vmatpush.bf16.msra.mxu0 0
    %1764 = vmatpush.bf16.msra.mxu0 0
    %1765 = vmatpush.bf16.msra.mxu0 0
    %1766 = vmatpush.bf16.msra.mxu0 0
    %1767 = vmatpush.bf16.msra.mxu0 %v1729
    %1768 = vmatmul.bf16.gmra.mxu0 %v1720
    %v1769 = vpop.f32.mrf.mxu0
    %v1770 = vadd.f32 0.0, %v1769
    %v1771 = vpop.f32.mrf.mxu0
    %1772 = vdwg.mxu0
    %1773 = vmatpush.bf16.msra.mxu0 0
    %1774 = vmatpush.bf16.msra.mxu0 0
    %1775 = vmatpush.bf16.msra.mxu0 0
    %1776 = vmatpush.bf16.msra.mxu0 0
    %1777 = vmatpush.bf16.msra.mxu0 0
    %1778 = vmatpush.bf16.msra.mxu0 0
    %1779 = vmatpush.bf16.msra.mxu0 0
    %1780 = vmatpush.bf16.msra.mxu0 %v1732
    %1781 = vmatmul.bf16.gmra.mxu0 %v1720
    %v1782 = vpop.f32.mrf.mxu0
    %v1783 = vadd.f32 0.0, %v1782
    %v1784 = vpop.f32.mrf.mxu0
    %1785 = vdwg.mxu0
    %v1786 = vadd.f32 %v1695, %v1744
    %v1787 = vadd.f32 %v1696, %v1757
    %v1788 = vadd.f32 %v1697, %v1770
    %v1789 = vadd.f32 %v1698, %v1783
    %v1790 = vpack.c.bf16 %v1066, %v1066
    %v1791 = vpack.c.bf16 %v1067, %v1067
    %v1792 = vpack.c.bf16 %v1068, %v1068
    %v1793 = vpack.c.bf16 %v1069, %v1069
    %v1795 = vsel %vm253, %v60, 0
    %v1798 = vsel %vm257, %v1790, 0
    %v1801 = vsel %vm257, %v1791, 0
    %v1804 = vsel %vm257, %v1792, 0
    %v1807 = vsel %vm257, %v1793, 0
    %1809 = vmatpush.bf16.msra.mxu0 0
    %1810 = vmatpush.bf16.msra.mxu0 0
    %1811 = vmatpush.bf16.msra.mxu0 0
    %1812 = vmatpush.bf16.msra.mxu0 0
    %1813 = vmatpush.bf16.msra.mxu0 0
    %1814 = vmatpush.bf16.msra.mxu0 0
    %1815 = vmatpush.bf16.msra.mxu0 0
    %1816 = vmatpush.bf16.msra.mxu0 %v1798
    %1817 = vmatmul.bf16.gmra.mxu0 %v1795
    %v1818 = vpop.f32.mrf.mxu0
    %v1819 = vadd.f32 0.0, %v1818
    %v1820 = vpop.f32.mrf.mxu0
    %1821 = vdwg.mxu0
    %1822 = vmatpush.bf16.msra.mxu0 0
    %1823 = vmatpush.bf16.msra.mxu0 0
    %1824 = vmatpush.bf16.msra.mxu0 0
    %1825 = vmatpush.bf16.msra.mxu0 0
    %1826 = vmatpush.bf16.msra.mxu0 0
    %1827 = vmatpush.bf16.msra.mxu0 0
    %1828 = vmatpush.bf16.msra.mxu0 0
    %1829 = vmatpush.bf16.msra.mxu0 %v1801
    %1830 = vmatmul.bf16.gmra.mxu0 %v1795
    %v1831 = vpop.f32.mrf.mxu0
    %v1832 = vadd.f32 0.0, %v1831
    %v1833 = vpop.f32.mrf.mxu0
    %1834 = vdwg.mxu0
    %1835 = vmatpush.bf16.msra.mxu0 0
    %1836 = vmatpush.bf16.msra.mxu0 0
    %1837 = vmatpush.bf16.msra.mxu0 0
    %1838 = vmatpush.bf16.msra.mxu0 0
    %1839 = vmatpush.bf16.msra.mxu0 0
    %1840 = vmatpush.bf16.msra.mxu0 0
    %1841 = vmatpush.bf16.msra.mxu0 0
    %1842 = vmatpush.bf16.msra.mxu0 %v1804
    %1843 = vmatmul.bf16.gmra.mxu0 %v1795
    %v1844 = vpop.f32.mrf.mxu0
    %v1845 = vadd.f32 0.0, %v1844
    %v1846 = vpop.f32.mrf.mxu0
    %1847 = vdwg.mxu0
    %1848 = vmatpush.bf16.msra.mxu0 0
    %1849 = vmatpush.bf16.msra.mxu0 0
    %1850 = vmatpush.bf16.msra.mxu0 0
    %1851 = vmatpush.bf16.msra.mxu0 0
    %1852 = vmatpush.bf16.msra.mxu0 0
    %1853 = vmatpush.bf16.msra.mxu0 0
    %1854 = vmatpush.bf16.msra.mxu0 0
    %1855 = vmatpush.bf16.msra.mxu0 %v1807
    %1856 = vmatmul.bf16.gmra.mxu0 %v1795
    %v1857 = vpop.f32.mrf.mxu0
    %v1858 = vadd.f32 0.0, %v1857
    %v1859 = vpop.f32.mrf.mxu0
    %1860 = vdwg.mxu0
    %v1861 = vadd.f32 %v1786, %v1819
    %v1862 = vadd.f32 %v1787, %v1832
    %v1863 = vadd.f32 %v1788, %v1845
    %v1864 = vadd.f32 %v1789, %v1858
    %vm1865 = vcmp.gt.f32.partialorder %v1861, 0.0
    %vm1866 = vcmp.gt.f32.partialorder %v1862, 0.0
    %vm1867 = vcmp.gt.f32.partialorder %v1863, 0.0
    %vm1868 = vcmp.gt.f32.partialorder %v1864, 0.0
    %1870 = vset.pattern.permute.xlu0 0
    %1871 = vperm.xlu0 %1870, %v62
    %v1872 = vpop.permute.xlu0 %1871
    %v1874 = vmul.f32 %v1872, %v1861
    %v1875 = vmul.f32 %v1872, %v1862
    %v1876 = vmul.f32 %v1872, %v1863
    %v1877 = vmul.f32 %v1872, %v1864
    %v1878 = vsel %vm1865, %v1861, %v1874
    %v1879 = vsel %vm1866, %v1862, %v1875
    %v1880 = vsel %vm1867, %v1863, %v1876
    %v1881 = vsel %vm1868, %v1864, %v1877
    %v1882 = vadd.f32 %v1878, %v1879
    %v1883 = vadd.f32 %v1882, %v1880
    %v1884 = vadd.f32 %v1883, %v1881
    %1885 = vadd.xlane.f32.xlu0 %v1884
    %v1886 = vpop.xlane.xlu0 %1885
    %v1887 = vmul.f32 %v1886, 0.001953125
    %v1888 = vmul.f32 %v1878, %v1878
    %v1889 = vmul.f32 %v1879, %v1879
    %v1890 = vmul.f32 %v1880, %v1880
    %v1891 = vmul.f32 %v1881, %v1881
    %v1892 = vadd.f32 %v1888, %v1889
    %v1893 = vadd.f32 %v1892, %v1890
    %v1894 = vadd.f32 %v1893, %v1891
    %1895 = vadd.xlane.f32.xlu0 %v1894
    %v1896 = vpop.xlane.xlu0 %1895
    %v1897 = vmul.f32 %v1896, 0.001953125
    %v1898 = vmul.f32 %v1887, %v1887
    %v1899 = vsub.f32 %v1897, %v1898
    %v1900 = vsub.f32 %v1878, %v1887
    %v1901 = vsub.f32 %v1879, %v1887
    %v1902 = vsub.f32 %v1880, %v1887
    %v1903 = vsub.f32 %v1881, %v1887
    %v1904 = vadd.f32 %v1899, 1e-05
    %v1905 = vrsqrt.pop %v1904
    %v1906 = vmul.f32 %v1905, %v1904
    %v1907 = vmul.f32 %v1906, %v1905
    %v1908 = vmul.f32 0.5, %v1907
    %v1909 = vsub.f32 1.5, %v1908
    %v1910 = vmul.f32 %v1905, %v1909
    %vm1911 = vweird.f32 %v1904
    %vm1912 = vweird.f32 %v1905
    %vm1913 = vmor %vm1911, %vm1912
    %v1914 = vsel %vm1913, %v1905, %v1910
    %v1915 = vmul.f32 %v1900, %v1914
    %v1916 = vmul.f32 %v1901, %v1914
    %v1917 = vmul.f32 %v1902, %v1914
    %v1918 = vmul.f32 %v1903, %v1914
    %v1919 = vadd.f32 %v1915, %v1066
    %v1920 = vadd.f32 %v1916, %v1067
    %v1921 = vadd.f32 %v1917, %v1068
    %v1922 = vadd.f32 %v1918, %v1069
    %v1923 = vmul.f32 %v1919, %v1919
    %v1924 = vmul.f32 %v1920, %v1920
    %v1925 = vmul.f32 %v1921, %v1921
    %v1926 = vmul.f32 %v1922, %v1922
    %v1927 = vrot.slane %v1923, 7
    %v1928 = vrot.slane %v1924, 7
    %v1929 = vrot.slane %v1925, 7
    %v1930 = vrot.slane %v1926, 7
    %v1931 = vmul.f32 %v1927, %v204
    %v1932 = vmul.f32 %v1928, %v204
    %v1933 = vmul.f32 %v1929, %v204
    %v1934 = vmul.f32 %v1930, %v204
    %v1935 = vadd.f32 %v1923, %v1931
    %v1936 = vadd.f32 %v1924, %v1932
    %v1937 = vadd.f32 %v1925, %v1933
    %v1938 = vadd.f32 %v1926, %v1934
    %v1939 = vmul.f32 %v1935, 5e-05
    %v1940 = vmul.f32 %v1936, 5e-05
    %v1941 = vmul.f32 %v1937, 5e-05
    %v1942 = vmul.f32 %v1938, 5e-05
    %v1943 = vadd.f32 %v1939, 1.0
    %v1944 = vadd.f32 %v1940, 1.0
    %v1945 = vadd.f32 %v1941, 1.0
    %v1946 = vadd.f32 %v1942, 1.0
    %v1947 = vrsqrt.pop %v1943
    %v1948 = vmul.f32 %v1947, %v1943
    %v1949 = vmul.f32 %v1948, %v1947
    %v1950 = vmul.f32 0.5, %v1949
    %v1951 = vsub.f32 1.5, %v1950
    %v1952 = vmul.f32 %v1947, %v1951
    %vm1953 = vweird.f32 %v1943
    %vm1954 = vweird.f32 %v1947
    %vm1955 = vmor %vm1953, %vm1954
    %v1956 = vsel %vm1955, %v1947, %v1952
    %v1957 = vrsqrt.pop %v1944
    %v1958 = vmul.f32 %v1957, %v1944
    %v1959 = vmul.f32 %v1958, %v1957
    %v1960 = vmul.f32 0.5, %v1959
    %v1961 = vsub.f32 1.5, %v1960
    %v1962 = vmul.f32 %v1957, %v1961
    %vm1963 = vweird.f32 %v1944
    %vm1964 = vweird.f32 %v1957
    %vm1965 = vmor %vm1963, %vm1964
    %v1966 = vsel %vm1965, %v1957, %v1962
    %v1967 = vrsqrt.pop %v1945
    %v1968 = vmul.f32 %v1967, %v1945
    %v1969 = vmul.f32 %v1968, %v1967
    %v1970 = vmul.f32 0.5, %v1969
    %v1971 = vsub.f32 1.5, %v1970
    %v1972 = vmul.f32 %v1967, %v1971
    %vm1973 = vweird.f32 %v1945
    %vm1974 = vweird.f32 %v1967
    %vm1975 = vmor %vm1973, %vm1974
    %v1976 = vsel %vm1975, %v1967, %v1972
    %v1977 = vrsqrt.pop %v1946
    %v1978 = vmul.f32 %v1977, %v1946
    %v1979 = vmul.f32 %v1978, %v1977
    %v1980 = vmul.f32 0.5, %v1979
    %v1981 = vsub.f32 1.5, %v1980
    %v1982 = vmul.f32 %v1977, %v1981
    %vm1983 = vweird.f32 %v1946
    %vm1984 = vweird.f32 %v1977
    %vm1985 = vmor %vm1983, %vm1984
    %v1986 = vsel %vm1985, %v1977, %v1982
    %v1987 = vrsqrt.pop %v1956
    %v1988 = vmul.f32 %v1987, %v1956
    %v1989 = vmul.f32 %v1988, %v1987
    %v1990 = vmul.f32 0.5, %v1989
    %v1991 = vsub.f32 1.5, %v1990
    %v1992 = vmul.f32 %v1987, %v1991
    %v1993 = vmul.f32 %v1956, %v1992
    %vm1994 = vcmp.eq.f32.partialorder %v1956, inf
    %v1995 = vsel %vm1994, %v1956, %v1993
    %vm1996 = vcmp.eq.f32.partialorder %v1956, 0.0
    %v1997 = vand.u32 %v1956, 2147483648
    %v1998 = vsel %vm1996, %v1997, %v1995
    %v1999 = vrsqrt.pop %v1966
    %v2000 = vmul.f32 %v1999, %v1966
    %v2001 = vmul.f32 %v2000, %v1999
    %v2002 = vmul.f32 0.5, %v2001
    %v2003 = vsub.f32 1.5, %v2002
    %v2004 = vmul.f32 %v1999, %v2003
    %v2005 = vmul.f32 %v1966, %v2004
    %vm2006 = vcmp.eq.f32.partialorder %v1966, inf
    %v2007 = vsel %vm2006, %v1966, %v2005
    %vm2008 = vcmp.eq.f32.partialorder %v1966, 0.0
    %v2009 = vand.u32 %v1966, 2147483648
    %v2010 = vsel %vm2008, %v2009, %v2007
    %v2011 = vrsqrt.pop %v1976
    %v2012 = vmul.f32 %v2011, %v1976
    %v2013 = vmul.f32 %v2012, %v2011
    %v2014 = vmul.f32 0.5, %v2013
    %v2015 = vsub.f32 1.5, %v2014
    %v2016 = vmul.f32 %v2011, %v2015
    %v2017 = vmul.f32 %v1976, %v2016
    %vm2018 = vcmp.eq.f32.partialorder %v1976, inf
    %v2019 = vsel %vm2018, %v1976, %v2017
    %vm2020 = vcmp.eq.f32.partialorder %v1976, 0.0
    %v2021 = vand.u32 %v1976, 2147483648
    %v2022 = vsel %vm2020, %v2021, %v2019
    %v2023 = vrsqrt.pop %v1986
    %v2024 = vmul.f32 %v2023, %v1986
    %v2025 = vmul.f32 %v2024, %v2023
    %v2026 = vmul.f32 0.5, %v2025
    %v2027 = vsub.f32 1.5, %v2026
    %v2028 = vmul.f32 %v2023, %v2027
    %v2029 = vmul.f32 %v1986, %v2028
    %vm2030 = vcmp.eq.f32.partialorder %v1986, inf
    %v2031 = vsel %vm2030, %v1986, %v2029
    %vm2032 = vcmp.eq.f32.partialorder %v1986, 0.0
    %v2033 = vand.u32 %v1986, 2147483648
    %v2034 = vsel %vm2032, %v2033, %v2031
    %v2035 = vmul.f32 %v1956, %v1998
    %v2036 = vmul.f32 %v1966, %v2010
    %v2037 = vmul.f32 %v1976, %v2022
    %v2038 = vmul.f32 %v1986, %v2034
    %v2039 = vmul.f32 %v1919, %v2035
    %v2040 = vmul.f32 %v1920, %v2036
    %v2041 = vmul.f32 %v1921, %v2037
    %v2042 = vmul.f32 %v1922, %v2038
    %2043 = vrot.lane.b32.xlu0 %v2039, 34
    %v2044 = vpop.permute.xlu0 %2043
    %2045 = vrot.lane.b32.xlu0 %v2040, 34
    %v2046 = vpop.permute.xlu0 %2045
    %2047 = vrot.lane.b32.xlu0 %v2041, 34
    %v2048 = vpop.permute.xlu0 %2047
    %2049 = vrot.lane.b32.xlu0 %v2042, 34
    %v2050 = vpop.permute.xlu0 %2049
    %v2051 = vsel %vm219, %v2048, %v2050
    %v2052 = vsel %vm219, %v2046, %v2048
    %v2053 = vsel %vm219, %v2044, %v2046
    %v2054 = vsel %vm219, %v2050, %v2044
    %v2055 = vmul.f32 %v2054, %v96
    %v2056 = vmul.f32 %v2053, %v97
    %v2057 = vmul.f32 %v2052, %v98
    %v2058 = vmul.f32 %v2051, %v99
    %v2059 = vpack.c.bf16 %v2055, %v2055
    %v2060 = vpack.c.bf16 %v2056, %v2056
    %v2061 = vpack.c.bf16 %v2057, %v2057
    %v2062 = vpack.c.bf16 %v2058, %v2058
    %2063 = vrot.lane.b32.xlu0 %v2039, 33
    %v2064 = vpop.permute.xlu0 %2063
    %2065 = vrot.lane.b32.xlu0 %v2040, 33
    %v2066 = vpop.permute.xlu0 %2065
    %2067 = vrot.lane.b32.xlu0 %v2041, 33
    %v2068 = vpop.permute.xlu0 %2067
    %2069 = vrot.lane.b32.xlu0 %v2042, 33
    %v2070 = vpop.permute.xlu0 %2069
    %v2071 = vsel %vm240, %v2068, %v2070
    %v2072 = vsel %vm240, %v2066, %v2068
    %v2073 = vsel %vm240, %v2064, %v2066
    %v2074 = vsel %vm240, %v2070, %v2064
    %v2075 = vmul.f32 %v2074, %v112
    %v2076 = vmul.f32 %v2073, %v113
    %v2077 = vmul.f32 %v2072, %v114
    %v2078 = vmul.f32 %v2071, %v115
    %v2079 = vpack.c.bf16 %v2075, %v2075
    %v2080 = vpack.c.bf16 %v2076, %v2076
    %v2081 = vpack.c.bf16 %v2077, %v2077
    %v2082 = vpack.c.bf16 %v2078, %v2078
    %v2084 = vsel %vm257, %v2079, 0
    %v2087 = vsel %vm257, %v2080, 0
    %v2090 = vsel %vm257, %v2081, 0
    %v2093 = vsel %vm257, %v2082, 0
    %2095 = vmatpush.bf16.msra.mxu0 0
    %2096 = vmatpush.bf16.msra.mxu0 0
    %2097 = vmatpush.bf16.msra.mxu0 0
    %2098 = vmatpush.bf16.msra.mxu0 0
    %2099 = vmatpush.bf16.msra.mxu0 0
    %2100 = vmatpush.bf16.msra.mxu0 0
    %2101 = vmatpush.bf16.msra.mxu0 0
    %2102 = vmatpush.bf16.msra.mxu0 %v2084
    %2103 = vmatmul.bf16.gmra.mxu0 %v1111
    %v2104 = vpop.f32.mrf.mxu0
    %v2105 = vadd.f32 0.0, %v2104
    %v2106 = vpop.f32.mrf.mxu0
    %2107 = vdwg.mxu0
    %2108 = vmatpush.bf16.msra.mxu0 0
    %2109 = vmatpush.bf16.msra.mxu0 0
    %2110 = vmatpush.bf16.msra.mxu0 0
    %2111 = vmatpush.bf16.msra.mxu0 0
    %2112 = vmatpush.bf16.msra.mxu0 0
    %2113 = vmatpush.bf16.msra.mxu0 0
    %2114 = vmatpush.bf16.msra.mxu0 0
    %2115 = vmatpush.bf16.msra.mxu0 %v2087
    %2116 = vmatmul.bf16.gmra.mxu0 %v1111
    %v2117 = vpop.f32.mrf.mxu0
    %v2118 = vadd.f32 0.0, %v2117
    %v2119 = vpop.f32.mrf.mxu0
    %2120 = vdwg.mxu0
    %2121 = vmatpush.bf16.msra.mxu0 0
    %2122 = vmatpush.bf16.msra.mxu0 0
    %2123 = vmatpush.bf16.msra.mxu0 0
    %2124 = vmatpush.bf16.msra.mxu0 0
    %2125 = vmatpush.bf16.msra.mxu0 0
    %2126 = vmatpush.bf16.msra.mxu0 0
    %2127 = vmatpush.bf16.msra.mxu0 0
    %2128 = vmatpush.bf16.msra.mxu0 %v2090
    %2129 = vmatmul.bf16.gmra.mxu0 %v1111
    %v2130 = vpop.f32.mrf.mxu0
    %v2131 = vadd.f32 0.0, %v2130
    %v2132 = vpop.f32.mrf.mxu0
    %2133 = vdwg.mxu0
    %2134 = vmatpush.bf16.msra.mxu0 0
    %2135 = vmatpush.bf16.msra.mxu0 0
    %2136 = vmatpush.bf16.msra.mxu0 0
    %2137 = vmatpush.bf16.msra.mxu0 0
    %2138 = vmatpush.bf16.msra.mxu0 0
    %2139 = vmatpush.bf16.msra.mxu0 0
    %2140 = vmatpush.bf16.msra.mxu0 0
    %2141 = vmatpush.bf16.msra.mxu0 %v2093
    %2142 = vmatmul.bf16.gmra.mxu0 %v1111
    %v2143 = vpop.f32.mrf.mxu0
    %v2144 = vadd.f32 0.0, %v2143
    %v2145 = vpop.f32.mrf.mxu0
    %2146 = vdwg.mxu0
    %v2148 = vsel %vm257, %v2059, 0
    %v2151 = vsel %vm257, %v2060, 0
    %v2154 = vsel %vm257, %v2061, 0
    %v2157 = vsel %vm257, %v2062, 0
    %2159 = vmatpush.bf16.msra.mxu0 0
    %2160 = vmatpush.bf16.msra.mxu0 0
    %2161 = vmatpush.bf16.msra.mxu0 0
    %2162 = vmatpush.bf16.msra.mxu0 0
    %2163 = vmatpush.bf16.msra.mxu0 0
    %2164 = vmatpush.bf16.msra.mxu0 0
    %2165 = vmatpush.bf16.msra.mxu0 0
    %2166 = vmatpush.bf16.msra.mxu0 %v2148
    %2167 = vmatmul.bf16.gmra.mxu0 %v1178
    %v2168 = vpop.f32.mrf.mxu0
    %v2169 = vadd.f32 %v2105, %v2168
    %v2170 = vpop.f32.mrf.mxu0
    %2171 = vdwg.mxu0
    %2172 = vmatpush.bf16.msra.mxu0 0
    %2173 = vmatpush.bf16.msra.mxu0 0
    %2174 = vmatpush.bf16.msra.mxu0 0
    %2175 = vmatpush.bf16.msra.mxu0 0
    %2176 = vmatpush.bf16.msra.mxu0 0
    %2177 = vmatpush.bf16.msra.mxu0 0
    %2178 = vmatpush.bf16.msra.mxu0 0
    %2179 = vmatpush.bf16.msra.mxu0 %v2151
    %2180 = vmatmul.bf16.gmra.mxu0 %v1178
    %v2181 = vpop.f32.mrf.mxu0
    %v2182 = vadd.f32 %v2118, %v2181
    %v2183 = vpop.f32.mrf.mxu0
    %2184 = vdwg.mxu0
    %2185 = vmatpush.bf16.msra.mxu0 0
    %2186 = vmatpush.bf16.msra.mxu0 0
    %2187 = vmatpush.bf16.msra.mxu0 0
    %2188 = vmatpush.bf16.msra.mxu0 0
    %2189 = vmatpush.bf16.msra.mxu0 0
    %2190 = vmatpush.bf16.msra.mxu0 0
    %2191 = vmatpush.bf16.msra.mxu0 0
    %2192 = vmatpush.bf16.msra.mxu0 %v2154
    %2193 = vmatmul.bf16.gmra.mxu0 %v1178
    %v2194 = vpop.f32.mrf.mxu0
    %v2195 = vadd.f32 %v2131, %v2194
    %v2196 = vpop.f32.mrf.mxu0
    %2197 = vdwg.mxu0
    %2198 = vmatpush.bf16.msra.mxu0 0
    %2199 = vmatpush.bf16.msra.mxu0 0
    %2200 = vmatpush.bf16.msra.mxu0 0
    %2201 = vmatpush.bf16.msra.mxu0 0
    %2202 = vmatpush.bf16.msra.mxu0 0
    %2203 = vmatpush.bf16.msra.mxu0 0
    %2204 = vmatpush.bf16.msra.mxu0 0
    %2205 = vmatpush.bf16.msra.mxu0 %v2157
    %2206 = vmatmul.bf16.gmra.mxu0 %v1178
    %v2207 = vpop.f32.mrf.mxu0
    %v2208 = vadd.f32 %v2144, %v2207
    %v2209 = vpop.f32.mrf.mxu0
    %2210 = vdwg.mxu0
    %2211 = vrot.lane.b32.xlu0 %v2039, 32
    %v2212 = vpop.permute.xlu0 %2211
    %2213 = vrot.lane.b32.xlu0 %v2040, 32
    %v2214 = vpop.permute.xlu0 %2213
    %2215 = vrot.lane.b32.xlu0 %v2041, 32
    %v2216 = vpop.permute.xlu0 %2215
    %2217 = vrot.lane.b32.xlu0 %v2042, 32
    %v2218 = vpop.permute.xlu0 %2217
    %v2219 = vsel %vm397, %v2216, %v2218
    %v2220 = vsel %vm397, %v2214, %v2216
    %v2221 = vsel %vm397, %v2212, %v2214
    %v2222 = vsel %vm397, %v2218, %v2212
    %v2223 = vmul.f32 %v2222, %v128
    %v2224 = vmul.f32 %v2221, %v129
    %v2225 = vmul.f32 %v2220, %v130
    %v2226 = vmul.f32 %v2219, %v131
    %v2227 = vpack.c.bf16 %v2223, %v2223
    %v2228 = vpack.c.bf16 %v2224, %v2224
    %v2229 = vpack.c.bf16 %v2225, %v2225
    %v2230 = vpack.c.bf16 %v2226, %v2226
    %v2232 = vsel %vm257, %v2227, 0
    %v2235 = vsel %vm257, %v2228, 0
    %v2238 = vsel %vm257, %v2229, 0
    %v2241 = vsel %vm257, %v2230, 0
    %2243 = vmatpush.bf16.msra.mxu0 0
    %2244 = vmatpush.bf16.msra.mxu0 0
    %2245 = vmatpush.bf16.msra.mxu0 0
    %2246 = vmatpush.bf16.msra.mxu0 0
    %2247 = vmatpush.bf16.msra.mxu0 0
    %2248 = vmatpush.bf16.msra.mxu0 0
    %2249 = vmatpush.bf16.msra.mxu0 0
    %2250 = vmatpush.bf16.msra.mxu0 %v2232
    %2251 = vmatmul.bf16.gmra.mxu0 %v1265
    %v2252 = vpop.f32.mrf.mxu0
    %v2253 = vadd.f32 0.0, %v2252
    %v2254 = vpop.f32.mrf.mxu0
    %2255 = vdwg.mxu0
    %2256 = vmatpush.bf16.msra.mxu0 0
    %2257 = vmatpush.bf16.msra.mxu0 0
    %2258 = vmatpush.bf16.msra.mxu0 0
    %2259 = vmatpush.bf16.msra.mxu0 0
    %2260 = vmatpush.bf16.msra.mxu0 0
    %2261 = vmatpush.bf16.msra.mxu0 0
    %2262 = vmatpush.bf16.msra.mxu0 0
    %2263 = vmatpush.bf16.msra.mxu0 %v2235
    %2264 = vmatmul.bf16.gmra.mxu0 %v1265
    %v2265 = vpop.f32.mrf.mxu0
    %v2266 = vadd.f32 0.0, %v2265
    %v2267 = vpop.f32.mrf.mxu0
    %2268 = vdwg.mxu0
    %2269 = vmatpush.bf16.msra.mxu0 0
    %2270 = vmatpush.bf16.msra.mxu0 0
    %2271 = vmatpush.bf16.msra.mxu0 0
    %2272 = vmatpush.bf16.msra.mxu0 0
    %2273 = vmatpush.bf16.msra.mxu0 0
    %2274 = vmatpush.bf16.msra.mxu0 0
    %2275 = vmatpush.bf16.msra.mxu0 0
    %2276 = vmatpush.bf16.msra.mxu0 %v2238
    %2277 = vmatmul.bf16.gmra.mxu0 %v1265
    %v2278 = vpop.f32.mrf.mxu0
    %v2279 = vadd.f32 0.0, %v2278
    %v2280 = vpop.f32.mrf.mxu0
    %2281 = vdwg.mxu0
    %2282 = vmatpush.bf16.msra.mxu0 0
    %2283 = vmatpush.bf16.msra.mxu0 0
    %2284 = vmatpush.bf16.msra.mxu0 0
    %2285 = vmatpush.bf16.msra.mxu0 0
    %2286 = vmatpush.bf16.msra.mxu0 0
    %2287 = vmatpush.bf16.msra.mxu0 0
    %2288 = vmatpush.bf16.msra.mxu0 0
    %2289 = vmatpush.bf16.msra.mxu0 %v2241
    %2290 = vmatmul.bf16.gmra.mxu0 %v1265
    %v2291 = vpop.f32.mrf.mxu0
    %v2292 = vadd.f32 0.0, %v2291
    %v2293 = vpop.f32.mrf.mxu0
    %2294 = vdwg.mxu0
    %v2295 = vadd.f32 %v2169, %v2253
    %v2296 = vadd.f32 %v2182, %v2266
    %v2297 = vadd.f32 %v2195, %v2279
    %v2298 = vadd.f32 %v2208, %v2292
    %2299 = vrot.lane.b32.xlu0 %v2039, 18
    %v2300 = vpop.permute.xlu0 %2299
    %2301 = vrot.lane.b32.xlu0 %v2040, 18
    %v2302 = vpop.permute.xlu0 %2301
    %2303 = vrot.lane.b32.xlu0 %v2041, 18
    %v2304 = vpop.permute.xlu0 %2303
    %2305 = vrot.lane.b32.xlu0 %v2042, 18
    %v2306 = vpop.permute.xlu0 %2305
    %v2307 = vsel %vm489, %v2304, %v2306
    %v2308 = vsel %vm489, %v2302, %v2304
    %v2309 = vsel %vm489, %v2300, %v2302
    %v2310 = vsel %vm489, %v2306, %v2300
    %v2311 = vmul.f32 %v2310, %v144
    %v2312 = vmul.f32 %v2309, %v145
    %v2313 = vmul.f32 %v2308, %v146
    %v2314 = vmul.f32 %v2307, %v147
    %v2315 = vpack.c.bf16 %v2311, %v2311
    %v2316 = vpack.c.bf16 %v2312, %v2312
    %v2317 = vpack.c.bf16 %v2313, %v2313
    %v2318 = vpack.c.bf16 %v2314, %v2314
    %v2320 = vsel %vm257, %v2315, 0
    %v2323 = vsel %vm257, %v2316, 0
    %v2326 = vsel %vm257, %v2317, 0
    %v2329 = vsel %vm257, %v2318, 0
    %2331 = vmatpush.bf16.msra.mxu0 0
    %2332 = vmatpush.bf16.msra.mxu0 0
    %2333 = vmatpush.bf16.msra.mxu0 0
    %2334 = vmatpush.bf16.msra.mxu0 0
    %2335 = vmatpush.bf16.msra.mxu0 0
    %2336 = vmatpush.bf16.msra.mxu0 0
    %2337 = vmatpush.bf16.msra.mxu0 0
    %2338 = vmatpush.bf16.msra.mxu0 %v2320
    %2339 = vmatmul.bf16.gmra.mxu0 %v1356
    %v2340 = vpop.f32.mrf.mxu0
    %v2341 = vadd.f32 0.0, %v2340
    %v2342 = vpop.f32.mrf.mxu0
    %2343 = vdwg.mxu0
    %2344 = vmatpush.bf16.msra.mxu0 0
    %2345 = vmatpush.bf16.msra.mxu0 0
    %2346 = vmatpush.bf16.msra.mxu0 0
    %2347 = vmatpush.bf16.msra.mxu0 0
    %2348 = vmatpush.bf16.msra.mxu0 0
    %2349 = vmatpush.bf16.msra.mxu0 0
    %2350 = vmatpush.bf16.msra.mxu0 0
    %2351 = vmatpush.bf16.msra.mxu0 %v2323
    %2352 = vmatmul.bf16.gmra.mxu0 %v1356
    %v2353 = vpop.f32.mrf.mxu0
    %v2354 = vadd.f32 0.0, %v2353
    %v2355 = vpop.f32.mrf.mxu0
    %2356 = vdwg.mxu0
    %2357 = vmatpush.bf16.msra.mxu0 0
    %2358 = vmatpush.bf16.msra.mxu0 0
    %2359 = vmatpush.bf16.msra.mxu0 0
    %2360 = vmatpush.bf16.msra.mxu0 0
    %2361 = vmatpush.bf16.msra.mxu0 0
    %2362 = vmatpush.bf16.msra.mxu0 0
    %2363 = vmatpush.bf16.msra.mxu0 0
    %2364 = vmatpush.bf16.msra.mxu0 %v2326
    %2365 = vmatmul.bf16.gmra.mxu0 %v1356
    %v2366 = vpop.f32.mrf.mxu0
    %v2367 = vadd.f32 0.0, %v2366
    %v2368 = vpop.f32.mrf.mxu0
    %2369 = vdwg.mxu0
    %2370 = vmatpush.bf16.msra.mxu0 0
    %2371 = vmatpush.bf16.msra.mxu0 0
    %2372 = vmatpush.bf16.msra.mxu0 0
    %2373 = vmatpush.bf16.msra.mxu0 0
    %2374 = vmatpush.bf16.msra.mxu0 0
    %2375 = vmatpush.bf16.msra.mxu0 0
    %2376 = vmatpush.bf16.msra.mxu0 0
    %2377 = vmatpush.bf16.msra.mxu0 %v2329
    %2378 = vmatmul.bf16.gmra.mxu0 %v1356
    %v2379 = vpop.f32.mrf.mxu0
    %v2380 = vadd.f32 0.0, %v2379
    %v2381 = vpop.f32.mrf.mxu0
    %2382 = vdwg.mxu0
    %v2383 = vadd.f32 %v2295, %v2341
    %v2384 = vadd.f32 %v2296, %v2354
    %v2385 = vadd.f32 %v2297, %v2367
    %v2386 = vadd.f32 %v2298, %v2380
    %2387 = vrot.lane.b32.xlu0 %v2039, 17
    %v2388 = vpop.permute.xlu0 %2387
    %2389 = vrot.lane.b32.xlu0 %v2040, 17
    %v2390 = vpop.permute.xlu0 %2389
    %2391 = vrot.lane.b32.xlu0 %v2041, 17
    %v2392 = vpop.permute.xlu0 %2391
    %2393 = vrot.lane.b32.xlu0 %v2042, 17
    %v2394 = vpop.permute.xlu0 %2393
    %v2395 = vsel %vm581, %v2392, %v2394
    %v2396 = vsel %vm581, %v2390, %v2392
    %v2397 = vsel %vm581, %v2388, %v2390
    %v2398 = vsel %vm581, %v2394, %v2388
    %v2399 = vmul.f32 %v2398, %v156
    %v2400 = vmul.f32 %v2397, %v157
    %v2401 = vmul.f32 %v2396, %v158
    %v2402 = vmul.f32 %v2395, %v159
    %v2403 = vpack.c.bf16 %v2399, %v2399
    %v2404 = vpack.c.bf16 %v2400, %v2400
    %v2405 = vpack.c.bf16 %v2401, %v2401
    %v2406 = vpack.c.bf16 %v2402, %v2402
    %v2408 = vsel %vm257, %v2403, 0
    %v2411 = vsel %vm257, %v2404, 0
    %v2414 = vsel %vm257, %v2405, 0
    %v2417 = vsel %vm257, %v2406, 0
    %2419 = vmatpush.bf16.msra.mxu0 0
    %2420 = vmatpush.bf16.msra.mxu0 0
    %2421 = vmatpush.bf16.msra.mxu0 0
    %2422 = vmatpush.bf16.msra.mxu0 0
    %2423 = vmatpush.bf16.msra.mxu0 0
    %2424 = vmatpush.bf16.msra.mxu0 0
    %2425 = vmatpush.bf16.msra.mxu0 0
    %2426 = vmatpush.bf16.msra.mxu0 %v2408
    %2427 = vmatmul.bf16.gmra.mxu0 %v1447
    %v2428 = vpop.f32.mrf.mxu0
    %v2429 = vadd.f32 0.0, %v2428
    %v2430 = vpop.f32.mrf.mxu0
    %2431 = vdwg.mxu0
    %2432 = vmatpush.bf16.msra.mxu0 0
    %2433 = vmatpush.bf16.msra.mxu0 0
    %2434 = vmatpush.bf16.msra.mxu0 0
    %2435 = vmatpush.bf16.msra.mxu0 0
    %2436 = vmatpush.bf16.msra.mxu0 0
    %2437 = vmatpush.bf16.msra.mxu0 0
    %2438 = vmatpush.bf16.msra.mxu0 0
    %2439 = vmatpush.bf16.msra.mxu0 %v2411
    %2440 = vmatmul.bf16.gmra.mxu0 %v1447
    %v2441 = vpop.f32.mrf.mxu0
    %v2442 = vadd.f32 0.0, %v2441
    %v2443 = vpop.f32.mrf.mxu0
    %2444 = vdwg.mxu0
    %2445 = vmatpush.bf16.msra.mxu0 0
    %2446 = vmatpush.bf16.msra.mxu0 0
    %2447 = vmatpush.bf16.msra.mxu0 0
    %2448 = vmatpush.bf16.msra.mxu0 0
    %2449 = vmatpush.bf16.msra.mxu0 0
    %2450 = vmatpush.bf16.msra.mxu0 0
    %2451 = vmatpush.bf16.msra.mxu0 0
    %2452 = vmatpush.bf16.msra.mxu0 %v2414
    %2453 = vmatmul.bf16.gmra.mxu0 %v1447
    %v2454 = vpop.f32.mrf.mxu0
    %v2455 = vadd.f32 0.0, %v2454
    %v2456 = vpop.f32.mrf.mxu0
    %2457 = vdwg.mxu0
    %2458 = vmatpush.bf16.msra.mxu0 0
    %2459 = vmatpush.bf16.msra.mxu0 0
    %2460 = vmatpush.bf16.msra.mxu0 0
    %2461 = vmatpush.bf16.msra.mxu0 0
    %2462 = vmatpush.bf16.msra.mxu0 0
    %2463 = vmatpush.bf16.msra.mxu0 0
    %2464 = vmatpush.bf16.msra.mxu0 0
    %2465 = vmatpush.bf16.msra.mxu0 %v2417
    %2466 = vmatmul.bf16.gmra.mxu0 %v1447
    %v2467 = vpop.f32.mrf.mxu0
    %v2468 = vadd.f32 0.0, %v2467
    %v2469 = vpop.f32.mrf.mxu0
    %2470 = vdwg.mxu0
    %v2471 = vadd.f32 %v2383, %v2429
    %v2472 = vadd.f32 %v2384, %v2442
    %v2473 = vadd.f32 %v2385, %v2455
    %v2474 = vadd.f32 %v2386, %v2468
    %2475 = vrot.lane.b32.xlu0 %v2039, 16
    %v2476 = vpop.permute.xlu0 %2475
    %2477 = vrot.lane.b32.xlu0 %v2040, 16
    %v2478 = vpop.permute.xlu0 %2477
    %2479 = vrot.lane.b32.xlu0 %v2041, 16
    %v2480 = vpop.permute.xlu0 %2479
    %2481 = vrot.lane.b32.xlu0 %v2042, 16
    %v2482 = vpop.permute.xlu0 %2481
    %v2483 = vsel %vm673, %v2480, %v2482
    %v2484 = vsel %vm673, %v2478, %v2480
    %v2485 = vsel %vm673, %v2476, %v2478
    %v2486 = vsel %vm673, %v2482, %v2476
    %v2487 = vmul.f32 %v2486, %v168
    %v2488 = vmul.f32 %v2485, %v169
    %v2489 = vmul.f32 %v2484, %v170
    %v2490 = vmul.f32 %v2483, %v171
    %v2491 = vpack.c.bf16 %v2487, %v2487
    %v2492 = vpack.c.bf16 %v2488, %v2488
    %v2493 = vpack.c.bf16 %v2489, %v2489
    %v2494 = vpack.c.bf16 %v2490, %v2490
    %v2496 = vsel %vm257, %v2491, 0
    %v2499 = vsel %vm257, %v2492, 0
    %v2502 = vsel %vm257, %v2493, 0
    %v2505 = vsel %vm257, %v2494, 0
    %2507 = vmatpush.bf16.msra.mxu0 0
    %2508 = vmatpush.bf16.msra.mxu0 0
    %2509 = vmatpush.bf16.msra.mxu0 0
    %2510 = vmatpush.bf16.msra.mxu0 0
    %2511 = vmatpush.bf16.msra.mxu0 0
    %2512 = vmatpush.bf16.msra.mxu0 0
    %2513 = vmatpush.bf16.msra.mxu0 0
    %2514 = vmatpush.bf16.msra.mxu0 %v2496
    %2515 = vmatmul.bf16.gmra.mxu0 %v1538
    %v2516 = vpop.f32.mrf.mxu0
    %v2517 = vadd.f32 0.0, %v2516
    %v2518 = vpop.f32.mrf.mxu0
    %2519 = vdwg.mxu0
    %2520 = vmatpush.bf16.msra.mxu0 0
    %2521 = vmatpush.bf16.msra.mxu0 0
    %2522 = vmatpush.bf16.msra.mxu0 0
    %2523 = vmatpush.bf16.msra.mxu0 0
    %2524 = vmatpush.bf16.msra.mxu0 0
    %2525 = vmatpush.bf16.msra.mxu0 0
    %2526 = vmatpush.bf16.msra.mxu0 0
    %2527 = vmatpush.bf16.msra.mxu0 %v2499
    %2528 = vmatmul.bf16.gmra.mxu0 %v1538
    %v2529 = vpop.f32.mrf.mxu0
    %v2530 = vadd.f32 0.0, %v2529
    %v2531 = vpop.f32.mrf.mxu0
    %2532 = vdwg.mxu0
    %2533 = vmatpush.bf16.msra.mxu0 0
    %2534 = vmatpush.bf16.msra.mxu0 0
    %2535 = vmatpush.bf16.msra.mxu0 0
    %2536 = vmatpush.bf16.msra.mxu0 0
    %2537 = vmatpush.bf16.msra.mxu0 0
    %2538 = vmatpush.bf16.msra.mxu0 0
    %2539 = vmatpush.bf16.msra.mxu0 0
    %2540 = vmatpush.bf16.msra.mxu0 %v2502
    %2541 = vmatmul.bf16.gmra.mxu0 %v1538
    %v2542 = vpop.f32.mrf.mxu0
    %v2543 = vadd.f32 0.0, %v2542
    %v2544 = vpop.f32.mrf.mxu0
    %2545 = vdwg.mxu0
    %2546 = vmatpush.bf16.msra.mxu0 0
    %2547 = vmatpush.bf16.msra.mxu0 0
    %2548 = vmatpush.bf16.msra.mxu0 0
    %2549 = vmatpush.bf16.msra.mxu0 0
    %2550 = vmatpush.bf16.msra.mxu0 0
    %2551 = vmatpush.bf16.msra.mxu0 0
    %2552 = vmatpush.bf16.msra.mxu0 0
    %2553 = vmatpush.bf16.msra.mxu0 %v2505
    %2554 = vmatmul.bf16.gmra.mxu0 %v1538
    %v2555 = vpop.f32.mrf.mxu0
    %v2556 = vadd.f32 0.0, %v2555
    %v2557 = vpop.f32.mrf.mxu0
    %2558 = vdwg.mxu0
    %v2559 = vadd.f32 %v2471, %v2517
    %v2560 = vadd.f32 %v2472, %v2530
    %v2561 = vadd.f32 %v2473, %v2543
    %v2562 = vadd.f32 %v2474, %v2556
    %2563 = vrot.lane.b32.xlu0 %v2039, 2
    %v2564 = vpop.permute.xlu0 %2563
    %2565 = vrot.lane.b32.xlu0 %v2040, 2
    %v2566 = vpop.permute.xlu0 %2565
    %2567 = vrot.lane.b32.xlu0 %v2041, 2
    %v2568 = vpop.permute.xlu0 %2567
    %2569 = vrot.lane.b32.xlu0 %v2042, 2
    %v2570 = vpop.permute.xlu0 %2569
    %v2571 = vsel %vm765, %v2568, %v2570
    %v2572 = vsel %vm765, %v2566, %v2568
    %v2573 = vsel %vm765, %v2564, %v2566
    %v2574 = vsel %vm765, %v2570, %v2564
    %v2575 = vmul.f32 %v2574, %v184
    %v2576 = vmul.f32 %v2573, %v185
    %v2577 = vmul.f32 %v2572, %v186
    %v2578 = vmul.f32 %v2571, %v187
    %v2579 = vpack.c.bf16 %v2575, %v2575
    %v2580 = vpack.c.bf16 %v2576, %v2576
    %v2581 = vpack.c.bf16 %v2577, %v2577
    %v2582 = vpack.c.bf16 %v2578, %v2578
    %v2584 = vsel %vm257, %v2579, 0
    %v2587 = vsel %vm257, %v2580, 0
    %v2590 = vsel %vm257, %v2581, 0
    %v2593 = vsel %vm257, %v2582, 0
    %2595 = vmatpush.bf16.msra.mxu0 0
    %2596 = vmatpush.bf16.msra.mxu0 0
    %2597 = vmatpush.bf16.msra.mxu0 0
    %2598 = vmatpush.bf16.msra.mxu0 0
    %2599 = vmatpush.bf16.msra.mxu0 0
    %2600 = vmatpush.bf16.msra.mxu0 0
    %2601 = vmatpush.bf16.msra.mxu0 0
    %2602 = vmatpush.bf16.msra.mxu0 %v2584
    %2603 = vmatmul.bf16.gmra.mxu0 %v1629
    %v2604 = vpop.f32.mrf.mxu0
    %v2605 = vadd.f32 0.0, %v2604
    %v2606 = vpop.f32.mrf.mxu0
    %2607 = vdwg.mxu0
    %2608 = vmatpush.bf16.msra.mxu0 0
    %2609 = vmatpush.bf16.msra.mxu0 0
    %2610 = vmatpush.bf16.msra.mxu0 0
    %2611 = vmatpush.bf16.msra.mxu0 0
    %2612 = vmatpush.bf16.msra.mxu0 0
    %2613 = vmatpush.bf16.msra.mxu0 0
    %2614 = vmatpush.bf16.msra.mxu0 0
    %2615 = vmatpush.bf16.msra.mxu0 %v2587
    %2616 = vmatmul.bf16.gmra.mxu0 %v1629
    %v2617 = vpop.f32.mrf.mxu0
    %v2618 = vadd.f32 0.0, %v2617
    %v2619 = vpop.f32.mrf.mxu0
    %2620 = vdwg.mxu0
    %2621 = vmatpush.bf16.msra.mxu0 0
    %2622 = vmatpush.bf16.msra.mxu0 0
    %2623 = vmatpush.bf16.msra.mxu0 0
    %2624 = vmatpush.bf16.msra.mxu0 0
    %2625 = vmatpush.bf16.msra.mxu0 0
    %2626 = vmatpush.bf16.msra.mxu0 0
    %2627 = vmatpush.bf16.msra.mxu0 0
    %2628 = vmatpush.bf16.msra.mxu0 %v2590
    %2629 = vmatmul.bf16.gmra.mxu0 %v1629
    %v2630 = vpop.f32.mrf.mxu0
    %v2631 = vadd.f32 0.0, %v2630
    %v2632 = vpop.f32.mrf.mxu0
    %2633 = vdwg.mxu0
    %2634 = vmatpush.bf16.msra.mxu0 0
    %2635 = vmatpush.bf16.msra.mxu0 0
    %2636 = vmatpush.bf16.msra.mxu0 0
    %2637 = vmatpush.bf16.msra.mxu0 0
    %2638 = vmatpush.bf16.msra.mxu0 0
    %2639 = vmatpush.bf16.msra.mxu0 0
    %2640 = vmatpush.bf16.msra.mxu0 0
    %2641 = vmatpush.bf16.msra.mxu0 %v2593
    %2642 = vmatmul.bf16.gmra.mxu0 %v1629
    %v2643 = vpop.f32.mrf.mxu0
    %v2644 = vadd.f32 0.0, %v2643
    %v2645 = vpop.f32.mrf.mxu0
    %2646 = vdwg.mxu0
    %v2647 = vadd.f32 %v2559, %v2605
    %v2648 = vadd.f32 %v2560, %v2618
    %v2649 = vadd.f32 %v2561, %v2631
    %v2650 = vadd.f32 %v2562, %v2644
    %2651 = vrot.lane.b32.xlu0 %v2039, 1
    %v2652 = vpop.permute.xlu0 %2651
    %2653 = vrot.lane.b32.xlu0 %v2040, 1
    %v2654 = vpop.permute.xlu0 %2653
    %2655 = vrot.lane.b32.xlu0 %v2041, 1
    %v2656 = vpop.permute.xlu0 %2655
    %2657 = vrot.lane.b32.xlu0 %v2042, 1
    %v2658 = vpop.permute.xlu0 %2657
    %v2659 = vsel %vm857, %v2656, %v2658
    %v2660 = vsel %vm857, %v2654, %v2656
    %v2661 = vsel %vm857, %v2652, %v2654
    %v2662 = vsel %vm857, %v2658, %v2652
    %v2663 = vmul.f32 %v2662, %v196
    %v2664 = vmul.f32 %v2661, %v197
    %v2665 = vmul.f32 %v2660, %v198
    %v2666 = vmul.f32 %v2659, %v199
    %v2667 = vpack.c.bf16 %v2663, %v2663
    %v2668 = vpack.c.bf16 %v2664, %v2664
    %v2669 = vpack.c.bf16 %v2665, %v2665
    %v2670 = vpack.c.bf16 %v2666, %v2666
    %v2672 = vsel %vm257, %v2667, 0
    %v2675 = vsel %vm257, %v2668, 0
    %v2678 = vsel %vm257, %v2669, 0
    %v2681 = vsel %vm257, %v2670, 0
    %2683 = vmatpush.bf16.msra.mxu0 0
    %2684 = vmatpush.bf16.msra.mxu0 0
    %2685 = vmatpush.bf16.msra.mxu0 0
    %2686 = vmatpush.bf16.msra.mxu0 0
    %2687 = vmatpush.bf16.msra.mxu0 0
    %2688 = vmatpush.bf16.msra.mxu0 0
    %2689 = vmatpush.bf16.msra.mxu0 0
    %2690 = vmatpush.bf16.msra.mxu0 %v2672
    %2691 = vmatmul.bf16.gmra.mxu0 %v1720
    %v2692 = vpop.f32.mrf.mxu0
    %v2693 = vadd.f32 0.0, %v2692
    %v2694 = vpop.f32.mrf.mxu0
    %2695 = vdwg.mxu0
    %2696 = vmatpush.bf16.msra.mxu0 0
    %2697 = vmatpush.bf16.msra.mxu0 0
    %2698 = vmatpush.bf16.msra.mxu0 0
    %2699 = vmatpush.bf16.msra.mxu0 0
    %2700 = vmatpush.bf16.msra.mxu0 0
    %2701 = vmatpush.bf16.msra.mxu0 0
    %2702 = vmatpush.bf16.msra.mxu0 0
    %2703 = vmatpush.bf16.msra.mxu0 %v2675
    %2704 = vmatmul.bf16.gmra.mxu0 %v1720
    %v2705 = vpop.f32.mrf.mxu0
    %v2706 = vadd.f32 0.0, %v2705
    %v2707 = vpop.f32.mrf.mxu0
    %2708 = vdwg.mxu0
    %2709 = vmatpush.bf16.msra.mxu0 0
    %2710 = vmatpush.bf16.msra.mxu0 0
    %2711 = vmatpush.bf16.msra.mxu0 0
    %2712 = vmatpush.bf16.msra.mxu0 0
    %2713 = vmatpush.bf16.msra.mxu0 0
    %2714 = vmatpush.bf16.msra.mxu0 0
    %2715 = vmatpush.bf16.msra.mxu0 0
    %2716 = vmatpush.bf16.msra.mxu0 %v2678
    %2717 = vmatmul.bf16.gmra.mxu0 %v1720
    %v2718 = vpop.f32.mrf.mxu0
    %v2719 = vadd.f32 0.0, %v2718
    %v2720 = vpop.f32.mrf.mxu0
    %2721 = vdwg.mxu0
    %2722 = vmatpush.bf16.msra.mxu0 0
    %2723 = vmatpush.bf16.msra.mxu0 0
    %2724 = vmatpush.bf16.msra.mxu0 0
    %2725 = vmatpush.bf16.msra.mxu0 0
    %2726 = vmatpush.bf16.msra.mxu0 0
    %2727 = vmatpush.bf16.msra.mxu0 0
    %2728 = vmatpush.bf16.msra.mxu0 0
    %2729 = vmatpush.bf16.msra.mxu0 %v2681
    %2730 = vmatmul.bf16.gmra.mxu0 %v1720
    %v2731 = vpop.f32.mrf.mxu0
    %v2732 = vadd.f32 0.0, %v2731
    %v2733 = vpop.f32.mrf.mxu0
    %2734 = vdwg.mxu0
    %v2735 = vadd.f32 %v2647, %v2693
    %v2736 = vadd.f32 %v2648, %v2706
    %v2737 = vadd.f32 %v2649, %v2719
    %v2738 = vadd.f32 %v2650, %v2732
    %v2739 = vpack.c.bf16 %v2039, %v2039
    %v2740 = vpack.c.bf16 %v2040, %v2040
    %v2741 = vpack.c.bf16 %v2041, %v2041
    %v2742 = vpack.c.bf16 %v2042, %v2042
    %v2744 = vsel %vm257, %v2739, 0
    %v2747 = vsel %vm257, %v2740, 0
    %v2750 = vsel %vm257, %v2741, 0
    %v2753 = vsel %vm257, %v2742, 0
    %2755 = vmatpush.bf16.msra.mxu0 0
    %2756 = vmatpush.bf16.msra.mxu0 0
    %2757 = vmatpush.bf16.msra.mxu0 0
    %2758 = vmatpush.bf16.msra.mxu0 0
    %2759 = vmatpush.bf16.msra.mxu0 0
    %2760 = vmatpush.bf16.msra.mxu0 0
    %2761 = vmatpush.bf16.msra.mxu0 0
    %2762 = vmatpush.bf16.msra.mxu0 %v2744
    %2763 = vmatmul.bf16.gmra.mxu0 %v1795
    %v2764 = vpop.f32.mrf.mxu0
    %v2765 = vadd.f32 0.0, %v2764
    %v2766 = vpop.f32.mrf.mxu0
    %2767 = vdwg.mxu0
    %2768 = vmatpush.bf16.msra.mxu0 0
    %2769 = vmatpush.bf16.msra.mxu0 0
    %2770 = vmatpush.bf16.msra.mxu0 0
    %2771 = vmatpush.bf16.msra.mxu0 0
    %2772 = vmatpush.bf16.msra.mxu0 0
    %2773 = vmatpush.bf16.msra.mxu0 0
    %2774 = vmatpush.bf16.msra.mxu0 0
    %2775 = vmatpush.bf16.msra.mxu0 %v2747
    %2776 = vmatmul.bf16.gmra.mxu0 %v1795
    %v2777 = vpop.f32.mrf.mxu0
    %v2778 = vadd.f32 0.0, %v2777
    %v2779 = vpop.f32.mrf.mxu0
    %2780 = vdwg.mxu0
    %2781 = vmatpush.bf16.msra.mxu0 0
    %2782 = vmatpush.bf16.msra.mxu0 0
    %2783 = vmatpush.bf16.msra.mxu0 0
    %2784 = vmatpush.bf16.msra.mxu0 0
    %2785 = vmatpush.bf16.msra.mxu0 0
    %2786 = vmatpush.bf16.msra.mxu0 0
    %2787 = vmatpush.bf16.msra.mxu0 0
    %2788 = vmatpush.bf16.msra.mxu0 %v2750
    %2789 = vmatmul.bf16.gmra.mxu0 %v1795
    %v2790 = vpop.f32.mrf.mxu0
    %v2791 = vadd.f32 0.0, %v2790
    %v2792 = vpop.f32.mrf.mxu0
    %2793 = vdwg.mxu0
    %2794 = vmatpush.bf16.msra.mxu0 0
    %2795 = vmatpush.bf16.msra.mxu0 0
    %2796 = vmatpush.bf16.msra.mxu0 0
    %2797 = vmatpush.bf16.msra.mxu0 0
    %2798 = vmatpush.bf16.msra.mxu0 0
    %2799 = vmatpush.bf16.msra.mxu0 0
    %2800 = vmatpush.bf16.msra.mxu0 0
    %2801 = vmatpush.bf16.msra.mxu0 %v2753
    %2802 = vmatmul.bf16.gmra.mxu0 %v1795
    %v2803 = vpop.f32.mrf.mxu0
    %v2804 = vadd.f32 0.0, %v2803
    %v2805 = vpop.f32.mrf.mxu0
    %2806 = vdwg.mxu0
    %v2807 = vadd.f32 %v2735, %v2765
    %v2808 = vadd.f32 %v2736, %v2778
    %v2809 = vadd.f32 %v2737, %v2791
    %v2810 = vadd.f32 %v2738, %v2804
    %vm2811 = vcmp.gt.f32.partialorder %v2807, 0.0
    %vm2812 = vcmp.gt.f32.partialorder %v2808, 0.0
    %vm2813 = vcmp.gt.f32.partialorder %v2809, 0.0
    %vm2814 = vcmp.gt.f32.partialorder %v2810, 0.0
    %v2815 = vmul.f32 %v1872, %v2807
    %v2816 = vmul.f32 %v1872, %v2808
    %v2817 = vmul.f32 %v1872, %v2809
    %v2818 = vmul.f32 %v1872, %v2810
    %v2819 = vsel %vm2811, %v2807, %v2815
    %v2820 = vsel %vm2812, %v2808, %v2816
    %v2821 = vsel %vm2813, %v2809, %v2817
    %v2822 = vsel %vm2814, %v2810, %v2818
    %v2823 = vadd.f32 %v2819, %v2820
    %v2824 = vadd.f32 %v2823, %v2821
    %v2825 = vadd.f32 %v2824, %v2822
    %2826 = vadd.xlane.f32.xlu0 %v2825
    %v2827 = vpop.xlane.xlu0 %2826
    %v2828 = vmul.f32 %v2827, 0.001953125
    %v2829 = vmul.f32 %v2819, %v2819
    %v2830 = vmul.f32 %v2820, %v2820
    %v2831 = vmul.f32 %v2821, %v2821
    %v2832 = vmul.f32 %v2822, %v2822
    %v2833 = vadd.f32 %v2829, %v2830
    %v2834 = vadd.f32 %v2833, %v2831
    %v2835 = vadd.f32 %v2834, %v2832
    %2836 = vadd.xlane.f32.xlu0 %v2835
    %v2837 = vpop.xlane.xlu0 %2836
    %v2838 = vmul.f32 %v2837, 0.001953125
    %v2839 = vmul.f32 %v2828, %v2828
    %v2840 = vsub.f32 %v2838, %v2839
    %v2841 = vsub.f32 %v2819, %v2828
    %v2842 = vsub.f32 %v2820, %v2828
    %v2843 = vsub.f32 %v2821, %v2828
    %v2844 = vsub.f32 %v2822, %v2828
    %v2845 = vadd.f32 %v2840, 1e-05
    %v2846 = vrsqrt.pop %v2845
    %v2847 = vmul.f32 %v2846, %v2845
    %v2848 = vmul.f32 %v2847, %v2846
    %v2849 = vmul.f32 0.5, %v2848
    %v2850 = vsub.f32 1.5, %v2849
    %v2851 = vmul.f32 %v2846, %v2850
    %vm2852 = vweird.f32 %v2845
    %vm2853 = vweird.f32 %v2846
    %vm2854 = vmor %vm2852, %vm2853
    %v2855 = vsel %vm2854, %v2846, %v2851
    %v2856 = vmul.f32 %v2841, %v2855
    %v2857 = vmul.f32 %v2842, %v2855
    %v2858 = vmul.f32 %v2843, %v2855
    %v2859 = vmul.f32 %v2844, %v2855
    %v2860 = vadd.f32 %v2856, %v1066
    %v2861 = vadd.f32 %v2857, %v1067
    %v2862 = vadd.f32 %v2858, %v1068
    %v2863 = vadd.f32 %v2859, %v1069
    %v2864 = vmul.f32 %v2860, %v2860
    %v2865 = vmul.f32 %v2861, %v2861
    %v2866 = vmul.f32 %v2862, %v2862
    %v2867 = vmul.f32 %v2863, %v2863
    %v2868 = vrot.slane %v2864, 7
    %v2869 = vrot.slane %v2865, 7
    %v2870 = vrot.slane %v2866, 7
    %v2871 = vrot.slane %v2867, 7
    %v2872 = vmul.f32 %v2868, %v204
    %v2873 = vmul.f32 %v2869, %v204
    %v2874 = vmul.f32 %v2870, %v204
    %v2875 = vmul.f32 %v2871, %v204
    %v2876 = vadd.f32 %v2864, %v2872
    %v2877 = vadd.f32 %v2865, %v2873
    %v2878 = vadd.f32 %v2866, %v2874
    %v2879 = vadd.f32 %v2867, %v2875
    %v2880 = vmul.f32 %v2876, 5e-05
    %v2881 = vmul.f32 %v2877, 5e-05
    %v2882 = vmul.f32 %v2878, 5e-05
    %v2883 = vmul.f32 %v2879, 5e-05
    %v2884 = vadd.f32 %v2880, 1.0
    %v2885 = vadd.f32 %v2881, 1.0
    %v2886 = vadd.f32 %v2882, 1.0
    %v2887 = vadd.f32 %v2883, 1.0
    %v2888 = vrsqrt.pop %v2884
    %v2889 = vmul.f32 %v2888, %v2884
    %v2890 = vmul.f32 %v2889, %v2888
    %v2891 = vmul.f32 0.5, %v2890
    %v2892 = vsub.f32 1.5, %v2891
    %v2893 = vmul.f32 %v2888, %v2892
    %vm2894 = vweird.f32 %v2884
    %vm2895 = vweird.f32 %v2888
    %vm2896 = vmor %vm2894, %vm2895
    %v2897 = vsel %vm2896, %v2888, %v2893
    %v2898 = vrsqrt.pop %v2885
    %v2899 = vmul.f32 %v2898, %v2885
    %v2900 = vmul.f32 %v2899, %v2898
    %v2901 = vmul.f32 0.5, %v2900
    %v2902 = vsub.f32 1.5, %v2901
    %v2903 = vmul.f32 %v2898, %v2902
    %vm2904 = vweird.f32 %v2885
    %vm2905 = vweird.f32 %v2898
    %vm2906 = vmor %vm2904, %vm2905
    %v2907 = vsel %vm2906, %v2898, %v2903
    %v2908 = vrsqrt.pop %v2886
    %v2909 = vmul.f32 %v2908, %v2886
    %v2910 = vmul.f32 %v2909, %v2908
    %v2911 = vmul.f32 0.5, %v2910
    %v2912 = vsub.f32 1.5, %v2911
    %v2913 = vmul.f32 %v2908, %v2912
    %vm2914 = vweird.f32 %v2886
    %vm2915 = vweird.f32 %v2908
    %vm2916 = vmor %vm2914, %vm2915
    %v2917 = vsel %vm2916, %v2908, %v2913
    %v2918 = vrsqrt.pop %v2887
    %v2919 = vmul.f32 %v2918, %v2887
    %v2920 = vmul.f32 %v2919, %v2918
    %v2921 = vmul.f32 0.5, %v2920
    %v2922 = vsub.f32 1.5, %v2921
    %v2923 = vmul.f32 %v2918, %v2922
    %vm2924 = vweird.f32 %v2887
    %vm2925 = vweird.f32 %v2918
    %vm2926 = vmor %vm2924, %vm2925
    %v2927 = vsel %vm2926, %v2918, %v2923
    %v2928 = vrsqrt.pop %v2897
    %v2929 = vmul.f32 %v2928, %v2897
    %v2930 = vmul.f32 %v2929, %v2928
    %v2931 = vmul.f32 0.5, %v2930
    %v2932 = vsub.f32 1.5, %v2931
    %v2933 = vmul.f32 %v2928, %v2932
    %v2934 = vmul.f32 %v2897, %v2933
    %vm2935 = vcmp.eq.f32.partialorder %v2897, inf
    %v2936 = vsel %vm2935, %v2897, %v2934
    %vm2937 = vcmp.eq.f32.partialorder %v2897, 0.0
    %v2938 = vand.u32 %v2897, 2147483648
    %v2939 = vsel %vm2937, %v2938, %v2936
    %v2940 = vrsqrt.pop %v2907
    %v2941 = vmul.f32 %v2940, %v2907
    %v2942 = vmul.f32 %v2941, %v2940
    %v2943 = vmul.f32 0.5, %v2942
    %v2944 = vsub.f32 1.5, %v2943
    %v2945 = vmul.f32 %v2940, %v2944
    %v2946 = vmul.f32 %v2907, %v2945
    %vm2947 = vcmp.eq.f32.partialorder %v2907, inf
    %v2948 = vsel %vm2947, %v2907, %v2946
    %vm2949 = vcmp.eq.f32.partialorder %v2907, 0.0
    %v2950 = vand.u32 %v2907, 2147483648
    %v2951 = vsel %vm2949, %v2950, %v2948
    %v2952 = vrsqrt.pop %v2917
    %v2953 = vmul.f32 %v2952, %v2917
    %v2954 = vmul.f32 %v2953, %v2952
    %v2955 = vmul.f32 0.5, %v2954
    %v2956 = vsub.f32 1.5, %v2955
    %v2957 = vmul.f32 %v2952, %v2956
    %v2958 = vmul.f32 %v2917, %v2957
    %vm2959 = vcmp.eq.f32.partialorder %v2917, inf
    %v2960 = vsel %vm2959, %v2917, %v2958
    %vm2961 = vcmp.eq.f32.partialorder %v2917, 0.0
    %v2962 = vand.u32 %v2917, 2147483648
    %v2963 = vsel %vm2961, %v2962, %v2960
    %v2964 = vrsqrt.pop %v2927
    %v2965 = vmul.f32 %v2964, %v2927
    %v2966 = vmul.f32 %v2965, %v2964
    %v2967 = vmul.f32 0.5, %v2966
    %v2968 = vsub.f32 1.5, %v2967
    %v2969 = vmul.f32 %v2964, %v2968
    %v2970 = vmul.f32 %v2927, %v2969
    %vm2971 = vcmp.eq.f32.partialorder %v2927, inf
    %v2972 = vsel %vm2971, %v2927, %v2970
    %vm2973 = vcmp.eq.f32.partialorder %v2927, 0.0
    %v2974 = vand.u32 %v2927, 2147483648
    %v2975 = vsel %vm2973, %v2974, %v2972
    %v2976 = vmul.f32 %v2897, %v2939
    %v2977 = vmul.f32 %v2907, %v2951
    %v2978 = vmul.f32 %v2917, %v2963
    %v2979 = vmul.f32 %v2927, %v2975
    %v2980 = vmul.f32 %v2860, %v2976
    %v2981 = vmul.f32 %v2861, %v2977
    %v2982 = vmul.f32 %v2862, %v2978
    %v2983 = vmul.f32 %v2863, %v2979
    %2984 = vrot.lane.b32.xlu0 %v2980, 34
    %v2985 = vpop.permute.xlu0 %2984
    %2986 = vrot.lane.b32.xlu0 %v2981, 34
    %v2987 = vpop.permute.xlu0 %2986
    %2988 = vrot.lane.b32.xlu0 %v2982, 34
    %v2989 = vpop.permute.xlu0 %2988
    %2990 = vrot.lane.b32.xlu0 %v2983, 34
    %v2991 = vpop.permute.xlu0 %2990
    %v2992 = vsel %vm219, %v2989, %v2991
    %v2993 = vsel %vm219, %v2987, %v2989
    %v2994 = vsel %vm219, %v2985, %v2987
    %v2995 = vsel %vm219, %v2991, %v2985
    %v2996 = vmul.f32 %v2995, %v96
    %v2997 = vmul.f32 %v2994, %v97
    %v2998 = vmul.f32 %v2993, %v98
    %v2999 = vmul.f32 %v2992, %v99
    %v3000 = vpack.c.bf16 %v2996, %v2996
    %v3001 = vpack.c.bf16 %v2997, %v2997
    %v3002 = vpack.c.bf16 %v2998, %v2998
    %v3003 = vpack.c.bf16 %v2999, %v2999
    %3004 = vrot.lane.b32.xlu0 %v2980, 33
    %v3005 = vpop.permute.xlu0 %3004
    %3006 = vrot.lane.b32.xlu0 %v2981, 33
    %v3007 = vpop.permute.xlu0 %3006
    %3008 = vrot.lane.b32.xlu0 %v2982, 33
    %v3009 = vpop.permute.xlu0 %3008
    %3010 = vrot.lane.b32.xlu0 %v2983, 33
    %v3011 = vpop.permute.xlu0 %3010
    %v3012 = vsel %vm240, %v3009, %v3011
    %v3013 = vsel %vm240, %v3007, %v3009
    %v3014 = vsel %vm240, %v3005, %v3007
    %v3015 = vsel %vm240, %v3011, %v3005
    %v3016 = vmul.f32 %v3015, %v112
    %v3017 = vmul.f32 %v3014, %v113
    %v3018 = vmul.f32 %v3013, %v114
    %v3019 = vmul.f32 %v3012, %v115
    %v3020 = vpack.c.bf16 %v3016, %v3016
    %v3021 = vpack.c.bf16 %v3017, %v3017
    %v3022 = vpack.c.bf16 %v3018, %v3018
    %v3023 = vpack.c.bf16 %v3019, %v3019
    %v3025 = vsel %vm257, %v3020, 0
    %v3028 = vsel %vm257, %v3021, 0
    %v3031 = vsel %vm257, %v3022, 0
    %v3034 = vsel %vm257, %v3023, 0
    %3036 = vmatpush.bf16.msra.mxu0 0
    %3037 = vmatpush.bf16.msra.mxu0 0
    %3038 = vmatpush.bf16.msra.mxu0 0
    %3039 = vmatpush.bf16.msra.mxu0 0
    %3040 = vmatpush.bf16.msra.mxu0 0
    %3041 = vmatpush.bf16.msra.mxu0 0
    %3042 = vmatpush.bf16.msra.mxu0 0
    %3043 = vmatpush.bf16.msra.mxu0 %v3025
    %3044 = vmatmul.bf16.gmra.mxu0 %v1111
    %v3045 = vpop.f32.mrf.mxu0
    %v3046 = vadd.f32 0.0, %v3045
    %v3047 = vpop.f32.mrf.mxu0
    %3048 = vdwg.mxu0
    %3049 = vmatpush.bf16.msra.mxu0 0
    %3050 = vmatpush.bf16.msra.mxu0 0
    %3051 = vmatpush.bf16.msra.mxu0 0
    %3052 = vmatpush.bf16.msra.mxu0 0
    %3053 = vmatpush.bf16.msra.mxu0 0
    %3054 = vmatpush.bf16.msra.mxu0 0
    %3055 = vmatpush.bf16.msra.mxu0 0
    %3056 = vmatpush.bf16.msra.mxu0 %v3028
    %3057 = vmatmul.bf16.gmra.mxu0 %v1111
    %v3058 = vpop.f32.mrf.mxu0
    %v3059 = vadd.f32 0.0, %v3058
    %v3060 = vpop.f32.mrf.mxu0
    %3061 = vdwg.mxu0
    %3062 = vmatpush.bf16.msra.mxu0 0
    %3063 = vmatpush.bf16.msra.mxu0 0
    %3064 = vmatpush.bf16.msra.mxu0 0
    %3065 = vmatpush.bf16.msra.mxu0 0
    %3066 = vmatpush.bf16.msra.mxu0 0
    %3067 = vmatpush.bf16.msra.mxu0 0
    %3068 = vmatpush.bf16.msra.mxu0 0
    %3069 = vmatpush.bf16.msra.mxu0 %v3031
    %3070 = vmatmul.bf16.gmra.mxu0 %v1111
    %v3071 = vpop.f32.mrf.mxu0
    %v3072 = vadd.f32 0.0, %v3071
    %v3073 = vpop.f32.mrf.mxu0
    %3074 = vdwg.mxu0
    %3075 = vmatpush.bf16.msra.mxu0 0
    %3076 = vmatpush.bf16.msra.mxu0 0
    %3077 = vmatpush.bf16.msra.mxu0 0
    %3078 = vmatpush.bf16.msra.mxu0 0
    %3079 = vmatpush.bf16.msra.mxu0 0
    %3080 = vmatpush.bf16.msra.mxu0 0
    %3081 = vmatpush.bf16.msra.mxu0 0
    %3082 = vmatpush.bf16.msra.mxu0 %v3034
    %3083 = vmatmul.bf16.gmra.mxu0 %v1111
    %v3084 = vpop.f32.mrf.mxu0
    %v3085 = vadd.f32 0.0, %v3084
    %v3086 = vpop.f32.mrf.mxu0
    %3087 = vdwg.mxu0
    %v3089 = vsel %vm257, %v3000, 0
    %v3092 = vsel %vm257, %v3001, 0
    %v3095 = vsel %vm257, %v3002, 0
    %v3098 = vsel %vm257, %v3003, 0
    %3100 = vmatpush.bf16.msra.mxu0 0
    %3101 = vmatpush.bf16.msra.mxu0 0
    %3102 = vmatpush.bf16.msra.mxu0 0
    %3103 = vmatpush.bf16.msra.mxu0 0
    %3104 = vmatpush.bf16.msra.mxu0 0
    %3105 = vmatpush.bf16.msra.mxu0 0
    %3106 = vmatpush.bf16.msra.mxu0 0
    %3107 = vmatpush.bf16.msra.mxu0 %v3089
    %3108 = vmatmul.bf16.gmra.mxu0 %v1178
    %v3109 = vpop.f32.mrf.mxu0
    %v3110 = vadd.f32 %v3046, %v3109
    %v3111 = vpop.f32.mrf.mxu0
    %3112 = vdwg.mxu0
    %3113 = vmatpush.bf16.msra.mxu0 0
    %3114 = vmatpush.bf16.msra.mxu0 0
    %3115 = vmatpush.bf16.msra.mxu0 0
    %3116 = vmatpush.bf16.msra.mxu0 0
    %3117 = vmatpush.bf16.msra.mxu0 0
    %3118 = vmatpush.bf16.msra.mxu0 0
    %3119 = vmatpush.bf16.msra.mxu0 0
    %3120 = vmatpush.bf16.msra.mxu0 %v3092
    %3121 = vmatmul.bf16.gmra.mxu0 %v1178
    %v3122 = vpop.f32.mrf.mxu0
    %v3123 = vadd.f32 %v3059, %v3122
    %v3124 = vpop.f32.mrf.mxu0
    %3125 = vdwg.mxu0
    %3126 = vmatpush.bf16.msra.mxu0 0
    %3127 = vmatpush.bf16.msra.mxu0 0
    %3128 = vmatpush.bf16.msra.mxu0 0
    %3129 = vmatpush.bf16.msra.mxu0 0
    %3130 = vmatpush.bf16.msra.mxu0 0
    %3131 = vmatpush.bf16.msra.mxu0 0
    %3132 = vmatpush.bf16.msra.mxu0 0
    %3133 = vmatpush.bf16.msra.mxu0 %v3095
    %3134 = vmatmul.bf16.gmra.mxu0 %v1178
    %v3135 = vpop.f32.mrf.mxu0
    %v3136 = vadd.f32 %v3072, %v3135
    %v3137 = vpop.f32.mrf.mxu0
    %3138 = vdwg.mxu0
    %3139 = vmatpush.bf16.msra.mxu0 0
    %3140 = vmatpush.bf16.msra.mxu0 0
    %3141 = vmatpush.bf16.msra.mxu0 0
    %3142 = vmatpush.bf16.msra.mxu0 0
    %3143 = vmatpush.bf16.msra.mxu0 0
    %3144 = vmatpush.bf16.msra.mxu0 0
    %3145 = vmatpush.bf16.msra.mxu0 0
    %3146 = vmatpush.bf16.msra.mxu0 %v3098
    %3147 = vmatmul.bf16.gmra.mxu0 %v1178
    %v3148 = vpop.f32.mrf.mxu0
    %v3149 = vadd.f32 %v3085, %v3148
    %v3150 = vpop.f32.mrf.mxu0
    %3151 = vdwg.mxu0
    %3152 = vrot.lane.b32.xlu0 %v2980, 32
    %v3153 = vpop.permute.xlu0 %3152
    %3154 = vrot.lane.b32.xlu0 %v2981, 32
    %v3155 = vpop.permute.xlu0 %3154
    %3156 = vrot.lane.b32.xlu0 %v2982, 32
    %v3157 = vpop.permute.xlu0 %3156
    %3158 = vrot.lane.b32.xlu0 %v2983, 32
    %v3159 = vpop.permute.xlu0 %3158
    %v3160 = vsel %vm397, %v3157, %v3159
    %v3161 = vsel %vm397, %v3155, %v3157
    %v3162 = vsel %vm397, %v3153, %v3155
    %v3163 = vsel %vm397, %v3159, %v3153
    %v3164 = vmul.f32 %v3163, %v128
    %v3165 = vmul.f32 %v3162, %v129
    %v3166 = vmul.f32 %v3161, %v130
    %v3167 = vmul.f32 %v3160, %v131
    %v3168 = vpack.c.bf16 %v3164, %v3164
    %v3169 = vpack.c.bf16 %v3165, %v3165
    %v3170 = vpack.c.bf16 %v3166, %v3166
    %v3171 = vpack.c.bf16 %v3167, %v3167
    %v3173 = vsel %vm257, %v3168, 0
    %v3176 = vsel %vm257, %v3169, 0
    %v3179 = vsel %vm257, %v3170, 0
    %v3182 = vsel %vm257, %v3171, 0
    %3184 = vmatpush.bf16.msra.mxu0 0
    %3185 = vmatpush.bf16.msra.mxu0 0
    %3186 = vmatpush.bf16.msra.mxu0 0
    %3187 = vmatpush.bf16.msra.mxu0 0
    %3188 = vmatpush.bf16.msra.mxu0 0
    %3189 = vmatpush.bf16.msra.mxu0 0
    %3190 = vmatpush.bf16.msra.mxu0 0
    %3191 = vmatpush.bf16.msra.mxu0 %v3173
    %3192 = vmatmul.bf16.gmra.mxu0 %v1265
    %v3193 = vpop.f32.mrf.mxu0
    %v3194 = vadd.f32 0.0, %v3193
    %v3195 = vpop.f32.mrf.mxu0
    %3196 = vdwg.mxu0
    %3197 = vmatpush.bf16.msra.mxu0 0
    %3198 = vmatpush.bf16.msra.mxu0 0
    %3199 = vmatpush.bf16.msra.mxu0 0
    %3200 = vmatpush.bf16.msra.mxu0 0
    %3201 = vmatpush.bf16.msra.mxu0 0
    %3202 = vmatpush.bf16.msra.mxu0 0
    %3203 = vmatpush.bf16.msra.mxu0 0
    %3204 = vmatpush.bf16.msra.mxu0 %v3176
    %3205 = vmatmul.bf16.gmra.mxu0 %v1265
    %v3206 = vpop.f32.mrf.mxu0
    %v3207 = vadd.f32 0.0, %v3206
    %v3208 = vpop.f32.mrf.mxu0
    %3209 = vdwg.mxu0
    %3210 = vmatpush.bf16.msra.mxu0 0
    %3211 = vmatpush.bf16.msra.mxu0 0
    %3212 = vmatpush.bf16.msra.mxu0 0
    %3213 = vmatpush.bf16.msra.mxu0 0
    %3214 = vmatpush.bf16.msra.mxu0 0
    %3215 = vmatpush.bf16.msra.mxu0 0
    %3216 = vmatpush.bf16.msra.mxu0 0
    %3217 = vmatpush.bf16.msra.mxu0 %v3179
    %3218 = vmatmul.bf16.gmra.mxu0 %v1265
    %v3219 = vpop.f32.mrf.mxu0
    %v3220 = vadd.f32 0.0, %v3219
    %v3221 = vpop.f32.mrf.mxu0
    %3222 = vdwg.mxu0
    %3223 = vmatpush.bf16.msra.mxu0 0
    %3224 = vmatpush.bf16.msra.mxu0 0
    %3225 = vmatpush.bf16.msra.mxu0 0
    %3226 = vmatpush.bf16.msra.mxu0 0
    %3227 = vmatpush.bf16.msra.mxu0 0
    %3228 = vmatpush.bf16.msra.mxu0 0
    %3229 = vmatpush.bf16.msra.mxu0 0
    %3230 = vmatpush.bf16.msra.mxu0 %v3182
    %3231 = vmatmul.bf16.gmra.mxu0 %v1265
    %v3232 = vpop.f32.mrf.mxu0
    %v3233 = vadd.f32 0.0, %v3232
    %v3234 = vpop.f32.mrf.mxu0
    %3235 = vdwg.mxu0
    %v3236 = vadd.f32 %v3110, %v3194
    %v3237 = vadd.f32 %v3123, %v3207
    %v3238 = vadd.f32 %v3136, %v3220
    %v3239 = vadd.f32 %v3149, %v3233
    %3240 = vrot.lane.b32.xlu0 %v2980, 18
    %v3241 = vpop.permute.xlu0 %3240
    %3242 = vrot.lane.b32.xlu0 %v2981, 18
    %v3243 = vpop.permute.xlu0 %3242
    %3244 = vrot.lane.b32.xlu0 %v2982, 18
    %v3245 = vpop.permute.xlu0 %3244
    %3246 = vrot.lane.b32.xlu0 %v2983, 18
    %v3247 = vpop.permute.xlu0 %3246
    %v3248 = vsel %vm489, %v3245, %v3247
    %v3249 = vsel %vm489, %v3243, %v3245
    %v3250 = vsel %vm489, %v3241, %v3243
    %v3251 = vsel %vm489, %v3247, %v3241
    %v3252 = vmul.f32 %v3251, %v144
    %v3253 = vmul.f32 %v3250, %v145
    %v3254 = vmul.f32 %v3249, %v146
    %v3255 = vmul.f32 %v3248, %v147
    %v3256 = vpack.c.bf16 %v3252, %v3252
    %v3257 = vpack.c.bf16 %v3253, %v3253
    %v3258 = vpack.c.bf16 %v3254, %v3254
    %v3259 = vpack.c.bf16 %v3255, %v3255
    %v3261 = vsel %vm257, %v3256, 0
    %v3264 = vsel %vm257, %v3257, 0
    %v3267 = vsel %vm257, %v3258, 0
    %v3270 = vsel %vm257, %v3259, 0
    %3272 = vmatpush.bf16.msra.mxu0 0
    %3273 = vmatpush.bf16.msra.mxu0 0
    %3274 = vmatpush.bf16.msra.mxu0 0
    %3275 = vmatpush.bf16.msra.mxu0 0
    %3276 = vmatpush.bf16.msra.mxu0 0
    %3277 = vmatpush.bf16.msra.mxu0 0
    %3278 = vmatpush.bf16.msra.mxu0 0
    %3279 = vmatpush.bf16.msra.mxu0 %v3261
    %3280 = vmatmul.bf16.gmra.mxu0 %v1356
    %v3281 = vpop.f32.mrf.mxu0
    %v3282 = vadd.f32 0.0, %v3281
    %v3283 = vpop.f32.mrf.mxu0
    %3284 = vdwg.mxu0
    %3285 = vmatpush.bf16.msra.mxu0 0
    %3286 = vmatpush.bf16.msra.mxu0 0
    %3287 = vmatpush.bf16.msra.mxu0 0
    %3288 = vmatpush.bf16.msra.mxu0 0
    %3289 = vmatpush.bf16.msra.mxu0 0
    %3290 = vmatpush.bf16.msra.mxu0 0
    %3291 = vmatpush.bf16.msra.mxu0 0
    %3292 = vmatpush.bf16.msra.mxu0 %v3264
    %3293 = vmatmul.bf16.gmra.mxu0 %v1356
    %v3294 = vpop.f32.mrf.mxu0
    %v3295 = vadd.f32 0.0, %v3294
    %v3296 = vpop.f32.mrf.mxu0
    %3297 = vdwg.mxu0
    %3298 = vmatpush.bf16.msra.mxu0 0
    %3299 = vmatpush.bf16.msra.mxu0 0
    %3300 = vmatpush.bf16.msra.mxu0 0
    %3301 = vmatpush.bf16.msra.mxu0 0
    %3302 = vmatpush.bf16.msra.mxu0 0
    %3303 = vmatpush.bf16.msra.mxu0 0
    %3304 = vmatpush.bf16.msra.mxu0 0
    %3305 = vmatpush.bf16.msra.mxu0 %v3267
    %3306 = vmatmul.bf16.gmra.mxu0 %v1356
    %v3307 = vpop.f32.mrf.mxu0
    %v3308 = vadd.f32 0.0, %v3307
    %v3309 = vpop.f32.mrf.mxu0
    %3310 = vdwg.mxu0
    %3311 = vmatpush.bf16.msra.mxu0 0
    %3312 = vmatpush.bf16.msra.mxu0 0
    %3313 = vmatpush.bf16.msra.mxu0 0
    %3314 = vmatpush.bf16.msra.mxu0 0
    %3315 = vmatpush.bf16.msra.mxu0 0
    %3316 = vmatpush.bf16.msra.mxu0 0
    %3317 = vmatpush.bf16.msra.mxu0 0
    %3318 = vmatpush.bf16.msra.mxu0 %v3270
    %3319 = vmatmul.bf16.gmra.mxu0 %v1356
    %v3320 = vpop.f32.mrf.mxu0
    %v3321 = vadd.f32 0.0, %v3320
    %v3322 = vpop.f32.mrf.mxu0
    %3323 = vdwg.mxu0
    %v3324 = vadd.f32 %v3236, %v3282
    %v3325 = vadd.f32 %v3237, %v3295
    %v3326 = vadd.f32 %v3238, %v3308
    %v3327 = vadd.f32 %v3239, %v3321
    %3328 = vrot.lane.b32.xlu0 %v2980, 17
    %v3329 = vpop.permute.xlu0 %3328
    %3330 = vrot.lane.b32.xlu0 %v2981, 17
    %v3331 = vpop.permute.xlu0 %3330
    %3332 = vrot.lane.b32.xlu0 %v2982, 17
    %v3333 = vpop.permute.xlu0 %3332
    %3334 = vrot.lane.b32.xlu0 %v2983, 17
    %v3335 = vpop.permute.xlu0 %3334
    %v3336 = vsel %vm581, %v3333, %v3335
    %v3337 = vsel %vm581, %v3331, %v3333
    %v3338 = vsel %vm581, %v3329, %v3331
    %v3339 = vsel %vm581, %v3335, %v3329
    %v3340 = vmul.f32 %v3339, %v156
    %v3341 = vmul.f32 %v3338, %v157
    %v3342 = vmul.f32 %v3337, %v158
    %v3343 = vmul.f32 %v3336, %v159
    %v3344 = vpack.c.bf16 %v3340, %v3340
    %v3345 = vpack.c.bf16 %v3341, %v3341
    %v3346 = vpack.c.bf16 %v3342, %v3342
    %v3347 = vpack.c.bf16 %v3343, %v3343
    %v3349 = vsel %vm257, %v3344, 0
    %v3352 = vsel %vm257, %v3345, 0
    %v3355 = vsel %vm257, %v3346, 0
    %v3358 = vsel %vm257, %v3347, 0
    %3360 = vmatpush.bf16.msra.mxu0 0
    %3361 = vmatpush.bf16.msra.mxu0 0
    %3362 = vmatpush.bf16.msra.mxu0 0
    %3363 = vmatpush.bf16.msra.mxu0 0
    %3364 = vmatpush.bf16.msra.mxu0 0
    %3365 = vmatpush.bf16.msra.mxu0 0
    %3366 = vmatpush.bf16.msra.mxu0 0
    %3367 = vmatpush.bf16.msra.mxu0 %v3349
    %3368 = vmatmul.bf16.gmra.mxu0 %v1447
    %v3369 = vpop.f32.mrf.mxu0
    %v3370 = vadd.f32 0.0, %v3369
    %v3371 = vpop.f32.mrf.mxu0
    %3372 = vdwg.mxu0
    %3373 = vmatpush.bf16.msra.mxu0 0
    %3374 = vmatpush.bf16.msra.mxu0 0
    %3375 = vmatpush.bf16.msra.mxu0 0
    %3376 = vmatpush.bf16.msra.mxu0 0
    %3377 = vmatpush.bf16.msra.mxu0 0
    %3378 = vmatpush.bf16.msra.mxu0 0
    %3379 = vmatpush.bf16.msra.mxu0 0
    %3380 = vmatpush.bf16.msra.mxu0 %v3352
    %3381 = vmatmul.bf16.gmra.mxu0 %v1447
    %v3382 = vpop.f32.mrf.mxu0
    %v3383 = vadd.f32 0.0, %v3382
    %v3384 = vpop.f32.mrf.mxu0
    %3385 = vdwg.mxu0
    %3386 = vmatpush.bf16.msra.mxu0 0
    %3387 = vmatpush.bf16.msra.mxu0 0
    %3388 = vmatpush.bf16.msra.mxu0 0
    %3389 = vmatpush.bf16.msra.mxu0 0
    %3390 = vmatpush.bf16.msra.mxu0 0
    %3391 = vmatpush.bf16.msra.mxu0 0
    %3392 = vmatpush.bf16.msra.mxu0 0
    %3393 = vmatpush.bf16.msra.mxu0 %v3355
    %3394 = vmatmul.bf16.gmra.mxu0 %v1447
    %v3395 = vpop.f32.mrf.mxu0
    %v3396 = vadd.f32 0.0, %v3395
    %v3397 = vpop.f32.mrf.mxu0
    %3398 = vdwg.mxu0
    %3399 = vmatpush.bf16.msra.mxu0 0
    %3400 = vmatpush.bf16.msra.mxu0 0
    %3401 = vmatpush.bf16.msra.mxu0 0
    %3402 = vmatpush.bf16.msra.mxu0 0
    %3403 = vmatpush.bf16.msra.mxu0 0
    %3404 = vmatpush.bf16.msra.mxu0 0
    %3405 = vmatpush.bf16.msra.mxu0 0
    %3406 = vmatpush.bf16.msra.mxu0 %v3358
    %3407 = vmatmul.bf16.gmra.mxu0 %v1447
    %v3408 = vpop.f32.mrf.mxu0
    %v3409 = vadd.f32 0.0, %v3408
    %v3410 = vpop.f32.mrf.mxu0
    %3411 = vdwg.mxu0
    %v3412 = vadd.f32 %v3324, %v3370
    %v3413 = vadd.f32 %v3325, %v3383
    %v3414 = vadd.f32 %v3326, %v3396
    %v3415 = vadd.f32 %v3327, %v3409
    %3416 = vrot.lane.b32.xlu0 %v2980, 16
    %v3417 = vpop.permute.xlu0 %3416
    %3418 = vrot.lane.b32.xlu0 %v2981, 16
    %v3419 = vpop.permute.xlu0 %3418
    %3420 = vrot.lane.b32.xlu0 %v2982, 16
    %v3421 = vpop.permute.xlu0 %3420
    %3422 = vrot.lane.b32.xlu0 %v2983, 16
    %v3423 = vpop.permute.xlu0 %3422
    %v3424 = vsel %vm673, %v3421, %v3423
    %v3425 = vsel %vm673, %v3419, %v3421
    %v3426 = vsel %vm673, %v3417, %v3419
    %v3427 = vsel %vm673, %v3423, %v3417
    %v3428 = vmul.f32 %v3427, %v168
    %v3429 = vmul.f32 %v3426, %v169
    %v3430 = vmul.f32 %v3425, %v170
    %v3431 = vmul.f32 %v3424, %v171
    %v3432 = vpack.c.bf16 %v3428, %v3428
    %v3433 = vpack.c.bf16 %v3429, %v3429
    %v3434 = vpack.c.bf16 %v3430, %v3430
    %v3435 = vpack.c.bf16 %v3431, %v3431
    %v3437 = vsel %vm257, %v3432, 0
    %v3440 = vsel %vm257, %v3433, 0
    %v3443 = vsel %vm257, %v3434, 0
    %v3446 = vsel %vm257, %v3435, 0
    %3448 = vmatpush.bf16.msra.mxu0 0
    %3449 = vmatpush.bf16.msra.mxu0 0
    %3450 = vmatpush.bf16.msra.mxu0 0
    %3451 = vmatpush.bf16.msra.mxu0 0
    %3452 = vmatpush.bf16.msra.mxu0 0
    %3453 = vmatpush.bf16.msra.mxu0 0
    %3454 = vmatpush.bf16.msra.mxu0 0
    %3455 = vmatpush.bf16.msra.mxu0 %v3437
    %3456 = vmatmul.bf16.gmra.mxu0 %v1538
    %v3457 = vpop.f32.mrf.mxu0
    %v3458 = vadd.f32 0.0, %v3457
    %v3459 = vpop.f32.mrf.mxu0
    %3460 = vdwg.mxu0
    %3461 = vmatpush.bf16.msra.mxu0 0
    %3462 = vmatpush.bf16.msra.mxu0 0
    %3463 = vmatpush.bf16.msra.mxu0 0
    %3464 = vmatpush.bf16.msra.mxu0 0
    %3465 = vmatpush.bf16.msra.mxu0 0
    %3466 = vmatpush.bf16.msra.mxu0 0
    %3467 = vmatpush.bf16.msra.mxu0 0
    %3468 = vmatpush.bf16.msra.mxu0 %v3440
    %3469 = vmatmul.bf16.gmra.mxu0 %v1538
    %v3470 = vpop.f32.mrf.mxu0
    %v3471 = vadd.f32 0.0, %v3470
    %v3472 = vpop.f32.mrf.mxu0
    %3473 = vdwg.mxu0
    %3474 = vmatpush.bf16.msra.mxu0 0
    %3475 = vmatpush.bf16.msra.mxu0 0
    %3476 = vmatpush.bf16.msra.mxu0 0
    %3477 = vmatpush.bf16.msra.mxu0 0
    %3478 = vmatpush.bf16.msra.mxu0 0
    %3479 = vmatpush.bf16.msra.mxu0 0
    %3480 = vmatpush.bf16.msra.mxu0 0
    %3481 = vmatpush.bf16.msra.mxu0 %v3443
    %3482 = vmatmul.bf16.gmra.mxu0 %v1538
    %v3483 = vpop.f32.mrf.mxu0
    %v3484 = vadd.f32 0.0, %v3483
    %v3485 = vpop.f32.mrf.mxu0
    %3486 = vdwg.mxu0
    %3487 = vmatpush.bf16.msra.mxu0 0
    %3488 = vmatpush.bf16.msra.mxu0 0
    %3489 = vmatpush.bf16.msra.mxu0 0
    %3490 = vmatpush.bf16.msra.mxu0 0
    %3491 = vmatpush.bf16.msra.mxu0 0
    %3492 = vmatpush.bf16.msra.mxu0 0
    %3493 = vmatpush.bf16.msra.mxu0 0
    %3494 = vmatpush.bf16.msra.mxu0 %v3446
    %3495 = vmatmul.bf16.gmra.mxu0 %v1538
    %v3496 = vpop.f32.mrf.mxu0
    %v3497 = vadd.f32 0.0, %v3496
    %v3498 = vpop.f32.mrf.mxu0
    %3499 = vdwg.mxu0
    %v3500 = vadd.f32 %v3412, %v3458
    %v3501 = vadd.f32 %v3413, %v3471
    %v3502 = vadd.f32 %v3414, %v3484
    %v3503 = vadd.f32 %v3415, %v3497
    %3504 = vrot.lane.b32.xlu0 %v2980, 2
    %v3505 = vpop.permute.xlu0 %3504
    %3506 = vrot.lane.b32.xlu0 %v2981, 2
    %v3507 = vpop.permute.xlu0 %3506
    %3508 = vrot.lane.b32.xlu0 %v2982, 2
    %v3509 = vpop.permute.xlu0 %3508
    %3510 = vrot.lane.b32.xlu0 %v2983, 2
    %v3511 = vpop.permute.xlu0 %3510
    %v3512 = vsel %vm765, %v3509, %v3511
    %v3513 = vsel %vm765, %v3507, %v3509
    %v3514 = vsel %vm765, %v3505, %v3507
    %v3515 = vsel %vm765, %v3511, %v3505
    %v3516 = vmul.f32 %v3515, %v184
    %v3517 = vmul.f32 %v3514, %v185
    %v3518 = vmul.f32 %v3513, %v186
    %v3519 = vmul.f32 %v3512, %v187
    %v3520 = vpack.c.bf16 %v3516, %v3516
    %v3521 = vpack.c.bf16 %v3517, %v3517
    %v3522 = vpack.c.bf16 %v3518, %v3518
    %v3523 = vpack.c.bf16 %v3519, %v3519
    %v3525 = vsel %vm257, %v3520, 0
    %v3528 = vsel %vm257, %v3521, 0
    %v3531 = vsel %vm257, %v3522, 0
    %v3534 = vsel %vm257, %v3523, 0
    %3536 = vmatpush.bf16.msra.mxu0 0
    %3537 = vmatpush.bf16.msra.mxu0 0
    %3538 = vmatpush.bf16.msra.mxu0 0
    %3539 = vmatpush.bf16.msra.mxu0 0
    %3540 = vmatpush.bf16.msra.mxu0 0
    %3541 = vmatpush.bf16.msra.mxu0 0
    %3542 = vmatpush.bf16.msra.mxu0 0
    %3543 = vmatpush.bf16.msra.mxu0 %v3525
    %3544 = vmatmul.bf16.gmra.mxu0 %v1629
    %v3545 = vpop.f32.mrf.mxu0
    %v3546 = vadd.f32 0.0, %v3545
    %v3547 = vpop.f32.mrf.mxu0
    %3548 = vdwg.mxu0
    %3549 = vmatpush.bf16.msra.mxu0 0
    %3550 = vmatpush.bf16.msra.mxu0 0
    %3551 = vmatpush.bf16.msra.mxu0 0
    %3552 = vmatpush.bf16.msra.mxu0 0
    %3553 = vmatpush.bf16.msra.mxu0 0
    %3554 = vmatpush.bf16.msra.mxu0 0
    %3555 = vmatpush.bf16.msra.mxu0 0
    %3556 = vmatpush.bf16.msra.mxu0 %v3528
    %3557 = vmatmul.bf16.gmra.mxu0 %v1629
    %v3558 = vpop.f32.mrf.mxu0
    %v3559 = vadd.f32 0.0, %v3558
    %v3560 = vpop.f32.mrf.mxu0
    %3561 = vdwg.mxu0
    %3562 = vmatpush.bf16.msra.mxu0 0
    %3563 = vmatpush.bf16.msra.mxu0 0
    %3564 = vmatpush.bf16.msra.mxu0 0
    %3565 = vmatpush.bf16.msra.mxu0 0
    %3566 = vmatpush.bf16.msra.mxu0 0
    %3567 = vmatpush.bf16.msra.mxu0 0
    %3568 = vmatpush.bf16.msra.mxu0 0
    %3569 = vmatpush.bf16.msra.mxu0 %v3531
    %3570 = vmatmul.bf16.gmra.mxu0 %v1629
    %v3571 = vpop.f32.mrf.mxu0
    %v3572 = vadd.f32 0.0, %v3571
    %v3573 = vpop.f32.mrf.mxu0
    %3574 = vdwg.mxu0
    %3575 = vmatpush.bf16.msra.mxu0 0
    %3576 = vmatpush.bf16.msra.mxu0 0
    %3577 = vmatpush.bf16.msra.mxu0 0
    %3578 = vmatpush.bf16.msra.mxu0 0
    %3579 = vmatpush.bf16.msra.mxu0 0
    %3580 = vmatpush.bf16.msra.mxu0 0
    %3581 = vmatpush.bf16.msra.mxu0 0
    %3582 = vmatpush.bf16.msra.mxu0 %v3534
    %3583 = vmatmul.bf16.gmra.mxu0 %v1629
    %v3584 = vpop.f32.mrf.mxu0
    %v3585 = vadd.f32 0.0, %v3584
    %v3586 = vpop.f32.mrf.mxu0
    %3587 = vdwg.mxu0
    %v3588 = vadd.f32 %v3500, %v3546
    %v3589 = vadd.f32 %v3501, %v3559
    %v3590 = vadd.f32 %v3502, %v3572
    %v3591 = vadd.f32 %v3503, %v3585
    %3592 = vrot.lane.b32.xlu0 %v2980, 1
    %v3593 = vpop.permute.xlu0 %3592
    %3594 = vrot.lane.b32.xlu0 %v2981, 1
    %v3595 = vpop.permute.xlu0 %3594
    %3596 = vrot.lane.b32.xlu0 %v2982, 1
    %v3597 = vpop.permute.xlu0 %3596
    %3598 = vrot.lane.b32.xlu0 %v2983, 1
    %v3599 = vpop.permute.xlu0 %3598
    %v3600 = vsel %vm857, %v3597, %v3599
    %v3601 = vsel %vm857, %v3595, %v3597
    %v3602 = vsel %vm857, %v3593, %v3595
    %v3603 = vsel %vm857, %v3599, %v3593
    %v3604 = vmul.f32 %v3603, %v196
    %v3605 = vmul.f32 %v3602, %v197
    %v3606 = vmul.f32 %v3601, %v198
    %v3607 = vmul.f32 %v3600, %v199
    %v3608 = vpack.c.bf16 %v3604, %v3604
    %v3609 = vpack.c.bf16 %v3605, %v3605
    %v3610 = vpack.c.bf16 %v3606, %v3606
    %v3611 = vpack.c.bf16 %v3607, %v3607
    %v3613 = vsel %vm257, %v3608, 0
    %v3616 = vsel %vm257, %v3609, 0
    %v3619 = vsel %vm257, %v3610, 0
    %v3622 = vsel %vm257, %v3611, 0
    %3624 = vmatpush.bf16.msra.mxu0 0
    %3625 = vmatpush.bf16.msra.mxu0 0
    %3626 = vmatpush.bf16.msra.mxu0 0
    %3627 = vmatpush.bf16.msra.mxu0 0
    %3628 = vmatpush.bf16.msra.mxu0 0
    %3629 = vmatpush.bf16.msra.mxu0 0
    %3630 = vmatpush.bf16.msra.mxu0 0
    %3631 = vmatpush.bf16.msra.mxu0 %v3613
    %3632 = vmatmul.bf16.gmra.mxu0 %v1720
    %v3633 = vpop.f32.mrf.mxu0
    %v3634 = vadd.f32 0.0, %v3633
    %v3635 = vpop.f32.mrf.mxu0
    %3636 = vdwg.mxu0
    %3637 = vmatpush.bf16.msra.mxu0 0
    %3638 = vmatpush.bf16.msra.mxu0 0
    %3639 = vmatpush.bf16.msra.mxu0 0
    %3640 = vmatpush.bf16.msra.mxu0 0
    %3641 = vmatpush.bf16.msra.mxu0 0
    %3642 = vmatpush.bf16.msra.mxu0 0
    %3643 = vmatpush.bf16.msra.mxu0 0
    %3644 = vmatpush.bf16.msra.mxu0 %v3616
    %3645 = vmatmul.bf16.gmra.mxu0 %v1720
    %v3646 = vpop.f32.mrf.mxu0
    %v3647 = vadd.f32 0.0, %v3646
    %v3648 = vpop.f32.mrf.mxu0
    %3649 = vdwg.mxu0
    %3650 = vmatpush.bf16.msra.mxu0 0
    %3651 = vmatpush.bf16.msra.mxu0 0
    %3652 = vmatpush.bf16.msra.mxu0 0
    %3653 = vmatpush.bf16.msra.mxu0 0
    %3654 = vmatpush.bf16.msra.mxu0 0
    %3655 = vmatpush.bf16.msra.mxu0 0
    %3656 = vmatpush.bf16.msra.mxu0 0
    %3657 = vmatpush.bf16.msra.mxu0 %v3619
    %3658 = vmatmul.bf16.gmra.mxu0 %v1720
    %v3659 = vpop.f32.mrf.mxu0
    %v3660 = vadd.f32 0.0, %v3659
    %v3661 = vpop.f32.mrf.mxu0
    %3662 = vdwg.mxu0
    %3663 = vmatpush.bf16.msra.mxu0 0
    %3664 = vmatpush.bf16.msra.mxu0 0
    %3665 = vmatpush.bf16.msra.mxu0 0
    %3666 = vmatpush.bf16.msra.mxu0 0
    %3667 = vmatpush.bf16.msra.mxu0 0
    %3668 = vmatpush.bf16.msra.mxu0 0
    %3669 = vmatpush.bf16.msra.mxu0 0
    %3670 = vmatpush.bf16.msra.mxu0 %v3622
    %3671 = vmatmul.bf16.gmra.mxu0 %v1720
    %v3672 = vpop.f32.mrf.mxu0
    %v3673 = vadd.f32 0.0, %v3672
    %v3674 = vpop.f32.mrf.mxu0
    %3675 = vdwg.mxu0
    %v3676 = vadd.f32 %v3588, %v3634
    %v3677 = vadd.f32 %v3589, %v3647
    %v3678 = vadd.f32 %v3590, %v3660
    %v3679 = vadd.f32 %v3591, %v3673
    %v3680 = vpack.c.bf16 %v2980, %v2980
    %v3681 = vpack.c.bf16 %v2981, %v2981
    %v3682 = vpack.c.bf16 %v2982, %v2982
    %v3683 = vpack.c.bf16 %v2983, %v2983
    %v3685 = vsel %vm257, %v3680, 0
    %v3688 = vsel %vm257, %v3681, 0
    %v3691 = vsel %vm257, %v3682, 0
    %v3694 = vsel %vm257, %v3683, 0
    %3696 = vmatpush.bf16.msra.mxu0 0
    %3697 = vmatpush.bf16.msra.mxu0 0
    %3698 = vmatpush.bf16.msra.mxu0 0
    %3699 = vmatpush.bf16.msra.mxu0 0
    %3700 = vmatpush.bf16.msra.mxu0 0
    %3701 = vmatpush.bf16.msra.mxu0 0
    %3702 = vmatpush.bf16.msra.mxu0 0
    %3703 = vmatpush.bf16.msra.mxu0 %v3685
    %3704 = vmatmul.bf16.gmra.mxu0 %v1795
    %v3705 = vpop.f32.mrf.mxu0
    %v3706 = vadd.f32 0.0, %v3705
    %v3707 = vpop.f32.mrf.mxu0
    %3708 = vdwg.mxu0
    %3709 = vmatpush.bf16.msra.mxu0 0
    %3710 = vmatpush.bf16.msra.mxu0 0
    %3711 = vmatpush.bf16.msra.mxu0 0
    %3712 = vmatpush.bf16.msra.mxu0 0
    %3713 = vmatpush.bf16.msra.mxu0 0
    %3714 = vmatpush.bf16.msra.mxu0 0
    %3715 = vmatpush.bf16.msra.mxu0 0
    %3716 = vmatpush.bf16.msra.mxu0 %v3688
    %3717 = vmatmul.bf16.gmra.mxu0 %v1795
    %v3718 = vpop.f32.mrf.mxu0
    %v3719 = vadd.f32 0.0, %v3718
    %v3720 = vpop.f32.mrf.mxu0
    %3721 = vdwg.mxu0
    %3722 = vmatpush.bf16.msra.mxu0 0
    %3723 = vmatpush.bf16.msra.mxu0 0
    %3724 = vmatpush.bf16.msra.mxu0 0
    %3725 = vmatpush.bf16.msra.mxu0 0
    %3726 = vmatpush.bf16.msra.mxu0 0
    %3727 = vmatpush.bf16.msra.mxu0 0
    %3728 = vmatpush.bf16.msra.mxu0 0
    %3729 = vmatpush.bf16.msra.mxu0 %v3691
    %3730 = vmatmul.bf16.gmra.mxu0 %v1795
    %v3731 = vpop.f32.mrf.mxu0
    %v3732 = vadd.f32 0.0, %v3731
    %v3733 = vpop.f32.mrf.mxu0
    %3734 = vdwg.mxu0
    %3735 = vmatpush.bf16.msra.mxu0 0
    %3736 = vmatpush.bf16.msra.mxu0 0
    %3737 = vmatpush.bf16.msra.mxu0 0
    %3738 = vmatpush.bf16.msra.mxu0 0
    %3739 = vmatpush.bf16.msra.mxu0 0
    %3740 = vmatpush.bf16.msra.mxu0 0
    %3741 = vmatpush.bf16.msra.mxu0 0
    %3742 = vmatpush.bf16.msra.mxu0 %v3694
    %3743 = vmatmul.bf16.gmra.mxu0 %v1795
    %v3744 = vpop.f32.mrf.mxu0
    %v3745 = vadd.f32 0.0, %v3744
    %v3746 = vpop.f32.mrf.mxu0
    %3747 = vdwg.mxu0
    %v3748 = vadd.f32 %v3676, %v3706
    %v3749 = vadd.f32 %v3677, %v3719
    %v3750 = vadd.f32 %v3678, %v3732
    %v3751 = vadd.f32 %v3679, %v3745
    %vm3752 = vcmp.gt.f32.partialorder %v3748, 0.0
    %vm3753 = vcmp.gt.f32.partialorder %v3749, 0.0
    %vm3754 = vcmp.gt.f32.partialorder %v3750, 0.0
    %vm3755 = vcmp.gt.f32.partialorder %v3751, 0.0
    %v3756 = vmul.f32 %v1872, %v3748
    %v3757 = vmul.f32 %v1872, %v3749
    %v3758 = vmul.f32 %v1872, %v3750
    %v3759 = vmul.f32 %v1872, %v3751
    %v3760 = vsel %vm3752, %v3748, %v3756
    %v3761 = vsel %vm3753, %v3749, %v3757
    %v3762 = vsel %vm3754, %v3750, %v3758
    %v3763 = vsel %vm3755, %v3751, %v3759
    %v3764 = vadd.f32 %v3760, %v3761
    %v3765 = vadd.f32 %v3764, %v3762
    %v3766 = vadd.f32 %v3765, %v3763
    %3767 = vadd.xlane.f32.xlu0 %v3766
    %v3768 = vpop.xlane.xlu0 %3767
    %v3769 = vmul.f32 %v3768, 0.001953125
    %v3770 = vmul.f32 %v3760, %v3760
    %v3771 = vmul.f32 %v3761, %v3761
    %v3772 = vmul.f32 %v3762, %v3762
    %v3773 = vmul.f32 %v3763, %v3763
    %v3774 = vadd.f32 %v3770, %v3771
    %v3775 = vadd.f32 %v3774, %v3772
    %v3776 = vadd.f32 %v3775, %v3773
    %3777 = vadd.xlane.f32.xlu0 %v3776
    %v3778 = vpop.xlane.xlu0 %3777
    %v3779 = vmul.f32 %v3778, 0.001953125
    %v3780 = vmul.f32 %v3769, %v3769
    %v3781 = vsub.f32 %v3779, %v3780
    %v3782 = vsub.f32 %v3760, %v3769
    %v3783 = vsub.f32 %v3761, %v3769
    %v3784 = vsub.f32 %v3762, %v3769
    %v3785 = vsub.f32 %v3763, %v3769
    %v3786 = vadd.f32 %v3781, 1e-05
    %v3787 = vrsqrt.pop %v3786
    %v3788 = vmul.f32 %v3787, %v3786
    %v3789 = vmul.f32 %v3788, %v3787
    %v3790 = vmul.f32 0.5, %v3789
    %v3791 = vsub.f32 1.5, %v3790
    %v3792 = vmul.f32 %v3787, %v3791
    %vm3793 = vweird.f32 %v3786
    %vm3794 = vweird.f32 %v3787
    %vm3795 = vmor %vm3793, %vm3794
    %v3796 = vsel %vm3795, %v3787, %v3792
    %v3797 = vmul.f32 %v3782, %v3796
    %v3798 = vmul.f32 %v3783, %v3796
    %v3799 = vmul.f32 %v3784, %v3796
    %v3800 = vmul.f32 %v3785, %v3796
    %v3801 = vadd.f32 %v3797, %v1066
    %v3802 = vadd.f32 %v3798, %v1067
    %v3803 = vadd.f32 %v3799, %v1068
    %v3804 = vadd.f32 %v3800, %v1069
    %v3805 = vmul.f32 %v3801, %v3801
    %v3806 = vmul.f32 %v3802, %v3802
    %v3807 = vmul.f32 %v3803, %v3803
    %v3808 = vmul.f32 %v3804, %v3804
    %v3809 = vrot.slane %v3805, 7
    %v3810 = vrot.slane %v3806, 7
    %v3811 = vrot.slane %v3807, 7
    %v3812 = vrot.slane %v3808, 7
    %v3813 = vmul.f32 %v3809, %v204
    %v3814 = vmul.f32 %v3810, %v204
    %v3815 = vmul.f32 %v3811, %v204
    %v3816 = vmul.f32 %v3812, %v204
    %v3817 = vadd.f32 %v3805, %v3813
    %v3818 = vadd.f32 %v3806, %v3814
    %v3819 = vadd.f32 %v3807, %v3815
    %v3820 = vadd.f32 %v3808, %v3816
    %v3821 = vmul.f32 %v3817, 5e-05
    %v3822 = vmul.f32 %v3818, 5e-05
    %v3823 = vmul.f32 %v3819, 5e-05
    %v3824 = vmul.f32 %v3820, 5e-05
    %v3825 = vadd.f32 %v3821, 1.0
    %v3826 = vadd.f32 %v3822, 1.0
    %v3827 = vadd.f32 %v3823, 1.0
    %v3828 = vadd.f32 %v3824, 1.0
    %v3829 = vrsqrt.pop %v3825
    %v3830 = vmul.f32 %v3829, %v3825
    %v3831 = vmul.f32 %v3830, %v3829
    %v3832 = vmul.f32 0.5, %v3831
    %v3833 = vsub.f32 1.5, %v3832
    %v3834 = vmul.f32 %v3829, %v3833
    %vm3835 = vweird.f32 %v3825
    %vm3836 = vweird.f32 %v3829
    %vm3837 = vmor %vm3835, %vm3836
    %v3838 = vsel %vm3837, %v3829, %v3834
    %v3839 = vrsqrt.pop %v3826
    %v3840 = vmul.f32 %v3839, %v3826
    %v3841 = vmul.f32 %v3840, %v3839
    %v3842 = vmul.f32 0.5, %v3841
    %v3843 = vsub.f32 1.5, %v3842
    %v3844 = vmul.f32 %v3839, %v3843
    %vm3845 = vweird.f32 %v3826
    %vm3846 = vweird.f32 %v3839
    %vm3847 = vmor %vm3845, %vm3846
    %v3848 = vsel %vm3847, %v3839, %v3844
    %v3849 = vrsqrt.pop %v3827
    %v3850 = vmul.f32 %v3849, %v3827
    %v3851 = vmul.f32 %v3850, %v3849
    %v3852 = vmul.f32 0.5, %v3851
    %v3853 = vsub.f32 1.5, %v3852
    %v3854 = vmul.f32 %v3849, %v3853
    %vm3855 = vweird.f32 %v3827
    %vm3856 = vweird.f32 %v3849
    %vm3857 = vmor %vm3855, %vm3856
    %v3858 = vsel %vm3857, %v3849, %v3854
    %v3859 = vrsqrt.pop %v3828
    %v3860 = vmul.f32 %v3859, %v3828
    %v3861 = vmul.f32 %v3860, %v3859
    %v3862 = vmul.f32 0.5, %v3861
    %v3863 = vsub.f32 1.5, %v3862
    %v3864 = vmul.f32 %v3859, %v3863
    %vm3865 = vweird.f32 %v3828
    %vm3866 = vweird.f32 %v3859
    %vm3867 = vmor %vm3865, %vm3866
    %v3868 = vsel %vm3867, %v3859, %v3864
    %v3869 = vrsqrt.pop %v3838
    %v3870 = vmul.f32 %v3869, %v3838
    %v3871 = vmul.f32 %v3870, %v3869
    %v3872 = vmul.f32 0.5, %v3871
    %v3873 = vsub.f32 1.5, %v3872
    %v3874 = vmul.f32 %v3869, %v3873
    %v3875 = vmul.f32 %v3838, %v3874
    %vm3876 = vcmp.eq.f32.partialorder %v3838, inf
    %v3877 = vsel %vm3876, %v3838, %v3875
    %vm3878 = vcmp.eq.f32.partialorder %v3838, 0.0
    %v3879 = vand.u32 %v3838, 2147483648
    %v3880 = vsel %vm3878, %v3879, %v3877
    %v3881 = vrsqrt.pop %v3848
    %v3882 = vmul.f32 %v3881, %v3848
    %v3883 = vmul.f32 %v3882, %v3881
    %v3884 = vmul.f32 0.5, %v3883
    %v3885 = vsub.f32 1.5, %v3884
    %v3886 = vmul.f32 %v3881, %v3885
    %v3887 = vmul.f32 %v3848, %v3886
    %vm3888 = vcmp.eq.f32.partialorder %v3848, inf
    %v3889 = vsel %vm3888, %v3848, %v3887
    %vm3890 = vcmp.eq.f32.partialorder %v3848, 0.0
    %v3891 = vand.u32 %v3848, 2147483648
    %v3892 = vsel %vm3890, %v3891, %v3889
    %v3893 = vrsqrt.pop %v3858
    %v3894 = vmul.f32 %v3893, %v3858
    %v3895 = vmul.f32 %v3894, %v3893
    %v3896 = vmul.f32 0.5, %v3895
    %v3897 = vsub.f32 1.5, %v3896
    %v3898 = vmul.f32 %v3893, %v3897
    %v3899 = vmul.f32 %v3858, %v3898
    %vm3900 = vcmp.eq.f32.partialorder %v3858, inf
    %v3901 = vsel %vm3900, %v3858, %v3899
    %vm3902 = vcmp.eq.f32.partialorder %v3858, 0.0
    %v3903 = vand.u32 %v3858, 2147483648
    %v3904 = vsel %vm3902, %v3903, %v3901
    %v3905 = vrsqrt.pop %v3868
    %v3906 = vmul.f32 %v3905, %v3868
    %v3907 = vmul.f32 %v3906, %v3905
    %v3908 = vmul.f32 0.5, %v3907
    %v3909 = vsub.f32 1.5, %v3908
    %v3910 = vmul.f32 %v3905, %v3909
    %v3911 = vmul.f32 %v3868, %v3910
    %vm3912 = vcmp.eq.f32.partialorder %v3868, inf
    %v3913 = vsel %vm3912, %v3868, %v3911
    %vm3914 = vcmp.eq.f32.partialorder %v3868, 0.0
    %v3915 = vand.u32 %v3868, 2147483648
    %v3916 = vsel %vm3914, %v3915, %v3913
    %v3917 = vmul.f32 %v3838, %v3880
    %v3918 = vmul.f32 %v3848, %v3892
    %v3919 = vmul.f32 %v3858, %v3904
    %v3920 = vmul.f32 %v3868, %v3916
    %v3921 = vmul.f32 %v3801, %v3917
    %v3922 = vmul.f32 %v3802, %v3918
    %v3923 = vmul.f32 %v3803, %v3919
    %v3924 = vmul.f32 %v3804, %v3920
    %3925 = vst [vmem:[#allocation2] sm:$0xff] %v3921
    %3926 = vst [vmem:[#allocation2 + $0x8] sm:$0xff] %v3922
    %3927 = vst [vmem:[#allocation2 + $0x10] sm:$0xff] %v3923
    %3928 = vst [vmem:[#allocation2 + $0x18] sm:$0xff] %v3924
    // Predicated region
    $region26: #{_rcl_forward.1} parent=1 // pred_check
      _
    $region27: #{_rcl_forward.1} parent=1 // pred_check_branch
      %3930 = sbr.rel (0) target = $region29
    $region28: #{_rcl_forward.1} parent=1 // pred_region
      %3932 = vsyncadd [#allocation3], 0
      %s3934 = sshll.u32 [#allocation2], 4
      %s3935 = int_to_ptr.vmem [resolvable:$true] %s3934
      %s3936 = sshll.u32 %s6, 4
      %s3937 = int_to_ptr.hbm [resolvable:$true] %s3936
      %3939 = dma.vmem_to_hbm [thread:$0]  %s3935, 512, %s3937, [#allocation3]
    $region29: #{_rcl_forward.1} parent=1 // pred_fallthru
      _
    // Predicated region
    $region30: #{_rcl_forward.1} parent=1 // pred_check
      _
    $region31: #{_rcl_forward.1} parent=1 // pred_check_branch
      %3941 = sbr.rel (0) target = $region33
    $region32: #{_rcl_forward.1} parent=1 // pred_region
      %3943 = dma.done [#allocation3], 512
    $region33: #{_rcl_forward.1} parent=1 // pred_fallthru
      _
    %3944 = vsyncpa [#allocation3], 1

</llo_original>
